<compile_context>
chip_gen: v6e
topology: v6e:2x2x1
jax: 0.10.0
libtpu: 0.0.40
codegen_flags: <defaults>
</compile_context>

<pallas_src>
import functools

import jax
import jax.numpy as jnp
from jax.experimental import pallas as pl
from jax.experimental.pallas import tpu as pltpu

HEAD_PAD = 128          # lane-dense padded width of the merged actor||critic head.
CONV1_ROWS_CAP = 4096   # max rows per conv1 grid step (2 MiB bf16 block).
TAIL_SAMPLES_CAP = 256  # max samples per fused-tail grid step (VMEM-safe on v5e).


# ----------------------------- block sizing --------------------------------

def _largest_divisor_at_most(n, cap, multiple=1):
    cap = max(1, min(n, cap))
    for d in range(cap, 0, -1):
        if n % d == 0 and (d % multiple == 0 or d == n):
            return d
    return n


def _pick_rows_per_block(m, cap=CONV1_ROWS_CAP):
    """Big conv1 blocks amortize ~0.35us/step overhead; keep >=2 steps when the
    problem is big enough so both v7x TensorCores get work."""
    if m > cap:
        target = cap
    elif m >= 256:
        target = m // 2
    else:
        target = m
    return _largest_divisor_at_most(m, target, multiple=8)


def _pick_samples_per_block(b, cap=TAIL_SAMPLES_CAP):
    if b > cap:
        target = cap
    elif b >= 16:
        target = b // 2
    else:
        target = b
    return _largest_divisor_at_most(b, target)


# ----------------------------- Pallas kernels ------------------------------

def _conv1_kernel(col_ref, w_ref, b_ref, o_ref):
    """conv1 as im2col matmul: bf16 operands, f32 accumulate, bias + ReLU fused."""
    acc = jnp.dot(col_ref[...], w_ref[...], preferred_element_type=jnp.float32)
    acc = jnp.maximum(acc + b_ref[...], 0.0)
    o_ref[...] = acc.astype(o_ref.dtype)


def conv1_pallas(col, w, b, *, rows_per_block):
    M, K = col.shape
    _, N = w.shape
    assert M % rows_per_block == 0
    cost = pl.CostEstimate(
        flops=2 * M * K * N,
        transcendentals=0,
        bytes_accessed=M * K * 2 + K * N * 2 + N * 4 + M * N * 2,
    )
    return pl.pallas_call(
        _conv1_kernel,
        out_shape=jax.ShapeDtypeStruct((M, N), jnp.bfloat16),
        grid=(M // rows_per_block,),
        in_specs=[
            pl.BlockSpec((rows_per_block, K), lambda i: (i, 0)),
            pl.BlockSpec((K, N), lambda i: (0, 0)),
            pl.BlockSpec((1, N), lambda i: (0, 0)),
        ],
        out_specs=pl.BlockSpec((rows_per_block, N), lambda i: (i, 0)),
        compiler_params=pltpu.CompilerParams(dimension_semantics=("parallel",)),
        cost_estimate=cost,
    )(col, w, b)


def _tail_kernel(col2_ref, w2_ref, b2_ref, w3_ref, b3_ref,
                 wfc_ref, bfc_ref, wh_ref, bh_ref, out_ref,
                 *, n_actions, n_pos, k2):
    """Batched fused conv2 -> conv3 -> FC -> merged heads -> masked log-softmax.

    col2_ref: (S, n_pos*k2) bf16  |  out_ref: (S, HEAD_PAD) f32
    """
    w2 = w2_ref[...]                       # (k2, 64) bf16
    b2 = b2_ref[...]                       # (1, 64)  f32

    # conv2 + conv3 fused: nine per-position dots with M = S (batched samples).
    acc3 = None
    for p in range(n_pos):
        c2p = col2_ref[:, p * k2:(p + 1) * k2]                       # (S, k2)
        a2p = jnp.dot(c2p, w2, preferred_element_type=jnp.float32)
        a2p = jnp.maximum(a2p + b2, 0.0).astype(jnp.bfloat16)        # (S, 64)
        d = jnp.dot(a2p, w3_ref[p], preferred_element_type=jnp.float32)
        acc3 = d if acc3 is None else acc3 + d
    h3 = jnp.maximum(acc3 + b3_ref[...], 0.0).astype(jnp.bfloat16)   # (S, 64)

    # Linear(n_flatten=64, 512) + ReLU.
    hid = jnp.dot(h3, wfc_ref[...], preferred_element_type=jnp.float32)
    hid = jnp.maximum(hid + bfc_ref[...], 0.0).astype(jnp.bfloat16)  # (S, 512)

    # Merged actor||critic head, zero-padded to 128 lanes (single lane-dense dot).
    head = jnp.dot(hid, wh_ref[...], preferred_element_type=jnp.float32)
    head = head + bh_ref[...]                                        # (S, 128)

    # Masked log-softmax over the first n_actions lanes; exp/log run on the EUP.
    lane = jax.lax.broadcasted_iota(jnp.int32, head.shape, 1)
    is_logit = lane < n_actions
    masked = jnp.where(is_logit, head, -1e30)
    m = jnp.max(masked, axis=-1, keepdims=True)
    e = jnp.where(is_logit, jnp.exp(masked - m), 0.0)   # exp of MASKED values: no inf
    lse = m + jnp.log(jnp.sum(e, axis=-1, keepdims=True))
    logp = head - lse
    out_ref[...] = jnp.where(is_logit, logp,
                             jnp.where(lane == n_actions, head, 0.0))


def fused_tail_pallas(col2, w2, b2, w3, b3, wfc, bfc, wh, bh,
                      *, n_actions, n_pos, k2):
    G, S, Wc = col2.shape
    assert Wc == n_pos * k2
    B = G * S
    kernel = functools.partial(_tail_kernel, n_actions=n_actions, n_pos=n_pos, k2=k2)
    flops_per_sample = 2 * (n_pos * k2 * 64 + n_pos * 64 * 64 + 64 * 512
                            + 512 * HEAD_PAD)
    weight_bytes = ((k2 * 64 + n_pos * 64 * 64 + 64 * 512 + 512 * HEAD_PAD) * 2
                    + (64 + 64 + 512 + HEAD_PAD) * 4)
    cost = pl.CostEstimate(
        flops=B * flops_per_sample,
        transcendentals=B * (HEAD_PAD + 2),
        bytes_accessed=B * Wc * 2 + weight_bytes + B * HEAD_PAD * 4,
    )
    out = pl.pallas_call(
        kernel,
        out_shape=jax.ShapeDtypeStruct((G, S, HEAD_PAD), jnp.float32),
        grid=(G,),
        in_specs=[
            pl.BlockSpec((None, S, Wc), lambda b: (b, 0, 0)),
            pl.BlockSpec(w2.shape, lambda b: (0, 0)),
            pl.BlockSpec(b2.shape, lambda b: (0, 0)),
            pl.BlockSpec(w3.shape, lambda b: (0, 0, 0)),
            pl.BlockSpec(b3.shape, lambda b: (0, 0)),
            pl.BlockSpec(wfc.shape, lambda b: (0, 0)),
            pl.BlockSpec(bfc.shape, lambda b: (0, 0)),
            pl.BlockSpec(wh.shape, lambda b: (0, 0)),
            pl.BlockSpec(bh.shape, lambda b: (0, 0)),
        ],
        out_specs=pl.BlockSpec((None, S, HEAD_PAD), lambda b: (b, 0, 0)),
        compiler_params=pltpu.CompilerParams(dimension_semantics=("parallel",)),
        cost_estimate=cost,
    )(col2, w2, b2, w3, b3, wfc, bfc, wh, bh)
    return out.reshape(B, HEAD_PAD)                                  # (B, 128)


# ------------------------------ JAX glue -----------------------------------

def im2col(x, k, s):
    """x: (B, H, W, C) NHWC -> (B*OH*OW, k*k*C), columns in (kH, kW, Cin) order."""
    B, H, W, C = x.shape
    OH = (H - k) // s + 1
    OW = (W - k) // s + 1
    cols = []
    for di in range(k):
        for dj in range(k):
            cols.append(
                x[:, di:di + s * (OH - 1) + 1:s, dj:dj + s * (OW - 1) + 1:s, :])
    col = jnp.stack(cols, axis=3)                     # (B, OH, OW, k*k, C)
    return col.reshape(B * OH * OW, k * k * C), OH, OW


def init_params(key, c_in, n_actions):
    """Synthetic orthogonal weights matching the module's layer shapes.
    Conv weights are (kH*kW*Cin, Cout); heads are merged + zero-padded to 128."""
    assert n_actions + 1 <= HEAD_PAD
    ortho = jax.nn.initializers.orthogonal
    ks = jax.random.split(key, 6)
    sqrt2 = 2.0 ** 0.5
    w1 = ortho(sqrt2)(ks[0], (8 * 8 * c_in, 32), jnp.float32)
    w2 = ortho(sqrt2)(ks[1], (4 * 4 * 32, 64), jnp.float32)
    w3 = ortho(sqrt2)(ks[2], (3 * 3 * 64, 64), jnp.float32)
    wfc = ortho(sqrt2)(ks[3], (64, 512), jnp.float32)
    wpi = ortho(0.01)(ks[4], (512, n_actions), jnp.float32)
    wv = ortho(0.01)(ks[5], (512, 1), jnp.float32)

    wh = jnp.zeros((512, HEAD_PAD), jnp.float32)
    wh = wh.at[:, :n_actions].set(wpi).at[:, n_actions:n_actions + 1].set(wv)

    return {
        "w1": (w1 / 255.0).astype(jnp.bfloat16),      # /255 folded into conv1 weights
        "b1": jnp.zeros((1, 32), jnp.float32),
        "w2": w2.astype(jnp.bfloat16),
        "b2": jnp.zeros((1, 64), jnp.float32),
        "w3": w3.reshape(9, 64, 64).astype(jnp.bfloat16),   # (patch pos, Cin, Cout)
        "b3": jnp.zeros((1, 64), jnp.float32),
        "w_fc": wfc.astype(jnp.bfloat16),
        "b_fc": jnp.zeros((1, 512), jnp.float32),
        "w_head": wh.astype(jnp.bfloat16),            # [actor(A) | critic(1) | 0 pad]
        "b_head": jnp.zeros((1, HEAD_PAD), jnp.float32),
    }


def multi_team_policy_forward(params, obs, rng_key, *, n_actions):
    """obs: (B, C, H, W) float in [0, 255], like the PyTorch module."""
    B = obs.shape[0]
    x = jnp.transpose(obs, (0, 2, 3, 1))              # NCHW -> NHWC (still 0..255)

    # conv1 (8x8, stride 4) + ReLU.  im2col on raw obs, cast to bf16 (halves HBM
    # bytes into the kernel); the /255 scale lives in w1.
    col1, oh1, ow1 = im2col(x, 8, 4)
    col1 = col1.astype(jnp.bfloat16)
    rpb = _pick_rows_per_block(col1.shape[0])
    a1 = conv1_pallas(col1, params["w1"], params["b1"],
                      rows_per_block=rpb)              # (B*64, 32) bf16
    a1 = a1.reshape(B, oh1, ow1, 32)

    # conv2 im2col (small bf16 slab); everything downstream runs inside ONE fused,
    # batched kernel, so no other intermediate activation touches HBM.
    col2, oh2, ow2 = im2col(a1, 4, 2)                  # (B*9, 512) bf16
    assert oh2 == 3 and ow2 == 3, "conv3 (3x3, stride 1) must reduce to 1x1 spatial"
    n_pos = oh2 * ow2
    k2 = 4 * 4 * 32
    S = _pick_samples_per_block(B)                     # samples per tail grid step
    col2 = col2.reshape(B // S, S, n_pos * k2)         # lane-dense per-block slab

    slab = fused_tail_pallas(col2, params["w2"], params["b2"], params["w3"],
                             params["b3"], params["w_fc"], params["b_fc"],
                             params["w_head"], params["b_head"],
                             n_actions=n_actions, n_pos=n_pos, k2=k2)  # (B, 128)

    log_probs_all = slab[:, :n_actions]                # log-softmax(logits)
    value = slab[:, n_actions:n_actions + 1]

    # TODO(synk): Categorical.sample (stochastic RNG) has no clean Pallas
    # equivalent here; sampled with Gumbel-max via jax.random.categorical.
    actions = jax.random.categorical(rng_key, log_probs_all, axis=-1)
    log_probs = jnp.take_along_axis(log_probs_all, actions[:, None], axis=1)

    return (actions.reshape(B, -1),
            log_probs.reshape(B, -1),
            value,
            log_probs_all)


def reference_forward(params, obs, *, n_actions):
    """Pure-JAX f32 reference of the same math (for correctness checking)."""
    B = obs.shape[0]
    x = jnp.transpose(obs, (0, 2, 3, 1)).astype(jnp.float32)
    col1, oh1, ow1 = im2col(x, 8, 4)
    a1 = jax.nn.relu(col1 @ params["w1"].astype(jnp.float32) + params["b1"])
    a1 = a1.reshape(B, oh1, ow1, 32)
    col2, oh2, ow2 = im2col(a1, 4, 2)
    a2 = jax.nn.relu(col2 @ params["w2"].astype(jnp.float32) + params["b2"])
    a2 = a2.reshape(B, oh2 * ow2, 64)
    h3 = jax.nn.relu(jnp.einsum("bpk,pkc->bc", a2, params["w3"].astype(jnp.float32))
                     + params["b3"])
    hid = jax.nn.relu(h3 @ params["w_fc"].astype(jnp.float32) + params["b_fc"])
    head = hid @ params["w_head"].astype(jnp.float32) + params["b_head"]
    logits = head[:, :n_actions]
    value = head[:, n_actions:n_actions + 1]
    return jax.nn.log_softmax(logits, axis=-1), value


# --------------------------------- main -------------------------------------

if __name__ == "__main__":
    # Shapes consistent with the module: obs_space = (C=4, 36, 36)
    #   conv1: (36-8)/4+1 = 8 ; conv2: (8-4)/2+1 = 3 ; conv3: (3-3)/1+1 = 1
    #   n_flatten = 64 ; action_space = 6
    B, C, H, W = 2, 4, 36, 36
    n_actions = 6

    root = jax.random.PRNGKey(0)
    k_params, k_obs, k_sample = jax.random.split(root, 3)

    params = init_params(k_params, C, n_actions)
    obs = jax.random.uniform(k_obs, (B, C, H, W), jnp.float32, 0.0, 255.0)

    fwd = jax.jit(functools.partial(multi_team_policy_forward, n_actions=n_actions))
    actions, log_probs, value, log_probs_all = jax.block_until_ready(
        fwd(params, obs, k_sample))

    assert actions.shape == (B, 1)
    assert log_probs.shape == (B, 1)
    assert value.shape == (B, 1)
    assert log_probs_all.shape == (B, n_actions)
    assert bool(jnp.all(jnp.isfinite(log_probs)))
    assert bool(jnp.all(jnp.isfinite(value)))
    # log-softmax rows (computed inside the fused kernel) must normalize to 1.
    assert bool(jnp.allclose(jnp.exp(log_probs_all).sum(-1), 1.0, atol=1e-3))

    # Compare against a pure-JAX f32 reference (kernel path uses bf16 MXU operands,
    # so a loose tolerance is applied).
    ref_fn = jax.jit(functools.partial(reference_forward, n_actions=n_actions))
    ref_logp, ref_value = jax.block_until_ready(ref_fn(params, obs))
    assert bool(jnp.max(jnp.abs(log_probs_all - ref_logp)) < 2e-2)
    assert bool(jnp.max(jnp.abs(value - ref_value)) < 2e-2)

    print("KERNEL_OK")
</pallas_src>

<mosaic_0001>
module attributes {stable_mosaic.version = 11 : i64} {
  func.func @_conv1_kernel(%arg0: i32, %arg1: memref<128x256xbf16, #tpu.memory_space<vmem>>, %arg2: memref<256x32xbf16, #tpu.memory_space<vmem>>, %arg3: memref<1x32xf32, #tpu.memory_space<vmem>>, %arg4: memref<128x32xbf16, #tpu.memory_space<vmem>>) attributes {dimension_semantics = [#tpu.dimension_semantics<parallel>], iteration_bounds = array<i64: 1>, scalar_prefetch = 0 : i64, scratch_operands = 0 : i64, tpu.core_type = #tpu.core_type<tc>, window_params = [{transform_indices = @transform_0, window_bounds = array<i64: 128, 256>}, {pipeline_mode = #tpu.pipeline_mode<synchronous>, transform_indices = @transform_1, window_bounds = array<i64: 256, 32>}, {pipeline_mode = #tpu.pipeline_mode<synchronous>, transform_indices = @transform_2, window_bounds = array<i64: 1, 32>}, {transform_indices = @transform_3, window_bounds = array<i64: 128, 32>}]} {
    %c0 = arith.constant 0 : index
    %c0_0 = arith.constant 0 : index
    %0 = vector.load %arg1[%c0, %c0_0] : memref<128x256xbf16, #tpu.memory_space<vmem>>, vector<128x256xbf16>
    %c0_1 = arith.constant 0 : index
    %c0_2 = arith.constant 0 : index
    %1 = vector.load %arg2[%c0_1, %c0_2] : memref<256x32xbf16, #tpu.memory_space<vmem>>, vector<256x32xbf16>
    %cst = arith.constant dense<0.000000e+00> : vector<128x32xf32>
    %2 = tpu.matmul %0, %1, %cst {dimension_numbers = #tpu.dot_dimension_numbers<[1], [0], [0], [1], [0, 0, 1, 1], [], []>} : vector<128x256xbf16>, vector<256x32xbf16>, vector<128x32xf32> -> vector<128x32xf32>
    %c0_3 = arith.constant 0 : index
    %c0_4 = arith.constant 0 : index
    %3 = vector.load %arg3[%c0_3, %c0_4] : memref<1x32xf32, #tpu.memory_space<vmem>>, vector<1x32xf32>
    %4 = vector.broadcast %3 : vector<1x32xf32> to vector<128x32xf32>
    %5 = arith.addf %2, %4 : vector<128x32xf32>
    %cst_5 = arith.constant 0.000000e+00 : f32
    %6 = vector.broadcast %cst_5 : f32 to vector<128x32xf32>
    %7 = arith.maximumf %5, %6 : vector<128x32xf32>
    %8 = arith.truncf %7 : vector<128x32xf32> to vector<128x32xbf16>
    %c0_6 = arith.constant 0 : index
    %c0_7 = arith.constant 0 : index
    %9 = vector.load %arg4[%c0_6, %c0_7] : memref<128x32xbf16, #tpu.memory_space<vmem>>, vector<128x32xbf16>
    tpu.vector_store %arg4[%c0_6, %c0_7], %8 {strides = array<i32>} : memref<128x32xbf16, #tpu.memory_space<vmem>>, vector<128x32xbf16>,
    return
  }
  func.func @transform_0(%arg0: i32) -> (i32, i32) {
    %c0_i32 = arith.constant 0 : i32
    %c0_i32_0 = arith.constant 0 : i32
    return %arg0, %c0_i32 : i32, i32
  }
  func.func @transform_1(%arg0: i32) -> (i32, i32) {
    %c0_i32 = arith.constant 0 : i32
    %c0_i32_0 = arith.constant 0 : i32
    %c0_i32_1 = arith.constant 0 : i32
    return %c0_i32, %c0_i32_0 : i32, i32
  }
  func.func @transform_2(%arg0: i32) -> (i32, i32) {
    %c0_i32 = arith.constant 0 : i32
    %c0_i32_0 = arith.constant 0 : i32
    %c0_i32_1 = arith.constant 0 : i32
    return %c0_i32, %c0_i32_0 : i32, i32
  }
  func.func @transform_3(%arg0: i32) -> (i32, i32) {
    %c0_i32 = arith.constant 0 : i32
    %c0_i32_0 = arith.constant 0 : i32
    return %arg0, %c0_i32 : i32, i32
  }
}

module attributes {stable_mosaic.version = 11 : i64} {
  func.func @_tail_kernel(%arg0: i32, %arg1: memref<1x2x4608xbf16, #tpu.memory_space<vmem>>, %arg2: memref<512x64xbf16, #tpu.memory_space<vmem>>, %arg3: memref<1x64xf32, #tpu.memory_space<vmem>>, %arg4: memref<9x64x64xbf16, #tpu.memory_space<vmem>>, %arg5: memref<1x64xf32, #tpu.memory_space<vmem>>, %arg6: memref<64x512xbf16, #tpu.memory_space<vmem>>, %arg7: memref<1x512xf32, #tpu.memory_space<vmem>>, %arg8: memref<512x128xbf16, #tpu.memory_space<vmem>>, %arg9: memref<1x128xf32, #tpu.memory_space<vmem>>, %arg10: memref<1x2x128xf32, #tpu.memory_space<vmem>>) attributes {dimension_semantics = [#tpu.dimension_semantics<parallel>], iteration_bounds = array<i64: 1>, scalar_prefetch = 0 : i64, scratch_operands = 0 : i64, tpu.core_type = #tpu.core_type<tc>, window_params = [{transform_indices = @transform_0, window_bounds = array<i64: 1, 2, 4608>}, {pipeline_mode = #tpu.pipeline_mode<synchronous>, transform_indices = @transform_1, window_bounds = array<i64: 512, 64>}, {pipeline_mode = #tpu.pipeline_mode<synchronous>, transform_indices = @transform_2, window_bounds = array<i64: 1, 64>}, {pipeline_mode = #tpu.pipeline_mode<synchronous>, transform_indices = @transform_3, window_bounds = array<i64: 9, 64, 64>}, {pipeline_mode = #tpu.pipeline_mode<synchronous>, transform_indices = @transform_4, window_bounds = array<i64: 1, 64>}, {pipeline_mode = #tpu.pipeline_mode<synchronous>, transform_indices = @transform_5, window_bounds = array<i64: 64, 512>}, {pipeline_mode = #tpu.pipeline_mode<synchronous>, transform_indices = @transform_6, window_bounds = array<i64: 1, 512>}, {pipeline_mode = #tpu.pipeline_mode<synchronous>, transform_indices = @transform_7, window_bounds = array<i64: 512, 128>}, {pipeline_mode = #tpu.pipeline_mode<synchronous>, transform_indices = @transform_8, window_bounds = array<i64: 1, 128>}, {transform_indices = @transform_9, window_bounds = array<i64: 1, 2, 128>}]} {
    %c0 = arith.constant 0 : index
    %c0_0 = arith.constant 0 : index
    %0 = vector.load %arg2[%c0, %c0_0] : memref<512x64xbf16, #tpu.memory_space<vmem>>, vector<512x64xbf16>
    %c0_1 = arith.constant 0 : index
    %c0_2 = arith.constant 0 : index
    %1 = vector.load %arg3[%c0_1, %c0_2] : memref<1x64xf32, #tpu.memory_space<vmem>>, vector<1x64xf32>
    %c0_3 = arith.constant 0 : index
    %c0_4 = arith.constant 0 : index
    %c0_5 = arith.constant 0 : index
    %2 = vector.load %arg1[%c0_3, %c0_4, %c0_5] : memref<1x2x4608xbf16, #tpu.memory_space<vmem>>, vector<1x2x512xbf16>
    %3 = vector.shape_cast %2 : vector<1x2x512xbf16> to vector<2x512xbf16>
    %cst = arith.constant dense<0.000000e+00> : vector<2x64xf32>
    %4 = tpu.matmul %3, %0, %cst {dimension_numbers = #tpu.dot_dimension_numbers<[1], [0], [0], [1], [0, 0, 1, 1], [], []>} : vector<2x512xbf16>, vector<512x64xbf16>, vector<2x64xf32> -> vector<2x64xf32>
    %5 = vector.broadcast %1 : vector<1x64xf32> to vector<2x64xf32>
    %6 = arith.addf %4, %5 : vector<2x64xf32>
    %cst_6 = arith.constant 0.000000e+00 : f32
    %7 = vector.broadcast %cst_6 : f32 to vector<2x64xf32>
    %8 = arith.maximumf %6, %7 : vector<2x64xf32>
    %9 = arith.truncf %8 : vector<2x64xf32> to vector<2x64xbf16>
    %c0_7 = arith.constant 0 : index
    %c0_8 = arith.constant 0 : index
    %c0_9 = arith.constant 0 : index
    %10 = vector.load %arg4[%c0_7, %c0_8, %c0_9] : memref<9x64x64xbf16, #tpu.memory_space<vmem>>, vector<1x64x64xbf16>
    %11 = vector.shape_cast %10 : vector<1x64x64xbf16> to vector<64x64xbf16>
    %cst_10 = arith.constant dense<0.000000e+00> : vector<2x64xf32>
    %12 = tpu.matmul %9, %11, %cst_10 {dimension_numbers = #tpu.dot_dimension_numbers<[1], [0], [0], [1], [0, 0, 1, 1], [], []>} : vector<2x64xbf16>, vector<64x64xbf16>, vector<2x64xf32> -> vector<2x64xf32>
    %c0_11 = arith.constant 0 : index
    %c0_12 = arith.constant 0 : index
    %c512 = arith.constant 512 : index
    %13 = vector.load %arg1[%c0_11, %c0_12, %c512] : memref<1x2x4608xbf16, #tpu.memory_space<vmem>>, vector<1x2x512xbf16>
    %14 = vector.shape_cast %13 : vector<1x2x512xbf16> to vector<2x512xbf16>
    %cst_13 = arith.constant dense<0.000000e+00> : vector<2x64xf32>
    %15 = tpu.matmul %14, %0, %cst_13 {dimension_numbers = #tpu.dot_dimension_numbers<[1], [0], [0], [1], [0, 0, 1, 1], [], []>} : vector<2x512xbf16>, vector<512x64xbf16>, vector<2x64xf32> -> vector<2x64xf32>
    %16 = vector.broadcast %1 : vector<1x64xf32> to vector<2x64xf32>
    %17 = arith.addf %15, %16 : vector<2x64xf32>
    %cst_14 = arith.constant 0.000000e+00 : f32
    %18 = vector.broadcast %cst_14 : f32 to vector<2x64xf32>
    %19 = arith.maximumf %17, %18 : vector<2x64xf32>
    %20 = arith.truncf %19 : vector<2x64xf32> to vector<2x64xbf16>
    %c1 = arith.constant 1 : index
    %c0_15 = arith.constant 0 : index
    %c0_16 = arith.constant 0 : index
    %21 = vector.load %arg4[%c1, %c0_15, %c0_16] : memref<9x64x64xbf16, #tpu.memory_space<vmem>>, vector<1x64x64xbf16>
    %22 = vector.shape_cast %21 : vector<1x64x64xbf16> to vector<64x64xbf16>
    %cst_17 = arith.constant dense<0.000000e+00> : vector<2x64xf32>
    %23 = tpu.matmul %20, %22, %cst_17 {dimension_numbers = #tpu.dot_dimension_numbers<[1], [0], [0], [1], [0, 0, 1, 1], [], []>} : vector<2x64xbf16>, vector<64x64xbf16>, vector<2x64xf32> -> vector<2x64xf32>
    %24 = arith.addf %12, %23 : vector<2x64xf32>
    %c0_18 = arith.constant 0 : index
    %c0_19 = arith.constant 0 : index
    %c1024 = arith.constant 1024 : index
    %25 = vector.load %arg1[%c0_18, %c0_19, %c1024] : memref<1x2x4608xbf16, #tpu.memory_space<vmem>>, vector<1x2x512xbf16>
    %26 = vector.shape_cast %25 : vector<1x2x512xbf16> to vector<2x512xbf16>
    %cst_20 = arith.constant dense<0.000000e+00> : vector<2x64xf32>
    %27 = tpu.matmul %26, %0, %cst_20 {dimension_numbers = #tpu.dot_dimension_numbers<[1], [0], [0], [1], [0, 0, 1, 1], [], []>} : vector<2x512xbf16>, vector<512x64xbf16>, vector<2x64xf32> -> vector<2x64xf32>
    %28 = vector.broadcast %1 : vector<1x64xf32> to vector<2x64xf32>
    %29 = arith.addf %27, %28 : vector<2x64xf32>
    %cst_21 = arith.constant 0.000000e+00 : f32
    %30 = vector.broadcast %cst_21 : f32 to vector<2x64xf32>
    %31 = arith.maximumf %29, %30 : vector<2x64xf32>
    %32 = arith.truncf %31 : vector<2x64xf32> to vector<2x64xbf16>
    %c2 = arith.constant 2 : index
    %c0_22 = arith.constant 0 : index
    %c0_23 = arith.constant 0 : index
    %33 = vector.load %arg4[%c2, %c0_22, %c0_23] : memref<9x64x64xbf16, #tpu.memory_space<vmem>>, vector<1x64x64xbf16>
    %34 = vector.shape_cast %33 : vector<1x64x64xbf16> to vector<64x64xbf16>
    %cst_24 = arith.constant dense<0.000000e+00> : vector<2x64xf32>
    %35 = tpu.matmul %32, %34, %cst_24 {dimension_numbers = #tpu.dot_dimension_numbers<[1], [0], [0], [1], [0, 0, 1, 1], [], []>} : vector<2x64xbf16>, vector<64x64xbf16>, vector<2x64xf32> -> vector<2x64xf32>
    %36 = arith.addf %24, %35 : vector<2x64xf32>
    %c0_25 = arith.constant 0 : index
    %c0_26 = arith.constant 0 : index
    %c1536 = arith.constant 1536 : index
    %37 = vector.load %arg1[%c0_25, %c0_26, %c1536] : memref<1x2x4608xbf16, #tpu.memory_space<vmem>>, vector<1x2x512xbf16>
    %38 = vector.shape_cast %37 : vector<1x2x512xbf16> to vector<2x512xbf16>
    %cst_27 = arith.constant dense<0.000000e+00> : vector<2x64xf32>
    %39 = tpu.matmul %38, %0, %cst_27 {dimension_numbers = #tpu.dot_dimension_numbers<[1], [0], [0], [1], [0, 0, 1, 1], [], []>} : vector<2x512xbf16>, vector<512x64xbf16>, vector<2x64xf32> -> vector<2x64xf32>
    %40 = vector.broadcast %1 : vector<1x64xf32> to vector<2x64xf32>
    %41 = arith.addf %39, %40 : vector<2x64xf32>
    %cst_28 = arith.constant 0.000000e+00 : f32
    %42 = vector.broadcast %cst_28 : f32 to vector<2x64xf32>
    %43 = arith.maximumf %41, %42 : vector<2x64xf32>
    %44 = arith.truncf %43 : vector<2x64xf32> to vector<2x64xbf16>
    %c3 = arith.constant 3 : index
    %c0_29 = arith.constant 0 : index
    %c0_30 = arith.constant 0 : index
    %45 = vector.load %arg4[%c3, %c0_29, %c0_30] : memref<9x64x64xbf16, #tpu.memory_space<vmem>>, vector<1x64x64xbf16>
    %46 = vector.shape_cast %45 : vector<1x64x64xbf16> to vector<64x64xbf16>
    %cst_31 = arith.constant dense<0.000000e+00> : vector<2x64xf32>
    %47 = tpu.matmul %44, %46, %cst_31 {dimension_numbers = #tpu.dot_dimension_numbers<[1], [0], [0], [1], [0, 0, 1, 1], [], []>} : vector<2x64xbf16>, vector<64x64xbf16>, vector<2x64xf32> -> vector<2x64xf32>
    %48 = arith.addf %36, %47 : vector<2x64xf32>
    %c0_32 = arith.constant 0 : index
    %c0_33 = arith.constant 0 : index
    %c2048 = arith.constant 2048 : index
    %49 = vector.load %arg1[%c0_32, %c0_33, %c2048] : memref<1x2x4608xbf16, #tpu.memory_space<vmem>>, vector<1x2x512xbf16>
    %50 = vector.shape_cast %49 : vector<1x2x512xbf16> to vector<2x512xbf16>
    %cst_34 = arith.constant dense<0.000000e+00> : vector<2x64xf32>
    %51 = tpu.matmul %50, %0, %cst_34 {dimension_numbers = #tpu.dot_dimension_numbers<[1], [0], [0], [1], [0, 0, 1, 1], [], []>} : vector<2x512xbf16>, vector<512x64xbf16>, vector<2x64xf32> -> vector<2x64xf32>
    %52 = vector.broadcast %1 : vector<1x64xf32> to vector<2x64xf32>
    %53 = arith.addf %51, %52 : vector<2x64xf32>
    %cst_35 = arith.constant 0.000000e+00 : f32
    %54 = vector.broadcast %cst_35 : f32 to vector<2x64xf32>
    %55 = arith.maximumf %53, %54 : vector<2x64xf32>
    %56 = arith.truncf %55 : vector<2x64xf32> to vector<2x64xbf16>
    %c4 = arith.constant 4 : index
    %c0_36 = arith.constant 0 : index
    %c0_37 = arith.constant 0 : index
    %57 = vector.load %arg4[%c4, %c0_36, %c0_37] : memref<9x64x64xbf16, #tpu.memory_space<vmem>>, vector<1x64x64xbf16>
    %58 = vector.shape_cast %57 : vector<1x64x64xbf16> to vector<64x64xbf16>
    %cst_38 = arith.constant dense<0.000000e+00> : vector<2x64xf32>
    %59 = tpu.matmul %56, %58, %cst_38 {dimension_numbers = #tpu.dot_dimension_numbers<[1], [0], [0], [1], [0, 0, 1, 1], [], []>} : vector<2x64xbf16>, vector<64x64xbf16>, vector<2x64xf32> -> vector<2x64xf32>
    %60 = arith.addf %48, %59 : vector<2x64xf32>
    %c0_39 = arith.constant 0 : index
    %c0_40 = arith.constant 0 : index
    %c2560 = arith.constant 2560 : index
    %61 = vector.load %arg1[%c0_39, %c0_40, %c2560] : memref<1x2x4608xbf16, #tpu.memory_space<vmem>>, vector<1x2x512xbf16>
    %62 = vector.shape_cast %61 : vector<1x2x512xbf16> to vector<2x512xbf16>
    %cst_41 = arith.constant dense<0.000000e+00> : vector<2x64xf32>
    %63 = tpu.matmul %62, %0, %cst_41 {dimension_numbers = #tpu.dot_dimension_numbers<[1], [0], [0], [1], [0, 0, 1, 1], [], []>} : vector<2x512xbf16>, vector<512x64xbf16>, vector<2x64xf32> -> vector<2x64xf32>
    %64 = vector.broadcast %1 : vector<1x64xf32> to vector<2x64xf32>
    %65 = arith.addf %63, %64 : vector<2x64xf32>
    %cst_42 = arith.constant 0.000000e+00 : f32
    %66 = vector.broadcast %cst_42 : f32 to vector<2x64xf32>
    %67 = arith.maximumf %65, %66 : vector<2x64xf32>
    %68 = arith.truncf %67 : vector<2x64xf32> to vector<2x64xbf16>
    %c5 = arith.constant 5 : index
    %c0_43 = arith.constant 0 : index
    %c0_44 = arith.constant 0 : index
    %69 = vector.load %arg4[%c5, %c0_43, %c0_44] : memref<9x64x64xbf16, #tpu.memory_space<vmem>>, vector<1x64x64xbf16>
    %70 = vector.shape_cast %69 : vector<1x64x64xbf16> to vector<64x64xbf16>
    %cst_45 = arith.constant dense<0.000000e+00> : vector<2x64xf32>
    %71 = tpu.matmul %68, %70, %cst_45 {dimension_numbers = #tpu.dot_dimension_numbers<[1], [0], [0], [1], [0, 0, 1, 1], [], []>} : vector<2x64xbf16>, vector<64x64xbf16>, vector<2x64xf32> -> vector<2x64xf32>
    %72 = arith.addf %60, %71 : vector<2x64xf32>
    %c0_46 = arith.constant 0 : index
    %c0_47 = arith.constant 0 : index
    %c3072 = arith.constant 3072 : index
    %73 = vector.load %arg1[%c0_46, %c0_47, %c3072] : memref<1x2x4608xbf16, #tpu.memory_space<vmem>>, vector<1x2x512xbf16>
    %74 = vector.shape_cast %73 : vector<1x2x512xbf16> to vector<2x512xbf16>
    %cst_48 = arith.constant dense<0.000000e+00> : vector<2x64xf32>
    %75 = tpu.matmul %74, %0, %cst_48 {dimension_numbers = #tpu.dot_dimension_numbers<[1], [0], [0], [1], [0, 0, 1, 1], [], []>} : vector<2x512xbf16>, vector<512x64xbf16>, vector<2x64xf32> -> vector<2x64xf32>
    %76 = vector.broadcast %1 : vector<1x64xf32> to vector<2x64xf32>
    %77 = arith.addf %75, %76 : vector<2x64xf32>
    %cst_49 = arith.constant 0.000000e+00 : f32
    %78 = vector.broadcast %cst_49 : f32 to vector<2x64xf32>
    %79 = arith.maximumf %77, %78 : vector<2x64xf32>
    %80 = arith.truncf %79 : vector<2x64xf32> to vector<2x64xbf16>
    %c6 = arith.constant 6 : index
    %c0_50 = arith.constant 0 : index
    %c0_51 = arith.constant 0 : index
    %81 = vector.load %arg4[%c6, %c0_50, %c0_51] : memref<9x64x64xbf16, #tpu.memory_space<vmem>>, vector<1x64x64xbf16>
    %82 = vector.shape_cast %81 : vector<1x64x64xbf16> to vector<64x64xbf16>
    %cst_52 = arith.constant dense<0.000000e+00> : vector<2x64xf32>
    %83 = tpu.matmul %80, %82, %cst_52 {dimension_numbers = #tpu.dot_dimension_numbers<[1], [0], [0], [1], [0, 0, 1, 1], [], []>} : vector<2x64xbf16>, vector<64x64xbf16>, vector<2x64xf32> -> vector<2x64xf32>
    %84 = arith.addf %72, %83 : vector<2x64xf32>
    %c0_53 = arith.constant 0 : index
    %c0_54 = arith.constant 0 : index
    %c3584 = arith.constant 3584 : index
    %85 = vector.load %arg1[%c0_53, %c0_54, %c3584] : memref<1x2x4608xbf16, #tpu.memory_space<vmem>>, vector<1x2x512xbf16>
    %86 = vector.shape_cast %85 : vector<1x2x512xbf16> to vector<2x512xbf16>
    %cst_55 = arith.constant dense<0.000000e+00> : vector<2x64xf32>
    %87 = tpu.matmul %86, %0, %cst_55 {dimension_numbers = #tpu.dot_dimension_numbers<[1], [0], [0], [1], [0, 0, 1, 1], [], []>} : vector<2x512xbf16>, vector<512x64xbf16>, vector<2x64xf32> -> vector<2x64xf32>
    %88 = vector.broadcast %1 : vector<1x64xf32> to vector<2x64xf32>
    %89 = arith.addf %87, %88 : vector<2x64xf32>
    %cst_56 = arith.constant 0.000000e+00 : f32
    %90 = vector.broadcast %cst_56 : f32 to vector<2x64xf32>
    %91 = arith.maximumf %89, %90 : vector<2x64xf32>
    %92 = arith.truncf %91 : vector<2x64xf32> to vector<2x64xbf16>
    %c7 = arith.constant 7 : index
    %c0_57 = arith.constant 0 : index
    %c0_58 = arith.constant 0 : index
    %93 = vector.load %arg4[%c7, %c0_57, %c0_58] : memref<9x64x64xbf16, #tpu.memory_space<vmem>>, vector<1x64x64xbf16>
    %94 = vector.shape_cast %93 : vector<1x64x64xbf16> to vector<64x64xbf16>
    %cst_59 = arith.constant dense<0.000000e+00> : vector<2x64xf32>
    %95 = tpu.matmul %92, %94, %cst_59 {dimension_numbers = #tpu.dot_dimension_numbers<[1], [0], [0], [1], [0, 0, 1, 1], [], []>} : vector<2x64xbf16>, vector<64x64xbf16>, vector<2x64xf32> -> vector<2x64xf32>
    %96 = arith.addf %84, %95 : vector<2x64xf32>
    %c0_60 = arith.constant 0 : index
    %c0_61 = arith.constant 0 : index
    %c4096 = arith.constant 4096 : index
    %97 = vector.load %arg1[%c0_60, %c0_61, %c4096] : memref<1x2x4608xbf16, #tpu.memory_space<vmem>>, vector<1x2x512xbf16>
    %98 = vector.shape_cast %97 : vector<1x2x512xbf16> to vector<2x512xbf16>
    %cst_62 = arith.constant dense<0.000000e+00> : vector<2x64xf32>
    %99 = tpu.matmul %98, %0, %cst_62 {dimension_numbers = #tpu.dot_dimension_numbers<[1], [0], [0], [1], [0, 0, 1, 1], [], []>} : vector<2x512xbf16>, vector<512x64xbf16>, vector<2x64xf32> -> vector<2x64xf32>
    %100 = vector.broadcast %1 : vector<1x64xf32> to vector<2x64xf32>
    %101 = arith.addf %99, %100 : vector<2x64xf32>
    %cst_63 = arith.constant 0.000000e+00 : f32
    %102 = vector.broadcast %cst_63 : f32 to vector<2x64xf32>
    %103 = arith.maximumf %101, %102 : vector<2x64xf32>
    %104 = arith.truncf %103 : vector<2x64xf32> to vector<2x64xbf16>
    %c8 = arith.constant 8 : index
    %c0_64 = arith.constant 0 : index
    %c0_65 = arith.constant 0 : index
    %105 = vector.load %arg4[%c8, %c0_64, %c0_65] : memref<9x64x64xbf16, #tpu.memory_space<vmem>>, vector<1x64x64xbf16>
    %106 = vector.shape_cast %105 : vector<1x64x64xbf16> to vector<64x64xbf16>
    %cst_66 = arith.constant dense<0.000000e+00> : vector<2x64xf32>
    %107 = tpu.matmul %104, %106, %cst_66 {dimension_numbers = #tpu.dot_dimension_numbers<[1], [0], [0], [1], [0, 0, 1, 1], [], []>} : vector<2x64xbf16>, vector<64x64xbf16>, vector<2x64xf32> -> vector<2x64xf32>
    %108 = arith.addf %96, %107 : vector<2x64xf32>
    %c0_67 = arith.constant 0 : index
    %c0_68 = arith.constant 0 : index
    %109 = vector.load %arg5[%c0_67, %c0_68] : memref<1x64xf32, #tpu.memory_space<vmem>>, vector<1x64xf32>
    %110 = vector.broadcast %109 : vector<1x64xf32> to vector<2x64xf32>
    %111 = arith.addf %108, %110 : vector<2x64xf32>
    %cst_69 = arith.constant 0.000000e+00 : f32
    %112 = vector.broadcast %cst_69 : f32 to vector<2x64xf32>
    %113 = arith.maximumf %111, %112 : vector<2x64xf32>
    %114 = arith.truncf %113 : vector<2x64xf32> to vector<2x64xbf16>
    %c0_70 = arith.constant 0 : index
    %c0_71 = arith.constant 0 : index
    %115 = vector.load %arg6[%c0_70, %c0_71] : memref<64x512xbf16, #tpu.memory_space<vmem>>, vector<64x512xbf16>
    %cst_72 = arith.constant dense<0.000000e+00> : vector<2x512xf32>
    %116 = tpu.matmul %114, %115, %cst_72 {dimension_numbers = #tpu.dot_dimension_numbers<[1], [0], [0], [1], [0, 0, 1, 1], [], []>} : vector<2x64xbf16>, vector<64x512xbf16>, vector<2x512xf32> -> vector<2x512xf32>
    %c0_73 = arith.constant 0 : index
    %c0_74 = arith.constant 0 : index
    %117 = vector.load %arg7[%c0_73, %c0_74] : memref<1x512xf32, #tpu.memory_space<vmem>>, vector<1x512xf32>
    %118 = vector.broadcast %117 : vector<1x512xf32> to vector<2x512xf32>
    %119 = arith.addf %116, %118 : vector<2x512xf32>
    %cst_75 = arith.constant 0.000000e+00 : f32
    %120 = vector.broadcast %cst_75 : f32 to vector<2x512xf32>
    %121 = arith.maximumf %119, %120 : vector<2x512xf32>
    %122 = arith.truncf %121 : vector<2x512xf32> to vector<2x512xbf16>
    %c0_76 = arith.constant 0 : index
    %c0_77 = arith.constant 0 : index
    %123 = vector.load %arg8[%c0_76, %c0_77] : memref<512x128xbf16, #tpu.memory_space<vmem>>, vector<512x128xbf16>
    %cst_78 = arith.constant dense<0.000000e+00> : vector<2x128xf32>
    %124 = tpu.matmul %122, %123, %cst_78 {dimension_numbers = #tpu.dot_dimension_numbers<[1], [0], [0], [1], [0, 0, 1, 1], [], []>} : vector<2x512xbf16>, vector<512x128xbf16>, vector<2x128xf32> -> vector<2x128xf32>
    %c0_79 = arith.constant 0 : index
    %c0_80 = arith.constant 0 : index
    %125 = vector.load %arg9[%c0_79, %c0_80] : memref<1x128xf32, #tpu.memory_space<vmem>>, vector<1x128xf32>
    %126 = vector.broadcast %125 : vector<1x128xf32> to vector<2x128xf32>
    %127 = arith.addf %124, %126 : vector<2x128xf32>
    %128 = tpu.iota {dimensions = array<i32: 1>} : vector<2x128xi32>
    %c6_i32 = arith.constant 6 : i32
    %129 = vector.broadcast %c6_i32 : i32 to vector<2x128xi32>
    %130 = arith.cmpi slt, %128, %129 : vector<2x128xi32>
    %cst_81 = arith.constant -1.000000e+30 : f32
    %131 = vector.broadcast %cst_81 : f32 to vector<2x128xf32>
    %132 = arith.select %130, %127, %131 : vector<2x128xi1>, vector<2x128xf32>
    %cst_82 = arith.constant dense<0xFF800000> : vector<2xf32>
    %133 = vector.multi_reduction <maximumf>, %132, %cst_82 [1] : vector<2x128xf32> to vector<2xf32>
    %134 = vector.shape_cast %133 : vector<2xf32> to vector<2x1xf32>
    %135 = vector.broadcast %134 : vector<2x1xf32> to vector<2x128xf32>
    %136 = arith.subf %132, %135 : vector<2x128xf32>
    %137 = math.exp %136 : vector<2x128xf32>
    %cst_83 = arith.constant 0.000000e+00 : f32
    %138 = vector.broadcast %cst_83 : f32 to vector<2x128xf32>
    %139 = arith.select %130, %137, %138 : vector<2x128xi1>, vector<2x128xf32>
    %cst_84 = arith.constant dense<0.000000e+00> : vector<2xf32>
    %140 = vector.multi_reduction <add>, %139, %cst_84 [1] : vector<2x128xf32> to vector<2xf32>
    %141 = vector.shape_cast %140 : vector<2xf32> to vector<2x1xf32>
    %142 = math.log %141 : vector<2x1xf32>
    %143 = arith.addf %134, %142 : vector<2x1xf32>
    %144 = vector.broadcast %143 : vector<2x1xf32> to vector<2x128xf32>
    %145 = arith.subf %127, %144 : vector<2x128xf32>
    %c6_i32_85 = arith.constant 6 : i32
    %146 = vector.broadcast %c6_i32_85 : i32 to vector<2x128xi32>
    %147 = arith.cmpi eq, %128, %146 : vector<2x128xi32>
    %cst_86 = arith.constant 0.000000e+00 : f32
    %148 = vector.broadcast %cst_86 : f32 to vector<2x128xf32>
    %149 = arith.select %147, %127, %148 : vector<2x128xi1>, vector<2x128xf32>
    %150 = arith.select %130, %145, %149 : vector<2x128xi1>, vector<2x128xf32>
    %c0_87 = arith.constant 0 : index
    %c0_88 = arith.constant 0 : index
    %c0_89 = arith.constant 0 : index
    %151 = vector.load %arg10[%c0_87, %c0_88, %c0_89] : memref<1x2x128xf32, #tpu.memory_space<vmem>>, vector<1x2x128xf32>
    %152 = vector.shape_cast %151 : vector<1x2x128xf32> to vector<2x128xf32>
    %153 = vector.shape_cast %150 : vector<2x128xf32> to vector<1x2x128xf32>
    tpu.vector_store %arg10[%c0_87, %c0_88, %c0_89], %153 {strides = array<i32>} : memref<1x2x128xf32, #tpu.memory_space<vmem>>, vector<1x2x128xf32>,
    return
  }
  func.func @transform_0(%arg0: i32) -> (i32, i32, i32) {
    %c0_i32 = arith.constant 0 : i32
    %c0_i32_0 = arith.constant 0 : i32
    %c0_i32_1 = arith.constant 0 : i32
    return %arg0, %c0_i32, %c0_i32_0 : i32, i32, i32
  }
  func.func @transform_1(%arg0: i32) -> (i32, i32) {
    %c0_i32 = arith.constant 0 : i32
    %c0_i32_0 = arith.constant 0 : i32
    %c0_i32_1 = arith.constant 0 : i32
    return %c0_i32, %c0_i32_0 : i32, i32
  }
  func.func @transform_2(%arg0: i32) -> (i32, i32) {
    %c0_i32 = arith.constant 0 : i32
    %c0_i32_0 = arith.constant 0 : i32
    %c0_i32_1 = arith.constant 0 : i32
    return %c0_i32, %c0_i32_0 : i32, i32
  }
  func.func @transform_3(%arg0: i32) -> (i32, i32, i32) {
    %c0_i32 = arith.constant 0 : i32
    %c0_i32_0 = arith.constant 0 : i32
    %c0_i32_1 = arith.constant 0 : i32
    %c0_i32_2 = arith.constant 0 : i32
    return %c0_i32, %c0_i32_0, %c0_i32_1 : i32, i32, i32
  }
  func.func @transform_4(%arg0: i32) -> (i32, i32) {
    %c0_i32 = arith.constant 0 : i32
    %c0_i32_0 = arith.constant 0 : i32
    %c0_i32_1 = arith.constant 0 : i32
    return %c0_i32, %c0_i32_0 : i32, i32
  }
  func.func @transform_5(%arg0: i32) -> (i32, i32) {
    %c0_i32 = arith.constant 0 : i32
    %c0_i32_0 = arith.constant 0 : i32
    %c0_i32_1 = arith.constant 0 : i32
    return %c0_i32, %c0_i32_0 : i32, i32
  }
  func.func @transform_6(%arg0: i32) -> (i32, i32) {
    %c0_i32 = arith.constant 0 : i32
    %c0_i32_0 = arith.constant 0 : i32
    %c0_i32_1 = arith.constant 0 : i32
    return %c0_i32, %c0_i32_0 : i32, i32
  }
  func.func @transform_7(%arg0: i32) -> (i32, i32) {
    %c0_i32 = arith.constant 0 : i32
    %c0_i32_0 = arith.constant 0 : i32
    %c0_i32_1 = arith.constant 0 : i32
    return %c0_i32, %c0_i32_0 : i32, i32
  }
  func.func @transform_8(%arg0: i32) -> (i32, i32) {
    %c0_i32 = arith.constant 0 : i32
    %c0_i32_0 = arith.constant 0 : i32
    %c0_i32_1 = arith.constant 0 : i32
    return %c0_i32, %c0_i32_0 : i32, i32
  }
  func.func @transform_9(%arg0: i32) -> (i32, i32, i32) {
    %c0_i32 = arith.constant 0 : i32
    %c0_i32_0 = arith.constant 0 : i32
    %c0_i32_1 = arith.constant 0 : i32
    return %arg0, %c0_i32, %c0_i32_0 : i32, i32, i32
  }
}

</mosaic_0001>

<llo_original>
// kernel: multi_team_policy_forward.2
$region0: #{multi_team_policy_forward.2}
  #allocation0 [shape = 'u32[]', space=smem, size = 0x4, offset = 0x4, fixed_abs, tag = 'smem constant byte address 0x4 - core index']
  #allocation1 [shape = 'u32[144,128]{1,0:T(1,128)}', space=vmem, size = 0x12000, scoped, tag = 'internal scratch']
  %s0 = inlined_call_operand.vmem [shape: bf16[128,256], index: 0, kind: input, shape index: {}]
  %s1 = inlined_call_operand.vmem [shape: bf16[256,32], index: 1, kind: input, shape index: {}]
  %s2 = inlined_call_operand.vmem [shape: f32[1,32], index: 2, kind: input, shape index: {}]
  %s3 = inlined_call_operand.vmem [shape: bf16[128,32], index: 3, kind: output, shape index: {}]
  %s4 = sld [smem:[#allocation0]]
  $region22: #{multi_team_policy_forward.2} parent=0
    _
  %s6 = ssub.s32 1, %s4
  %s7 = scalar_select 0, %s6, %s4
  // Predicated region
  $region2: #{multi_team_policy_forward.2} parent=0 // pred_check
    _
  $region3: #{multi_team_policy_forward.2} parent=0 // pred_check_branch
    %9 = sbr.rel (0) target = $region5
  $region4: #{multi_team_policy_forward.2} parent=0 // pred_region
    _
  $region5: #{multi_team_policy_forward.2} parent=0 // pred_fallthru
    _
  // Predicated region
  $region6: #{multi_team_policy_forward.2} parent=0 // pred_check
    _
  $region7: #{multi_team_policy_forward.2} parent=0 // pred_check_branch
    %11 = sbr.rel (0) target = $region9
  $region8: #{multi_team_policy_forward.2} parent=0 // pred_region
    _
  $region9: #{multi_team_policy_forward.2} parent=0 // pred_fallthru
    _
  // Predicated region
  $region10: #{multi_team_policy_forward.2} parent=0 // pred_check
    _
  $region11: #{multi_team_policy_forward.2} parent=0 // pred_check_branch
    %13 = sbr.rel (0) target = $region13
  $region12: #{multi_team_policy_forward.2} parent=0 // pred_region
    _
  $region13: #{multi_team_policy_forward.2} parent=0 // pred_fallthru
    _
  %v15 = vld [vmem:[%s0] sm:$0xff]
  %v16 = vld [vmem:[%s0 + $0x8] sm:$0xff]
  %v17 = vld [vmem:[%s0 + $0x10] sm:$0xff]
  %v18 = vld [vmem:[%s0 + $0x18] sm:$0xff]
  %v19 = vld [vmem:[%s0 + $0x20] sm:$0xff]
  %v20 = vld [vmem:[%s0 + $0x28] sm:$0xff]
  %v21 = vld [vmem:[%s0 + $0x30] sm:$0xff]
  %v22 = vld [vmem:[%s0 + $0x38] sm:$0xff]
  %v23 = vld [vmem:[%s0 + $0x40] sm:$0xff]
  %v24 = vld [vmem:[%s0 + $0x48] sm:$0xff]
  %v25 = vld [vmem:[%s0 + $0x50] sm:$0xff]
  %v26 = vld [vmem:[%s0 + $0x58] sm:$0xff]
  %v27 = vld [vmem:[%s0 + $0x60] sm:$0xff]
  %v28 = vld [vmem:[%s0 + $0x68] sm:$0xff]
  %v29 = vld [vmem:[%s0 + $0x70] sm:$0xff]
  %v30 = vld [vmem:[%s0 + $0x78] sm:$0xff]
  %v31 = vld [vmem:[%s1] sm:$0xf]
  %v32 = vld [vmem:[%s1 + $0x4] sm:$0xf]
  %v33 = vld [vmem:[%s1 + $0x8] sm:$0xf]
  %v34 = vld [vmem:[%s1 + $0xc] sm:$0xf]
  %v35 = vld [vmem:[%s1 + $0x10] sm:$0xf]
  %v36 = vld [vmem:[%s1 + $0x14] sm:$0xf]
  %v37 = vld [vmem:[%s1 + $0x18] sm:$0xf]
  %v38 = vld [vmem:[%s1 + $0x1c] sm:$0xf]
  %v39 = vld [vmem:[%s1 + $0x20] sm:$0xf]
  %v40 = vld [vmem:[%s1 + $0x24] sm:$0xf]
  %v41 = vld [vmem:[%s1 + $0x28] sm:$0xf]
  %v42 = vld [vmem:[%s1 + $0x2c] sm:$0xf]
  %v43 = vld [vmem:[%s1 + $0x30] sm:$0xf]
  %v44 = vld [vmem:[%s1 + $0x34] sm:$0xf]
  %v45 = vld [vmem:[%s1 + $0x38] sm:$0xf]
  %v46 = vld [vmem:[%s1 + $0x3c] sm:$0xf]
  %v47 = vld [vmem:[%s1 + $0x40] sm:$0xf]
  %v48 = vld [vmem:[%s1 + $0x44] sm:$0xf]
  %v49 = vld [vmem:[%s1 + $0x48] sm:$0xf]
  %v50 = vld [vmem:[%s1 + $0x4c] sm:$0xf]
  %v51 = vld [vmem:[%s1 + $0x50] sm:$0xf]
  %v52 = vld [vmem:[%s1 + $0x54] sm:$0xf]
  %v53 = vld [vmem:[%s1 + $0x58] sm:$0xf]
  %v54 = vld [vmem:[%s1 + $0x5c] sm:$0xf]
  %v55 = vld [vmem:[%s1 + $0x60] sm:$0xf]
  %v56 = vld [vmem:[%s1 + $0x64] sm:$0xf]
  %v57 = vld [vmem:[%s1 + $0x68] sm:$0xf]
  %v58 = vld [vmem:[%s1 + $0x6c] sm:$0xf]
  %v59 = vld [vmem:[%s1 + $0x70] sm:$0xf]
  %v60 = vld [vmem:[%s1 + $0x74] sm:$0xf]
  %v61 = vld [vmem:[%s1 + $0x78] sm:$0xf]
  %v62 = vld [vmem:[%s1 + $0x7c] sm:$0xf]
  %v63 = vld [vmem:[%s2] sm:$0x1]
  %v65 = vlaneseq
  %v66 = vshrl.u32 %v65, 7
  %v67 = vsub.s32 0, %v66
  %v68 = vrot.slane %v63, %v67
  %v86 = vunpack.c.l.b16 %v15
  %v87 = vunpack.c.h.b16 %v15
  %v88 = vunpack.c.l.b16 %v16
  %v89 = vunpack.c.h.b16 %v16
  %v90 = vunpack.c.l.b16 %v17
  %v91 = vunpack.c.h.b16 %v17
  %v92 = vunpack.c.l.b16 %v18
  %v93 = vunpack.c.h.b16 %v18
  %v94 = vunpack.c.l.b16 %v19
  %v95 = vunpack.c.h.b16 %v19
  %v96 = vunpack.c.l.b16 %v20
  %v97 = vunpack.c.h.b16 %v20
  %v98 = vunpack.c.l.b16 %v21
  %v99 = vunpack.c.h.b16 %v21
  %v100 = vunpack.c.l.b16 %v22
  %v101 = vunpack.c.h.b16 %v22
  %v102 = vunpack.c.l.b16 %v23
  %v103 = vunpack.c.h.b16 %v23
  %v104 = vunpack.c.l.b16 %v24
  %v105 = vunpack.c.h.b16 %v24
  %v106 = vunpack.c.l.b16 %v25
  %v107 = vunpack.c.h.b16 %v25
  %v108 = vunpack.c.l.b16 %v26
  %v109 = vunpack.c.h.b16 %v26
  %v110 = vunpack.c.l.b16 %v27
  %v111 = vunpack.c.h.b16 %v27
  %v112 = vunpack.c.l.b16 %v28
  %v113 = vunpack.c.h.b16 %v28
  %v114 = vunpack.c.l.b16 %v29
  %v115 = vunpack.c.h.b16 %v29
  %v116 = vunpack.c.l.b16 %v30
  %v117 = vunpack.c.h.b16 %v30
  %v118 = vpack.c.b16 %v88, %v86
  %v119 = vpack.c.b16 %v89, %v87
  %v120 = vpack.c.b16 %v92, %v90
  %v121 = vpack.c.b16 %v93, %v91
  %v122 = vpack.c.b16 %v96, %v94
  %v123 = vpack.c.b16 %v97, %v95
  %v124 = vpack.c.b16 %v100, %v98
  %v125 = vpack.c.b16 %v101, %v99
  %v126 = vpack.c.b16 %v104, %v102
  %v127 = vpack.c.b16 %v105, %v103
  %v128 = vpack.c.b16 %v108, %v106
  %v129 = vpack.c.b16 %v109, %v107
  %v130 = vpack.c.b16 %v112, %v110
  %v131 = vpack.c.b16 %v113, %v111
  %v132 = vpack.c.b16 %v116, %v114
  %v133 = vpack.c.b16 %v117, %v115
  %v182 = vunpack.c.l.b16 %v31
  %v183 = vunpack.c.l.b16 %v32
  %v184 = vunpack.c.l.b16 %v33
  %v185 = vunpack.c.l.b16 %v34
  %v186 = vunpack.c.l.b16 %v35
  %v187 = vunpack.c.l.b16 %v36
  %v188 = vunpack.c.l.b16 %v37
  %v189 = vunpack.c.l.b16 %v38
  %v190 = vunpack.c.l.b16 %v39
  %v191 = vunpack.c.l.b16 %v40
  %v192 = vunpack.c.l.b16 %v41
  %v193 = vunpack.c.l.b16 %v42
  %v194 = vunpack.c.l.b16 %v43
  %v195 = vunpack.c.l.b16 %v44
  %v196 = vunpack.c.l.b16 %v45
  %v197 = vunpack.c.l.b16 %v46
  %v198 = vunpack.c.l.b16 %v47
  %v199 = vunpack.c.l.b16 %v48
  %v200 = vunpack.c.l.b16 %v49
  %v201 = vunpack.c.l.b16 %v50
  %v202 = vunpack.c.l.b16 %v51
  %v203 = vunpack.c.l.b16 %v52
  %v204 = vunpack.c.l.b16 %v53
  %v205 = vunpack.c.l.b16 %v54
  %v206 = vunpack.c.l.b16 %v55
  %v207 = vunpack.c.l.b16 %v56
  %v208 = vunpack.c.l.b16 %v57
  %v209 = vunpack.c.l.b16 %v58
  %v210 = vunpack.c.l.b16 %v59
  %v211 = vunpack.c.l.b16 %v60
  %v212 = vunpack.c.l.b16 %v61
  %v213 = vunpack.c.l.b16 %v62
  %v214 = vpack.c.b16 %v183, %v182
  %v215 = vpack.c.b16 %v185, %v184
  %v216 = vpack.c.b16 %v187, %v186
  %v217 = vpack.c.b16 %v189, %v188
  %v218 = vpack.c.b16 %v191, %v190
  %v219 = vpack.c.b16 %v193, %v192
  %v220 = vpack.c.b16 %v195, %v194
  %v221 = vpack.c.b16 %v197, %v196
  %v222 = vpack.c.b16 %v199, %v198
  %v223 = vpack.c.b16 %v201, %v200
  %v224 = vpack.c.b16 %v203, %v202
  %v225 = vpack.c.b16 %v205, %v204
  %v226 = vpack.c.b16 %v207, %v206
  %v227 = vpack.c.b16 %v209, %v208
  %v228 = vpack.c.b16 %v211, %v210
  %v229 = vpack.c.b16 %v213, %v212
  %246 = vmatprep.subr.bf16.mxu0 0
  %247 = vmatpush1.bf16.msra.mxu0 %v221
  %248 = vmatprep.subr.bf16.mxu0 0
  %249 = vmatpush1.bf16.msra.mxu0 %v220
  %250 = vmatprep.subr.bf16.mxu0 0
  %251 = vmatpush1.bf16.msra.mxu0 %v219
  %252 = vmatprep.subr.bf16.mxu0 0
  %253 = vmatpush1.bf16.msra.mxu0 %v218
  %254 = vmatprep.subr.bf16.mxu0 0
  %255 = vmatpush1.bf16.msra.mxu0 %v217
  %256 = vmatprep.subr.bf16.mxu0 0
  %257 = vmatpush1.bf16.msra.mxu0 %v216
  %258 = vmatprep.subr.bf16.mxu0 0
  %259 = vmatpush1.bf16.msra.mxu0 %v215
  %260 = vmatprep.subr.bf16.mxu0 0
  %261 = vmatpush1.bf16.msra.mxu0 %v214
  %262 = vmatprep.subr.bf16.mxu0 0
  %263 = vmatpush2.bf16.msra.mxu0 %v229
  %264 = vmatprep.subr.bf16.mxu0 0
  %265 = vmatpush2.bf16.msra.mxu0 %v228
  %266 = vmatprep.subr.bf16.mxu0 0
  %267 = vmatpush2.bf16.msra.mxu0 %v227
  %268 = vmatprep.subr.bf16.mxu0 0
  %269 = vmatpush2.bf16.msra.mxu0 %v226
  %270 = vmatprep.subr.bf16.mxu0 0
  %271 = vmatpush2.bf16.msra.mxu0 %v225
  %272 = vmatprep.subr.bf16.mxu0 0
  %273 = vmatpush2.bf16.msra.mxu0 %v224
  %274 = vmatprep.subr.bf16.mxu0 0
  %275 = vmatpush2.bf16.msra.mxu0 %v223
  %276 = vmatprep.subr.bf16.mxu0 0
  %277 = vmatpush2.bf16.msra.mxu0 %v222
  %278 = vmatprep.mubr.bf16.mxu0 %v119
  %279 = vmatmul.mubr.bf16.gmra.mxu0 %v118
  %v280 = vpop.f32.mrf.mxu0
  %v281 = vadd.f32 %v68, %v280
  %v282 = vpop.f32.mrf.mxu0
  %v283 = vpop.f32.mrf.mxu0
  %v284 = vadd.f32 %v68, %v283
  %v285 = vpop.f32.mrf.mxu0
  %286 = vmatprep.mubr.bf16.mxu0 %v121
  %287 = vmatmul.mubr.bf16.gmra.mxu0 %v120
  %v288 = vpop.f32.mrf.mxu0
  %v289 = vadd.f32 %v68, %v288
  %v290 = vpop.f32.mrf.mxu0
  %v291 = vpop.f32.mrf.mxu0
  %v292 = vadd.f32 %v68, %v291
  %v293 = vpop.f32.mrf.mxu0
  %294 = vmatprep.mubr.bf16.mxu0 %v123
  %295 = vmatmul.mubr.bf16.gmra.mxu0 %v122
  %v296 = vpop.f32.mrf.mxu0
  %v297 = vadd.f32 %v68, %v296
  %v298 = vpop.f32.mrf.mxu0
  %v299 = vpop.f32.mrf.mxu0
  %v300 = vadd.f32 %v68, %v299
  %v301 = vpop.f32.mrf.mxu0
  %302 = vmatprep.mubr.bf16.mxu0 %v125
  %303 = vmatmul.mubr.bf16.gmra.mxu0 %v124
  %v304 = vpop.f32.mrf.mxu0
  %v305 = vadd.f32 %v68, %v304
  %v306 = vpop.f32.mrf.mxu0
  %v307 = vpop.f32.mrf.mxu0
  %v308 = vadd.f32 %v68, %v307
  %v309 = vpop.f32.mrf.mxu0
  %310 = vmatprep.mubr.bf16.mxu0 %v127
  %311 = vmatmul.mubr.bf16.gmra.mxu0 %v126
  %v312 = vpop.f32.mrf.mxu0
  %v313 = vadd.f32 %v68, %v312
  %v314 = vpop.f32.mrf.mxu0
  %v315 = vpop.f32.mrf.mxu0
  %v316 = vadd.f32 %v68, %v315
  %v317 = vpop.f32.mrf.mxu0
  %318 = vmatprep.mubr.bf16.mxu0 %v129
  %319 = vmatmul.mubr.bf16.gmra.mxu0 %v128
  %v320 = vpop.f32.mrf.mxu0
  %v321 = vadd.f32 %v68, %v320
  %v322 = vpop.f32.mrf.mxu0
  %v323 = vpop.f32.mrf.mxu0
  %v324 = vadd.f32 %v68, %v323
  %v325 = vpop.f32.mrf.mxu0
  %326 = vmatprep.mubr.bf16.mxu0 %v131
  %327 = vmatmul.mubr.bf16.gmra.mxu0 %v130
  %v328 = vpop.f32.mrf.mxu0
  %v329 = vadd.f32 %v68, %v328
  %v330 = vpop.f32.mrf.mxu0
  %v331 = vpop.f32.mrf.mxu0
  %v332 = vadd.f32 %v68, %v331
  %v333 = vpop.f32.mrf.mxu0
  %334 = vmatprep.mubr.bf16.mxu0 %v133
  %335 = vmatmul.mubr.bf16.gmra.mxu0 %v132
  %v336 = vpop.f32.mrf.mxu0
  %v337 = vadd.f32 %v68, %v336
  %v338 = vpop.f32.mrf.mxu0
  %v339 = vpop.f32.mrf.mxu0
  %v340 = vadd.f32 %v68, %v339
  %v341 = vpop.f32.mrf.mxu0
  %342 = vdwg.mxu0
  %v343 = vmax.f32 %v281, 0.0
  %v344 = vmax.f32 %v284, 0.0
  %v345 = vmax.f32 %v289, 0.0
  %v346 = vmax.f32 %v292, 0.0
  %v347 = vmax.f32 %v297, 0.0
  %v348 = vmax.f32 %v300, 0.0
  %v349 = vmax.f32 %v305, 0.0
  %v350 = vmax.f32 %v308, 0.0
  %v351 = vmax.f32 %v313, 0.0
  %v352 = vmax.f32 %v316, 0.0
  %v353 = vmax.f32 %v321, 0.0
  %v354 = vmax.f32 %v324, 0.0
  %v355 = vmax.f32 %v329, 0.0
  %v356 = vmax.f32 %v332, 0.0
  %v357 = vmax.f32 %v337, 0.0
  %v358 = vmax.f32 %v340, 0.0
  %v359 = vpack.c.bf16 %v344, %v343
  %v360 = vpack.c.bf16 %v346, %v345
  %v361 = vpack.c.bf16 %v348, %v347
  %v362 = vpack.c.bf16 %v350, %v349
  %v363 = vpack.c.bf16 %v352, %v351
  %v364 = vpack.c.bf16 %v354, %v353
  %v365 = vpack.c.bf16 %v356, %v355
  %v366 = vpack.c.bf16 %v358, %v357
  %v375 = vunpack.c.l.b16 %v359
  %v376 = vunpack.c.h.b16 %v359
  %v377 = vunpack.c.l.b16 %v360
  %v378 = vunpack.c.h.b16 %v360
  %v379 = vunpack.c.l.b16 %v361
  %v380 = vunpack.c.h.b16 %v361
  %v381 = vunpack.c.l.b16 %v362
  %v382 = vunpack.c.h.b16 %v362
  %v383 = vunpack.c.l.b16 %v363
  %v384 = vunpack.c.h.b16 %v363
  %v385 = vunpack.c.l.b16 %v364
  %v386 = vunpack.c.h.b16 %v364
  %v387 = vunpack.c.l.b16 %v365
  %v388 = vunpack.c.h.b16 %v365
  %v389 = vunpack.c.l.b16 %v366
  %v390 = vunpack.c.h.b16 %v366
  %v391 = vpack.c.b16 %v375, %v375
  %v392 = vpack.c.b16 %v376, %v376
  %v393 = vpack.c.b16 %v377, %v377
  %v394 = vpack.c.b16 %v378, %v378
  %v395 = vpack.c.b16 %v379, %v379
  %v396 = vpack.c.b16 %v380, %v380
  %v397 = vpack.c.b16 %v381, %v381
  %v398 = vpack.c.b16 %v382, %v382
  %v399 = vpack.c.b16 %v383, %v383
  %v400 = vpack.c.b16 %v384, %v384
  %v401 = vpack.c.b16 %v385, %v385
  %v402 = vpack.c.b16 %v386, %v386
  %v403 = vpack.c.b16 %v387, %v387
  %v404 = vpack.c.b16 %v388, %v388
  %v405 = vpack.c.b16 %v389, %v389
  %v406 = vpack.c.b16 %v390, %v390
  %vm423 = vcmask 257024
  %424 = vst.msk [vmem:[%s3] sm:$0xf] %vm423, %v391
  %425 = vst.msk [vmem:[%s3 + $0x4] sm:$0xf] %vm423, %v392
  %426 = vst.msk [vmem:[%s3 + $0x8] sm:$0xf] %vm423, %v393
  %427 = vst.msk [vmem:[%s3 + $0xc] sm:$0xf] %vm423, %v394
  %428 = vst.msk [vmem:[%s3 + $0x10] sm:$0xf] %vm423, %v395
  %429 = vst.msk [vmem:[%s3 + $0x14] sm:$0xf] %vm423, %v396
  %430 = vst.msk [vmem:[%s3 + $0x18] sm:$0xf] %vm423, %v397
  %431 = vst.msk [vmem:[%s3 + $0x1c] sm:$0xf] %vm423, %v398
  %432 = vst.msk [vmem:[%s3 + $0x20] sm:$0xf] %vm423, %v399
  %433 = vst.msk [vmem:[%s3 + $0x24] sm:$0xf] %vm423, %v400
  %434 = vst.msk [vmem:[%s3 + $0x28] sm:$0xf] %vm423, %v401
  %435 = vst.msk [vmem:[%s3 + $0x2c] sm:$0xf] %vm423, %v402
  %436 = vst.msk [vmem:[%s3 + $0x30] sm:$0xf] %vm423, %v403
  %437 = vst.msk [vmem:[%s3 + $0x34] sm:$0xf] %vm423, %v404
  %438 = vst.msk [vmem:[%s3 + $0x38] sm:$0xf] %vm423, %v405
  %439 = vst.msk [vmem:[%s3 + $0x3c] sm:$0xf] %vm423, %v406
  // Predicated region
  $region14: #{multi_team_policy_forward.2} parent=0 // pred_check
    _
  $region15: #{multi_team_policy_forward.2} parent=0 // pred_check_branch
    %441 = sbr.rel (0) target = $region17
  $region16: #{multi_team_policy_forward.2} parent=0 // pred_region
    _
  $region17: #{multi_team_policy_forward.2} parent=0 // pred_fallthru
    _
  // Predicated region
  $region18: #{multi_team_policy_forward.2} parent=0 // pred_check
    _
  $region19: #{multi_team_policy_forward.2} parent=0 // pred_check_branch
    %443 = sbr.rel (0) target = $region21
  $region20: #{multi_team_policy_forward.2} parent=0 // pred_region
    _
  $region21: #{multi_team_policy_forward.2} parent=0 // pred_fallthru
    _

// kernel: multi_team_policy_forward.3
$region0: #{multi_team_policy_forward.3}
  #allocation0 [shape = 'u32[]', space=smem, size = 0x4, offset = 0x4, fixed_abs, tag = 'smem constant byte address 0x4 - core index']
  #allocation1 [shape = 'u32[144,128]{1,0:T(1,128)}', space=vmem, size = 0x12000, scoped, tag = 'internal scratch']
  %s0 = inlined_call_operand.vmem [shape: bf16[1,2,4608], index: 0, kind: input, shape index: {}]
  %s1 = inlined_call_operand.vmem [shape: bf16[512,64], index: 1, kind: input, shape index: {}]
  %s2 = inlined_call_operand.vmem [shape: f32[1,64], index: 2, kind: input, shape index: {}]
  %s3 = inlined_call_operand.vmem [shape: bf16[9,64,64], index: 3, kind: input, shape index: {}]
  %s4 = inlined_call_operand.vmem [shape: f32[1,64], index: 4, kind: input, shape index: {}]
  %s5 = inlined_call_operand.vmem [shape: bf16[64,512], index: 5, kind: input, shape index: {}]
  %s6 = inlined_call_operand.vmem [shape: f32[1,512], index: 6, kind: input, shape index: {}]
  %s7 = inlined_call_operand.vmem [shape: bf16[512,128], index: 7, kind: input, shape index: {}]
  %s8 = inlined_call_operand.vmem [shape: f32[1,128], index: 8, kind: input, shape index: {}]
  %s9 = inlined_call_operand.vmem [shape: f32[1,2,128], index: 9, kind: output, shape index: {}]
  %s10 = sld [smem:[#allocation0]]
  $region46: #{multi_team_policy_forward.3} parent=0
    _
  %s12 = ssub.s32 1, %s10
  %s13 = scalar_select 0, %s12, %s10
  // Predicated region
  $region2: #{multi_team_policy_forward.3} parent=0 // pred_check
    _
  $region3: #{multi_team_policy_forward.3} parent=0 // pred_check_branch
    %15 = sbr.rel (0) target = $region5
  $region4: #{multi_team_policy_forward.3} parent=0 // pred_region
    _
  $region5: #{multi_team_policy_forward.3} parent=0 // pred_fallthru
    _
  // Predicated region
  $region6: #{multi_team_policy_forward.3} parent=0 // pred_check
    _
  $region7: #{multi_team_policy_forward.3} parent=0 // pred_check_branch
    %17 = sbr.rel (0) target = $region9
  $region8: #{multi_team_policy_forward.3} parent=0 // pred_region
    _
  $region9: #{multi_team_policy_forward.3} parent=0 // pred_fallthru
    _
  // Predicated region
  $region10: #{multi_team_policy_forward.3} parent=0 // pred_check
    _
  $region11: #{multi_team_policy_forward.3} parent=0 // pred_check_branch
    %19 = sbr.rel (0) target = $region13
  $region12: #{multi_team_policy_forward.3} parent=0 // pred_region
    _
  $region13: #{multi_team_policy_forward.3} parent=0 // pred_fallthru
    _
  // Predicated region
  $region14: #{multi_team_policy_forward.3} parent=0 // pred_check
    _
  $region15: #{multi_team_policy_forward.3} parent=0 // pred_check_branch
    %21 = sbr.rel (0) target = $region17
  $region16: #{multi_team_policy_forward.3} parent=0 // pred_region
    _
  $region17: #{multi_team_policy_forward.3} parent=0 // pred_fallthru
    _
  // Predicated region
  $region18: #{multi_team_policy_forward.3} parent=0 // pred_check
    _
  $region19: #{multi_team_policy_forward.3} parent=0 // pred_check_branch
    %23 = sbr.rel (0) target = $region21
  $region20: #{multi_team_policy_forward.3} parent=0 // pred_region
    _
  $region21: #{multi_team_policy_forward.3} parent=0 // pred_fallthru
    _
  // Predicated region
  $region22: #{multi_team_policy_forward.3} parent=0 // pred_check
    _
  $region23: #{multi_team_policy_forward.3} parent=0 // pred_check_branch
    %25 = sbr.rel (0) target = $region25
  $region24: #{multi_team_policy_forward.3} parent=0 // pred_region
    _
  $region25: #{multi_team_policy_forward.3} parent=0 // pred_fallthru
    _
  // Predicated region
  $region26: #{multi_team_policy_forward.3} parent=0 // pred_check
    _
  $region27: #{multi_team_policy_forward.3} parent=0 // pred_check_branch
    %27 = sbr.rel (0) target = $region29
  $region28: #{multi_team_policy_forward.3} parent=0 // pred_region
    _
  $region29: #{multi_team_policy_forward.3} parent=0 // pred_fallthru
    _
  // Predicated region
  $region30: #{multi_team_policy_forward.3} parent=0 // pred_check
    _
  $region31: #{multi_team_policy_forward.3} parent=0 // pred_check_branch
    %29 = sbr.rel (0) target = $region33
  $region32: #{multi_team_policy_forward.3} parent=0 // pred_region
    _
  $region33: #{multi_team_policy_forward.3} parent=0 // pred_fallthru
    _
  // Predicated region
  $region34: #{multi_team_policy_forward.3} parent=0 // pred_check
    _
  $region35: #{multi_team_policy_forward.3} parent=0 // pred_check_branch
    %31 = sbr.rel (0) target = $region37
  $region36: #{multi_team_policy_forward.3} parent=0 // pred_region
    _
  $region37: #{multi_team_policy_forward.3} parent=0 // pred_fallthru
    _
  %v33 = vld [vmem:[%s1] sm:$0xf]
  %v34 = vld [vmem:[%s1 + $0x4] sm:$0xf]
  %v35 = vld [vmem:[%s1 + $0x8] sm:$0xf]
  %v36 = vld [vmem:[%s1 + $0xc] sm:$0xf]
  %v37 = vld [vmem:[%s1 + $0x10] sm:$0xf]
  %v38 = vld [vmem:[%s1 + $0x14] sm:$0xf]
  %v39 = vld [vmem:[%s1 + $0x18] sm:$0xf]
  %v40 = vld [vmem:[%s1 + $0x1c] sm:$0xf]
  %v41 = vld [vmem:[%s1 + $0x20] sm:$0xf]
  %v42 = vld [vmem:[%s1 + $0x24] sm:$0xf]
  %v43 = vld [vmem:[%s1 + $0x28] sm:$0xf]
  %v44 = vld [vmem:[%s1 + $0x2c] sm:$0xf]
  %v45 = vld [vmem:[%s1 + $0x30] sm:$0xf]
  %v46 = vld [vmem:[%s1 + $0x34] sm:$0xf]
  %v47 = vld [vmem:[%s1 + $0x38] sm:$0xf]
  %v48 = vld [vmem:[%s1 + $0x3c] sm:$0xf]
  %v49 = vld [vmem:[%s1 + $0x40] sm:$0xf]
  %v50 = vld [vmem:[%s1 + $0x44] sm:$0xf]
  %v51 = vld [vmem:[%s1 + $0x48] sm:$0xf]
  %v52 = vld [vmem:[%s1 + $0x4c] sm:$0xf]
  %v53 = vld [vmem:[%s1 + $0x50] sm:$0xf]
  %v54 = vld [vmem:[%s1 + $0x54] sm:$0xf]
  %v55 = vld [vmem:[%s1 + $0x58] sm:$0xf]
  %v56 = vld [vmem:[%s1 + $0x5c] sm:$0xf]
  %v57 = vld [vmem:[%s1 + $0x60] sm:$0xf]
  %v58 = vld [vmem:[%s1 + $0x64] sm:$0xf]
  %v59 = vld [vmem:[%s1 + $0x68] sm:$0xf]
  %v60 = vld [vmem:[%s1 + $0x6c] sm:$0xf]
  %v61 = vld [vmem:[%s1 + $0x70] sm:$0xf]
  %v62 = vld [vmem:[%s1 + $0x74] sm:$0xf]
  %v63 = vld [vmem:[%s1 + $0x78] sm:$0xf]
  %v64 = vld [vmem:[%s1 + $0x7c] sm:$0xf]
  %v65 = vld [vmem:[%s1 + $0x80] sm:$0xf]
  %v66 = vld [vmem:[%s1 + $0x84] sm:$0xf]
  %v67 = vld [vmem:[%s1 + $0x88] sm:$0xf]
  %v68 = vld [vmem:[%s1 + $0x8c] sm:$0xf]
  %v69 = vld [vmem:[%s1 + $0x90] sm:$0xf]
  %v70 = vld [vmem:[%s1 + $0x94] sm:$0xf]
  %v71 = vld [vmem:[%s1 + $0x98] sm:$0xf]
  %v72 = vld [vmem:[%s1 + $0x9c] sm:$0xf]
  %v73 = vld [vmem:[%s1 + $0xa0] sm:$0xf]
  %v74 = vld [vmem:[%s1 + $0xa4] sm:$0xf]
  %v75 = vld [vmem:[%s1 + $0xa8] sm:$0xf]
  %v76 = vld [vmem:[%s1 + $0xac] sm:$0xf]
  %v77 = vld [vmem:[%s1 + $0xb0] sm:$0xf]
  %v78 = vld [vmem:[%s1 + $0xb4] sm:$0xf]
  %v79 = vld [vmem:[%s1 + $0xb8] sm:$0xf]
  %v80 = vld [vmem:[%s1 + $0xbc] sm:$0xf]
  %v81 = vld [vmem:[%s1 + $0xc0] sm:$0xf]
  %v82 = vld [vmem:[%s1 + $0xc4] sm:$0xf]
  %v83 = vld [vmem:[%s1 + $0xc8] sm:$0xf]
  %v84 = vld [vmem:[%s1 + $0xcc] sm:$0xf]
  %v85 = vld [vmem:[%s1 + $0xd0] sm:$0xf]
  %v86 = vld [vmem:[%s1 + $0xd4] sm:$0xf]
  %v87 = vld [vmem:[%s1 + $0xd8] sm:$0xf]
  %v88 = vld [vmem:[%s1 + $0xdc] sm:$0xf]
  %v89 = vld [vmem:[%s1 + $0xe0] sm:$0xf]
  %v90 = vld [vmem:[%s1 + $0xe4] sm:$0xf]
  %v91 = vld [vmem:[%s1 + $0xe8] sm:$0xf]
  %v92 = vld [vmem:[%s1 + $0xec] sm:$0xf]
  %v93 = vld [vmem:[%s1 + $0xf0] sm:$0xf]
  %v94 = vld [vmem:[%s1 + $0xf4] sm:$0xf]
  %v95 = vld [vmem:[%s1 + $0xf8] sm:$0xf]
  %v96 = vld [vmem:[%s1 + $0xfc] sm:$0xf]
  %v97 = vld [vmem:[%s2] sm:$0x1]
  %v98 = vld [vmem:[%s0] sm:$0xf]
  %v100 = vlaneseq
  %v101 = vshrl.u32 %v100, 7
  %v102 = vsub.s32 0, %v101
  %v103 = vrot.slane %v97, %v102
  %v107 = vunpack.c.l.s4 1966171168
  %v108 = vunpack.c.0.s8 %v107
  %v109 = vlaneseq
  %v110 = vshrl.u32 %v109, 7
  %v111 = vsub.s32 %v108, %v110
  %v112 = vrot.slane %v98, %v111
  %v113 = vcombine.high %v112, %v112
  %v115 = vunpack.c.l.s4 1966171168
  %v116 = vunpack.c.0.s8 %v115
  %v117 = vlaneseq
  %v118 = vshrl.u32 %v117, 7
  %v119 = vsub.s32 %v116, %v118
  %v120 = vrot.slane %v112, %v119
  %v122 = vunpack.c.l.s4 1966171168
  %v123 = vunpack.c.0.s8 %v122
  %v124 = vlaneseq
  %v125 = vshrl.u32 %v124, 7
  %v126 = vsub.s32 %v123, %v125
  %v127 = vrot.slane %v113, %v126
  %v128 = vcombine.high %v120, %v120
  %v129 = vcombine.high %v127, %v127
  %v198 = vunpack.c.l.b16 %v33
  %v199 = vunpack.c.l.b16 %v34
  %v200 = vunpack.c.l.b16 %v35
  %v201 = vunpack.c.l.b16 %v36
  %v202 = vunpack.c.l.b16 %v37
  %v203 = vunpack.c.l.b16 %v38
  %v204 = vunpack.c.l.b16 %v39
  %v205 = vunpack.c.l.b16 %v40
  %v206 = vunpack.c.l.b16 %v41
  %v207 = vunpack.c.l.b16 %v42
  %v208 = vunpack.c.l.b16 %v43
  %v209 = vunpack.c.l.b16 %v44
  %v210 = vunpack.c.l.b16 %v45
  %v211 = vunpack.c.l.b16 %v46
  %v212 = vunpack.c.l.b16 %v47
  %v213 = vunpack.c.l.b16 %v48
  %v214 = vunpack.c.l.b16 %v49
  %v215 = vunpack.c.l.b16 %v50
  %v216 = vunpack.c.l.b16 %v51
  %v217 = vunpack.c.l.b16 %v52
  %v218 = vunpack.c.l.b16 %v53
  %v219 = vunpack.c.l.b16 %v54
  %v220 = vunpack.c.l.b16 %v55
  %v221 = vunpack.c.l.b16 %v56
  %v222 = vunpack.c.l.b16 %v57
  %v223 = vunpack.c.l.b16 %v58
  %v224 = vunpack.c.l.b16 %v59
  %v225 = vunpack.c.l.b16 %v60
  %v226 = vunpack.c.l.b16 %v61
  %v227 = vunpack.c.l.b16 %v62
  %v228 = vunpack.c.l.b16 %v63
  %v229 = vunpack.c.l.b16 %v64
  %v230 = vunpack.c.l.b16 %v65
  %v231 = vunpack.c.l.b16 %v66
  %v232 = vunpack.c.l.b16 %v67
  %v233 = vunpack.c.l.b16 %v68
  %v234 = vunpack.c.l.b16 %v69
  %v235 = vunpack.c.l.b16 %v70
  %v236 = vunpack.c.l.b16 %v71
  %v237 = vunpack.c.l.b16 %v72
  %v238 = vunpack.c.l.b16 %v73
  %v239 = vunpack.c.l.b16 %v74
  %v240 = vunpack.c.l.b16 %v75
  %v241 = vunpack.c.l.b16 %v76
  %v242 = vunpack.c.l.b16 %v77
  %v243 = vunpack.c.l.b16 %v78
  %v244 = vunpack.c.l.b16 %v79
  %v245 = vunpack.c.l.b16 %v80
  %v246 = vunpack.c.l.b16 %v81
  %v247 = vunpack.c.l.b16 %v82
  %v248 = vunpack.c.l.b16 %v83
  %v249 = vunpack.c.l.b16 %v84
  %v250 = vunpack.c.l.b16 %v85
  %v251 = vunpack.c.l.b16 %v86
  %v252 = vunpack.c.l.b16 %v87
  %v253 = vunpack.c.l.b16 %v88
  %v254 = vunpack.c.l.b16 %v89
  %v255 = vunpack.c.l.b16 %v90
  %v256 = vunpack.c.l.b16 %v91
  %v257 = vunpack.c.l.b16 %v92
  %v258 = vunpack.c.l.b16 %v93
  %v259 = vunpack.c.l.b16 %v94
  %v260 = vunpack.c.l.b16 %v95
  %v261 = vunpack.c.l.b16 %v96
  %v262 = vpack.c.b16 %v199, %v198
  %v263 = vpack.c.b16 %v201, %v200
  %v264 = vpack.c.b16 %v203, %v202
  %v265 = vpack.c.b16 %v205, %v204
  %v266 = vpack.c.b16 %v207, %v206
  %v267 = vpack.c.b16 %v209, %v208
  %v268 = vpack.c.b16 %v211, %v210
  %v269 = vpack.c.b16 %v213, %v212
  %v270 = vpack.c.b16 %v215, %v214
  %v271 = vpack.c.b16 %v217, %v216
  %v272 = vpack.c.b16 %v219, %v218
  %v273 = vpack.c.b16 %v221, %v220
  %v274 = vpack.c.b16 %v223, %v222
  %v275 = vpack.c.b16 %v225, %v224
  %v276 = vpack.c.b16 %v227, %v226
  %v277 = vpack.c.b16 %v229, %v228
  %v278 = vpack.c.b16 %v231, %v230
  %v279 = vpack.c.b16 %v233, %v232
  %v280 = vpack.c.b16 %v235, %v234
  %v281 = vpack.c.b16 %v237, %v236
  %v282 = vpack.c.b16 %v239, %v238
  %v283 = vpack.c.b16 %v241, %v240
  %v284 = vpack.c.b16 %v243, %v242
  %v285 = vpack.c.b16 %v245, %v244
  %v286 = vpack.c.b16 %v247, %v246
  %v287 = vpack.c.b16 %v249, %v248
  %v288 = vpack.c.b16 %v251, %v250
  %v289 = vpack.c.b16 %v253, %v252
  %v290 = vpack.c.b16 %v255, %v254
  %v291 = vpack.c.b16 %v257, %v256
  %v292 = vpack.c.b16 %v259, %v258
  %v293 = vpack.c.b16 %v261, %v260
  %326 = vmatprep.subr.bf16.mxu0 0
  %327 = vmatpush1.bf16.msra.mxu0 %v269
  %328 = vmatprep.subr.bf16.mxu0 0
  %329 = vmatpush1.bf16.msra.mxu0 %v268
  %330 = vmatprep.subr.bf16.mxu0 0
  %331 = vmatpush1.bf16.msra.mxu0 %v267
  %332 = vmatprep.subr.bf16.mxu0 0
  %333 = vmatpush1.bf16.msra.mxu0 %v266
  %334 = vmatprep.subr.bf16.mxu0 0
  %335 = vmatpush1.bf16.msra.mxu0 %v265
  %336 = vmatprep.subr.bf16.mxu0 0
  %337 = vmatpush1.bf16.msra.mxu0 %v264
  %338 = vmatprep.subr.bf16.mxu0 0
  %339 = vmatpush1.bf16.msra.mxu0 %v263
  %340 = vmatprep.subr.bf16.mxu0 0
  %341 = vmatpush1.bf16.msra.mxu0 %v262
  %342 = vmatprep.subr.bf16.mxu0 0
  %343 = vmatpush2.bf16.msra.mxu0 %v277
  %344 = vmatprep.subr.bf16.mxu0 0
  %345 = vmatpush2.bf16.msra.mxu0 %v276
  %346 = vmatprep.subr.bf16.mxu0 0
  %347 = vmatpush2.bf16.msra.mxu0 %v275
  %348 = vmatprep.subr.bf16.mxu0 0
  %349 = vmatpush2.bf16.msra.mxu0 %v274
  %350 = vmatprep.subr.bf16.mxu0 0
  %351 = vmatpush2.bf16.msra.mxu0 %v273
  %352 = vmatprep.subr.bf16.mxu0 0
  %353 = vmatpush2.bf16.msra.mxu0 %v272
  %354 = vmatprep.subr.bf16.mxu0 0
  %355 = vmatpush2.bf16.msra.mxu0 %v271
  %356 = vmatprep.subr.bf16.mxu0 0
  %357 = vmatpush2.bf16.msra.mxu0 %v270
  %358 = vmatprep.mubr.bf16.mxu0 %v127
  %359 = vmatmul.mubr.bf16.gmra.mxu0 %v120
  %v360 = vpop.f32.mrf.mxu0
  %v361 = vadd.f32 %v103, %v360
  %v362 = vpop.f32.mrf.mxu0
  %v363 = vpop.f32.mrf.mxu0
  %v364 = vpop.f32.mrf.mxu0
  %365 = vdwg.mxu0
  %366 = vmatprep.subr.bf16.mxu0 0
  %367 = vmatpush1.bf16.msra.mxu0 %v285
  %368 = vmatprep.subr.bf16.mxu0 0
  %369 = vmatpush1.bf16.msra.mxu0 %v284
  %370 = vmatprep.subr.bf16.mxu0 0
  %371 = vmatpush1.bf16.msra.mxu0 %v283
  %372 = vmatprep.subr.bf16.mxu0 0
  %373 = vmatpush1.bf16.msra.mxu0 %v282
  %374 = vmatprep.subr.bf16.mxu0 0
  %375 = vmatpush1.bf16.msra.mxu0 %v281
  %376 = vmatprep.subr.bf16.mxu0 0
  %377 = vmatpush1.bf16.msra.mxu0 %v280
  %378 = vmatprep.subr.bf16.mxu0 0
  %379 = vmatpush1.bf16.msra.mxu0 %v279
  %380 = vmatprep.subr.bf16.mxu0 0
  %381 = vmatpush1.bf16.msra.mxu0 %v278
  %382 = vmatprep.subr.bf16.mxu0 0
  %383 = vmatpush2.bf16.msra.mxu0 %v293
  %384 = vmatprep.subr.bf16.mxu0 0
  %385 = vmatpush2.bf16.msra.mxu0 %v292
  %386 = vmatprep.subr.bf16.mxu0 0
  %387 = vmatpush2.bf16.msra.mxu0 %v291
  %388 = vmatprep.subr.bf16.mxu0 0
  %389 = vmatpush2.bf16.msra.mxu0 %v290
  %390 = vmatprep.subr.bf16.mxu0 0
  %391 = vmatpush2.bf16.msra.mxu0 %v289
  %392 = vmatprep.subr.bf16.mxu0 0
  %393 = vmatpush2.bf16.msra.mxu0 %v288
  %394 = vmatprep.subr.bf16.mxu0 0
  %395 = vmatpush2.bf16.msra.mxu0 %v287
  %396 = vmatprep.subr.bf16.mxu0 0
  %397 = vmatpush2.bf16.msra.mxu0 %v286
  %398 = vmatprep.mubr.bf16.mxu0 %v129
  %399 = vmatmul.mubr.bf16.gmra.mxu0 %v128
  %v400 = vpop.f32.mrf.mxu0
  %v401 = vadd.f32 %v361, %v400
  %v402 = vpop.f32.mrf.mxu0
  %v403 = vpop.f32.mrf.mxu0
  %v404 = vpop.f32.mrf.mxu0
  %405 = vdwg.mxu0
  %v406 = vmax.f32 %v401, 0.0
  %v407 = vpack.c.bf16 %v406, %v406
  %v408 = vld [vmem:[%s3] sm:$0xf]
  %v409 = vld [vmem:[%s3 + $0x4] sm:$0xf]
  %v410 = vld [vmem:[%s3 + $0x8] sm:$0xf]
  %v411 = vld [vmem:[%s3 + $0xc] sm:$0xf]
  %v412 = vld [vmem:[%s3 + $0x10] sm:$0xf]
  %v413 = vld [vmem:[%s3 + $0x14] sm:$0xf]
  %v414 = vld [vmem:[%s3 + $0x18] sm:$0xf]
  %v415 = vld [vmem:[%s3 + $0x1c] sm:$0xf]
  %v416 = vld [vmem:[%s0 + $0x4] sm:$0xf]
  %v419 = vunpack.c.l.s4 1966171168
  %v420 = vunpack.c.0.s8 %v419
  %v421 = vlaneseq
  %v422 = vshrl.u32 %v421, 7
  %v423 = vsub.s32 %v420, %v422
  %v424 = vrot.slane %v416, %v423
  %v425 = vcombine.high %v424, %v424
  %v427 = vunpack.c.l.s4 1966171168
  %v428 = vunpack.c.0.s8 %v427
  %v429 = vlaneseq
  %v430 = vshrl.u32 %v429, 7
  %v431 = vsub.s32 %v428, %v430
  %v432 = vrot.slane %v424, %v431
  %v434 = vunpack.c.l.s4 1966171168
  %v435 = vunpack.c.0.s8 %v434
  %v436 = vlaneseq
  %v437 = vshrl.u32 %v436, 7
  %v438 = vsub.s32 %v435, %v437
  %v439 = vrot.slane %v425, %v438
  %v440 = vcombine.high %v432, %v432
  %v441 = vcombine.high %v439, %v439
  %446 = vmatprep.subr.bf16.mxu0 0
  %447 = vmatpush1.bf16.msra.mxu0 %v269
  %448 = vmatprep.subr.bf16.mxu0 0
  %449 = vmatpush1.bf16.msra.mxu0 %v268
  %450 = vmatprep.subr.bf16.mxu0 0
  %451 = vmatpush1.bf16.msra.mxu0 %v267
  %452 = vmatprep.subr.bf16.mxu0 0
  %453 = vmatpush1.bf16.msra.mxu0 %v266
  %454 = vmatprep.subr.bf16.mxu0 0
  %455 = vmatpush1.bf16.msra.mxu0 %v265
  %456 = vmatprep.subr.bf16.mxu0 0
  %457 = vmatpush1.bf16.msra.mxu0 %v264
  %458 = vmatprep.subr.bf16.mxu0 0
  %459 = vmatpush1.bf16.msra.mxu0 %v263
  %460 = vmatprep.subr.bf16.mxu0 0
  %461 = vmatpush1.bf16.msra.mxu0 %v262
  %462 = vmatprep.subr.bf16.mxu0 0
  %463 = vmatpush2.bf16.msra.mxu0 %v277
  %464 = vmatprep.subr.bf16.mxu0 0
  %465 = vmatpush2.bf16.msra.mxu0 %v276
  %466 = vmatprep.subr.bf16.mxu0 0
  %467 = vmatpush2.bf16.msra.mxu0 %v275
  %468 = vmatprep.subr.bf16.mxu0 0
  %469 = vmatpush2.bf16.msra.mxu0 %v274
  %470 = vmatprep.subr.bf16.mxu0 0
  %471 = vmatpush2.bf16.msra.mxu0 %v273
  %472 = vmatprep.subr.bf16.mxu0 0
  %473 = vmatpush2.bf16.msra.mxu0 %v272
  %474 = vmatprep.subr.bf16.mxu0 0
  %475 = vmatpush2.bf16.msra.mxu0 %v271
  %476 = vmatprep.subr.bf16.mxu0 0
  %477 = vmatpush2.bf16.msra.mxu0 %v270
  %478 = vmatprep.mubr.bf16.mxu0 %v439
  %479 = vmatmul.mubr.bf16.gmra.mxu0 %v432
  %v480 = vpop.f32.mrf.mxu0
  %v481 = vadd.f32 %v103, %v480
  %v482 = vpop.f32.mrf.mxu0
  %v483 = vpop.f32.mrf.mxu0
  %v484 = vpop.f32.mrf.mxu0
  %485 = vdwg.mxu0
  %486 = vmatprep.subr.bf16.mxu0 0
  %487 = vmatpush1.bf16.msra.mxu0 %v285
  %488 = vmatprep.subr.bf16.mxu0 0
  %489 = vmatpush1.bf16.msra.mxu0 %v284
  %490 = vmatprep.subr.bf16.mxu0 0
  %491 = vmatpush1.bf16.msra.mxu0 %v283
  %492 = vmatprep.subr.bf16.mxu0 0
  %493 = vmatpush1.bf16.msra.mxu0 %v282
  %494 = vmatprep.subr.bf16.mxu0 0
  %495 = vmatpush1.bf16.msra.mxu0 %v281
  %496 = vmatprep.subr.bf16.mxu0 0
  %497 = vmatpush1.bf16.msra.mxu0 %v280
  %498 = vmatprep.subr.bf16.mxu0 0
  %499 = vmatpush1.bf16.msra.mxu0 %v279
  %500 = vmatprep.subr.bf16.mxu0 0
  %501 = vmatpush1.bf16.msra.mxu0 %v278
  %502 = vmatprep.subr.bf16.mxu0 0
  %503 = vmatpush2.bf16.msra.mxu0 %v293
  %504 = vmatprep.subr.bf16.mxu0 0
  %505 = vmatpush2.bf16.msra.mxu0 %v292
  %506 = vmatprep.subr.bf16.mxu0 0
  %507 = vmatpush2.bf16.msra.mxu0 %v291
  %508 = vmatprep.subr.bf16.mxu0 0
  %509 = vmatpush2.bf16.msra.mxu0 %v290
  %510 = vmatprep.subr.bf16.mxu0 0
  %511 = vmatpush2.bf16.msra.mxu0 %v289
  %512 = vmatprep.subr.bf16.mxu0 0
  %513 = vmatpush2.bf16.msra.mxu0 %v288
  %514 = vmatprep.subr.bf16.mxu0 0
  %515 = vmatpush2.bf16.msra.mxu0 %v287
  %516 = vmatprep.subr.bf16.mxu0 0
  %517 = vmatpush2.bf16.msra.mxu0 %v286
  %518 = vmatprep.mubr.bf16.mxu0 %v441
  %519 = vmatmul.mubr.bf16.gmra.mxu0 %v440
  %v520 = vpop.f32.mrf.mxu0
  %v521 = vadd.f32 %v481, %v520
  %v522 = vpop.f32.mrf.mxu0
  %v523 = vpop.f32.mrf.mxu0
  %v524 = vpop.f32.mrf.mxu0
  %525 = vdwg.mxu0
  %v526 = vmax.f32 %v521, 0.0
  %v527 = vpack.c.bf16 %v526, %v526
  %s528 = scalar_lea.vmem %s3, 32
  %v529 = vld [vmem:[%s528] sm:$0xf]
  %v530 = vld [vmem:[%s528 + $0x4] sm:$0xf]
  %v531 = vld [vmem:[%s528 + $0x8] sm:$0xf]
  %v532 = vld [vmem:[%s528 + $0xc] sm:$0xf]
  %v533 = vld [vmem:[%s528 + $0x10] sm:$0xf]
  %v534 = vld [vmem:[%s528 + $0x14] sm:$0xf]
  %v535 = vld [vmem:[%s528 + $0x18] sm:$0xf]
  %v536 = vld [vmem:[%s528 + $0x1c] sm:$0xf]
  %v545 = vunpack.c.l.b16 %v529
  %v546 = vunpack.c.l.b16 %v530
  %v547 = vunpack.c.l.b16 %v531
  %v548 = vunpack.c.l.b16 %v532
  %v549 = vunpack.c.l.b16 %v533
  %v550 = vunpack.c.l.b16 %v534
  %v551 = vunpack.c.l.b16 %v535
  %v552 = vunpack.c.l.b16 %v536
  %v553 = vpack.c.b16 %v546, %v545
  %v554 = vpack.c.b16 %v548, %v547
  %v555 = vpack.c.b16 %v550, %v549
  %v556 = vpack.c.b16 %v552, %v551
  %vm561 = vcmask 523264
  %v563 = vsel %vm561, %v527, 0
  %565 = vmatprep.subr.bf16.mxu0 0
  %566 = vmatpush1.bf16.msra.mxu0 0
  %567 = vmatprep.subr.bf16.mxu0 0
  %568 = vmatpush1.bf16.msra.mxu0 0
  %569 = vmatprep.subr.bf16.mxu0 0
  %570 = vmatpush1.bf16.msra.mxu0 0
  %571 = vmatprep.subr.bf16.mxu0 0
  %572 = vmatpush1.bf16.msra.mxu0 0
  %573 = vmatprep.subr.bf16.mxu0 0
  %574 = vmatpush1.bf16.msra.mxu0 %v556
  %575 = vmatprep.subr.bf16.mxu0 0
  %576 = vmatpush1.bf16.msra.mxu0 %v555
  %577 = vmatprep.subr.bf16.mxu0 0
  %578 = vmatpush1.bf16.msra.mxu0 %v554
  %579 = vmatprep.subr.bf16.mxu0 0
  %580 = vmatpush1.bf16.msra.mxu0 %v553
  %581 = vmatprep.subr.bf16.mxu0 0
  %582 = vmatpush2.bf16.msra.mxu0 0
  %583 = vmatprep.subr.bf16.mxu0 0
  %584 = vmatpush2.bf16.msra.mxu0 0
  %585 = vmatprep.subr.bf16.mxu0 0
  %586 = vmatpush2.bf16.msra.mxu0 0
  %587 = vmatprep.subr.bf16.mxu0 0
  %588 = vmatpush2.bf16.msra.mxu0 0
  %589 = vmatprep.subr.bf16.mxu0 0
  %590 = vmatpush2.bf16.msra.mxu0 0
  %591 = vmatprep.subr.bf16.mxu0 0
  %592 = vmatpush2.bf16.msra.mxu0 0
  %593 = vmatprep.subr.bf16.mxu0 0
  %594 = vmatpush2.bf16.msra.mxu0 0
  %595 = vmatprep.subr.bf16.mxu0 0
  %596 = vmatpush2.bf16.msra.mxu0 0
  %597 = vmatprep.mubr.bf16.mxu0 0
  %598 = vmatmul.mubr.bf16.gmra.mxu0 %v563
  %v599 = vpop.f32.mrf.mxu0
  %v600 = vadd.f32 0.0, %v599
  %v601 = vpop.f32.mrf.mxu0
  %v602 = vpop.f32.mrf.mxu0
  %v603 = vpop.f32.mrf.mxu0
  %604 = vdwg.mxu0
  %v613 = vunpack.c.l.b16 %v408
  %v614 = vunpack.c.l.b16 %v409
  %v615 = vunpack.c.l.b16 %v410
  %v616 = vunpack.c.l.b16 %v411
  %v617 = vunpack.c.l.b16 %v412
  %v618 = vunpack.c.l.b16 %v413
  %v619 = vunpack.c.l.b16 %v414
  %v620 = vunpack.c.l.b16 %v415
  %v621 = vpack.c.b16 %v614, %v613
  %v622 = vpack.c.b16 %v616, %v615
  %v623 = vpack.c.b16 %v618, %v617
  %v624 = vpack.c.b16 %v620, %v619
  %v630 = vsel %vm561, %v407, 0
  %632 = vmatprep.subr.bf16.mxu0 0
  %633 = vmatpush1.bf16.msra.mxu0 0
  %634 = vmatprep.subr.bf16.mxu0 0
  %635 = vmatpush1.bf16.msra.mxu0 0
  %636 = vmatprep.subr.bf16.mxu0 0
  %637 = vmatpush1.bf16.msra.mxu0 0
  %638 = vmatprep.subr.bf16.mxu0 0
  %639 = vmatpush1.bf16.msra.mxu0 0
  %640 = vmatprep.subr.bf16.mxu0 0
  %641 = vmatpush1.bf16.msra.mxu0 %v624
  %642 = vmatprep.subr.bf16.mxu0 0
  %643 = vmatpush1.bf16.msra.mxu0 %v623
  %644 = vmatprep.subr.bf16.mxu0 0
  %645 = vmatpush1.bf16.msra.mxu0 %v622
  %646 = vmatprep.subr.bf16.mxu0 0
  %647 = vmatpush1.bf16.msra.mxu0 %v621
  %648 = vmatprep.subr.bf16.mxu0 0
  %649 = vmatpush2.bf16.msra.mxu0 0
  %650 = vmatprep.subr.bf16.mxu0 0
  %651 = vmatpush2.bf16.msra.mxu0 0
  %652 = vmatprep.subr.bf16.mxu0 0
  %653 = vmatpush2.bf16.msra.mxu0 0
  %654 = vmatprep.subr.bf16.mxu0 0
  %655 = vmatpush2.bf16.msra.mxu0 0
  %656 = vmatprep.subr.bf16.mxu0 0
  %657 = vmatpush2.bf16.msra.mxu0 0
  %658 = vmatprep.subr.bf16.mxu0 0
  %659 = vmatpush2.bf16.msra.mxu0 0
  %660 = vmatprep.subr.bf16.mxu0 0
  %661 = vmatpush2.bf16.msra.mxu0 0
  %662 = vmatprep.subr.bf16.mxu0 0
  %663 = vmatpush2.bf16.msra.mxu0 0
  %664 = vmatprep.mubr.bf16.mxu0 0
  %665 = vmatmul.mubr.bf16.gmra.mxu0 %v630
  %v666 = vpop.f32.mrf.mxu0
  %v667 = vadd.f32 %v600, %v666
  %v668 = vpop.f32.mrf.mxu0
  %v669 = vpop.f32.mrf.mxu0
  %v670 = vpop.f32.mrf.mxu0
  %671 = vdwg.mxu0
  %v672 = vld [vmem:[%s0 + $0x8] sm:$0xf]
  %v675 = vunpack.c.l.s4 1966171168
  %v676 = vunpack.c.0.s8 %v675
  %v677 = vlaneseq
  %v678 = vshrl.u32 %v677, 7
  %v679 = vsub.s32 %v676, %v678
  %v680 = vrot.slane %v672, %v679
  %v681 = vcombine.high %v680, %v680
  %v683 = vunpack.c.l.s4 1966171168
  %v684 = vunpack.c.0.s8 %v683
  %v685 = vlaneseq
  %v686 = vshrl.u32 %v685, 7
  %v687 = vsub.s32 %v684, %v686
  %v688 = vrot.slane %v680, %v687
  %v690 = vunpack.c.l.s4 1966171168
  %v691 = vunpack.c.0.s8 %v690
  %v692 = vlaneseq
  %v693 = vshrl.u32 %v692, 7
  %v694 = vsub.s32 %v691, %v693
  %v695 = vrot.slane %v681, %v694
  %v696 = vcombine.high %v688, %v688
  %v697 = vcombine.high %v695, %v695
  %702 = vmatprep.subr.bf16.mxu0 0
  %703 = vmatpush1.bf16.msra.mxu0 %v269
  %704 = vmatprep.subr.bf16.mxu0 0
  %705 = vmatpush1.bf16.msra.mxu0 %v268
  %706 = vmatprep.subr.bf16.mxu0 0
  %707 = vmatpush1.bf16.msra.mxu0 %v267
  %708 = vmatprep.subr.bf16.mxu0 0
  %709 = vmatpush1.bf16.msra.mxu0 %v266
  %710 = vmatprep.subr.bf16.mxu0 0
  %711 = vmatpush1.bf16.msra.mxu0 %v265
  %712 = vmatprep.subr.bf16.mxu0 0
  %713 = vmatpush1.bf16.msra.mxu0 %v264
  %714 = vmatprep.subr.bf16.mxu0 0
  %715 = vmatpush1.bf16.msra.mxu0 %v263
  %716 = vmatprep.subr.bf16.mxu0 0
  %717 = vmatpush1.bf16.msra.mxu0 %v262
  %718 = vmatprep.subr.bf16.mxu0 0
  %719 = vmatpush2.bf16.msra.mxu0 %v277
  %720 = vmatprep.subr.bf16.mxu0 0
  %721 = vmatpush2.bf16.msra.mxu0 %v276
  %722 = vmatprep.subr.bf16.mxu0 0
  %723 = vmatpush2.bf16.msra.mxu0 %v275
  %724 = vmatprep.subr.bf16.mxu0 0
  %725 = vmatpush2.bf16.msra.mxu0 %v274
  %726 = vmatprep.subr.bf16.mxu0 0
  %727 = vmatpush2.bf16.msra.mxu0 %v273
  %728 = vmatprep.subr.bf16.mxu0 0
  %729 = vmatpush2.bf16.msra.mxu0 %v272
  %730 = vmatprep.subr.bf16.mxu0 0
  %731 = vmatpush2.bf16.msra.mxu0 %v271
  %732 = vmatprep.subr.bf16.mxu0 0
  %733 = vmatpush2.bf16.msra.mxu0 %v270
  %734 = vmatprep.mubr.bf16.mxu0 %v695
  %735 = vmatmul.mubr.bf16.gmra.mxu0 %v688
  %v736 = vpop.f32.mrf.mxu0
  %v737 = vadd.f32 %v103, %v736
  %v738 = vpop.f32.mrf.mxu0
  %v739 = vpop.f32.mrf.mxu0
  %v740 = vpop.f32.mrf.mxu0
  %741 = vdwg.mxu0
  %742 = vmatprep.subr.bf16.mxu0 0
  %743 = vmatpush1.bf16.msra.mxu0 %v285
  %744 = vmatprep.subr.bf16.mxu0 0
  %745 = vmatpush1.bf16.msra.mxu0 %v284
  %746 = vmatprep.subr.bf16.mxu0 0
  %747 = vmatpush1.bf16.msra.mxu0 %v283
  %748 = vmatprep.subr.bf16.mxu0 0
  %749 = vmatpush1.bf16.msra.mxu0 %v282
  %750 = vmatprep.subr.bf16.mxu0 0
  %751 = vmatpush1.bf16.msra.mxu0 %v281
  %752 = vmatprep.subr.bf16.mxu0 0
  %753 = vmatpush1.bf16.msra.mxu0 %v280
  %754 = vmatprep.subr.bf16.mxu0 0
  %755 = vmatpush1.bf16.msra.mxu0 %v279
  %756 = vmatprep.subr.bf16.mxu0 0
  %757 = vmatpush1.bf16.msra.mxu0 %v278
  %758 = vmatprep.subr.bf16.mxu0 0
  %759 = vmatpush2.bf16.msra.mxu0 %v293
  %760 = vmatprep.subr.bf16.mxu0 0
  %761 = vmatpush2.bf16.msra.mxu0 %v292
  %762 = vmatprep.subr.bf16.mxu0 0
  %763 = vmatpush2.bf16.msra.mxu0 %v291
  %764 = vmatprep.subr.bf16.mxu0 0
  %765 = vmatpush2.bf16.msra.mxu0 %v290
  %766 = vmatprep.subr.bf16.mxu0 0
  %767 = vmatpush2.bf16.msra.mxu0 %v289
  %768 = vmatprep.subr.bf16.mxu0 0
  %769 = vmatpush2.bf16.msra.mxu0 %v288
  %770 = vmatprep.subr.bf16.mxu0 0
  %771 = vmatpush2.bf16.msra.mxu0 %v287
  %772 = vmatprep.subr.bf16.mxu0 0
  %773 = vmatpush2.bf16.msra.mxu0 %v286
  %774 = vmatprep.mubr.bf16.mxu0 %v697
  %775 = vmatmul.mubr.bf16.gmra.mxu0 %v696
  %v776 = vpop.f32.mrf.mxu0
  %v777 = vadd.f32 %v737, %v776
  %v778 = vpop.f32.mrf.mxu0
  %v779 = vpop.f32.mrf.mxu0
  %v780 = vpop.f32.mrf.mxu0
  %781 = vdwg.mxu0
  %v782 = vmax.f32 %v777, 0.0
  %v783 = vpack.c.bf16 %v782, %v782
  %s784 = scalar_lea.vmem %s3, 64
  %v785 = vld [vmem:[%s784] sm:$0xf]
  %v786 = vld [vmem:[%s784 + $0x4] sm:$0xf]
  %v787 = vld [vmem:[%s784 + $0x8] sm:$0xf]
  %v788 = vld [vmem:[%s784 + $0xc] sm:$0xf]
  %v789 = vld [vmem:[%s784 + $0x10] sm:$0xf]
  %v790 = vld [vmem:[%s784 + $0x14] sm:$0xf]
  %v791 = vld [vmem:[%s784 + $0x18] sm:$0xf]
  %v792 = vld [vmem:[%s784 + $0x1c] sm:$0xf]
  %v801 = vunpack.c.l.b16 %v785
  %v802 = vunpack.c.l.b16 %v786
  %v803 = vunpack.c.l.b16 %v787
  %v804 = vunpack.c.l.b16 %v788
  %v805 = vunpack.c.l.b16 %v789
  %v806 = vunpack.c.l.b16 %v790
  %v807 = vunpack.c.l.b16 %v791
  %v808 = vunpack.c.l.b16 %v792
  %v809 = vpack.c.b16 %v802, %v801
  %v810 = vpack.c.b16 %v804, %v803
  %v811 = vpack.c.b16 %v806, %v805
  %v812 = vpack.c.b16 %v808, %v807
  %v818 = vsel %vm561, %v783, 0
  %820 = vmatprep.subr.bf16.mxu0 0
  %821 = vmatpush1.bf16.msra.mxu0 0
  %822 = vmatprep.subr.bf16.mxu0 0
  %823 = vmatpush1.bf16.msra.mxu0 0
  %824 = vmatprep.subr.bf16.mxu0 0
  %825 = vmatpush1.bf16.msra.mxu0 0
  %826 = vmatprep.subr.bf16.mxu0 0
  %827 = vmatpush1.bf16.msra.mxu0 0
  %828 = vmatprep.subr.bf16.mxu0 0
  %829 = vmatpush1.bf16.msra.mxu0 %v812
  %830 = vmatprep.subr.bf16.mxu0 0
  %831 = vmatpush1.bf16.msra.mxu0 %v811
  %832 = vmatprep.subr.bf16.mxu0 0
  %833 = vmatpush1.bf16.msra.mxu0 %v810
  %834 = vmatprep.subr.bf16.mxu0 0
  %835 = vmatpush1.bf16.msra.mxu0 %v809
  %836 = vmatprep.subr.bf16.mxu0 0
  %837 = vmatpush2.bf16.msra.mxu0 0
  %838 = vmatprep.subr.bf16.mxu0 0
  %839 = vmatpush2.bf16.msra.mxu0 0
  %840 = vmatprep.subr.bf16.mxu0 0
  %841 = vmatpush2.bf16.msra.mxu0 0
  %842 = vmatprep.subr.bf16.mxu0 0
  %843 = vmatpush2.bf16.msra.mxu0 0
  %844 = vmatprep.subr.bf16.mxu0 0
  %845 = vmatpush2.bf16.msra.mxu0 0
  %846 = vmatprep.subr.bf16.mxu0 0
  %847 = vmatpush2.bf16.msra.mxu0 0
  %848 = vmatprep.subr.bf16.mxu0 0
  %849 = vmatpush2.bf16.msra.mxu0 0
  %850 = vmatprep.subr.bf16.mxu0 0
  %851 = vmatpush2.bf16.msra.mxu0 0
  %852 = vmatprep.mubr.bf16.mxu0 0
  %853 = vmatmul.mubr.bf16.gmra.mxu0 %v818
  %v854 = vpop.f32.mrf.mxu0
  %v855 = vadd.f32 0.0, %v854
  %v856 = vpop.f32.mrf.mxu0
  %v857 = vpop.f32.mrf.mxu0
  %v858 = vpop.f32.mrf.mxu0
  %859 = vdwg.mxu0
  %v860 = vadd.f32 %v667, %v855
  %v861 = vld [vmem:[%s0 + $0xc] sm:$0xf]
  %v864 = vunpack.c.l.s4 1966171168
  %v865 = vunpack.c.0.s8 %v864
  %v866 = vlaneseq
  %v867 = vshrl.u32 %v866, 7
  %v868 = vsub.s32 %v865, %v867
  %v869 = vrot.slane %v861, %v868
  %v870 = vcombine.high %v869, %v869
  %v872 = vunpack.c.l.s4 1966171168
  %v873 = vunpack.c.0.s8 %v872
  %v874 = vlaneseq
  %v875 = vshrl.u32 %v874, 7
  %v876 = vsub.s32 %v873, %v875
  %v877 = vrot.slane %v869, %v876
  %v879 = vunpack.c.l.s4 1966171168
  %v880 = vunpack.c.0.s8 %v879
  %v881 = vlaneseq
  %v882 = vshrl.u32 %v881, 7
  %v883 = vsub.s32 %v880, %v882
  %v884 = vrot.slane %v870, %v883
  %v885 = vcombine.high %v877, %v877
  %v886 = vcombine.high %v884, %v884
  %891 = vmatprep.subr.bf16.mxu0 0
  %892 = vmatpush1.bf16.msra.mxu0 %v269
  %893 = vmatprep.subr.bf16.mxu0 0
  %894 = vmatpush1.bf16.msra.mxu0 %v268
  %895 = vmatprep.subr.bf16.mxu0 0
  %896 = vmatpush1.bf16.msra.mxu0 %v267
  %897 = vmatprep.subr.bf16.mxu0 0
  %898 = vmatpush1.bf16.msra.mxu0 %v266
  %899 = vmatprep.subr.bf16.mxu0 0
  %900 = vmatpush1.bf16.msra.mxu0 %v265
  %901 = vmatprep.subr.bf16.mxu0 0
  %902 = vmatpush1.bf16.msra.mxu0 %v264
  %903 = vmatprep.subr.bf16.mxu0 0
  %904 = vmatpush1.bf16.msra.mxu0 %v263
  %905 = vmatprep.subr.bf16.mxu0 0
  %906 = vmatpush1.bf16.msra.mxu0 %v262
  %907 = vmatprep.subr.bf16.mxu0 0
  %908 = vmatpush2.bf16.msra.mxu0 %v277
  %909 = vmatprep.subr.bf16.mxu0 0
  %910 = vmatpush2.bf16.msra.mxu0 %v276
  %911 = vmatprep.subr.bf16.mxu0 0
  %912 = vmatpush2.bf16.msra.mxu0 %v275
  %913 = vmatprep.subr.bf16.mxu0 0
  %914 = vmatpush2.bf16.msra.mxu0 %v274
  %915 = vmatprep.subr.bf16.mxu0 0
  %916 = vmatpush2.bf16.msra.mxu0 %v273
  %917 = vmatprep.subr.bf16.mxu0 0
  %918 = vmatpush2.bf16.msra.mxu0 %v272
  %919 = vmatprep.subr.bf16.mxu0 0
  %920 = vmatpush2.bf16.msra.mxu0 %v271
  %921 = vmatprep.subr.bf16.mxu0 0
  %922 = vmatpush2.bf16.msra.mxu0 %v270
  %923 = vmatprep.mubr.bf16.mxu0 %v884
  %924 = vmatmul.mubr.bf16.gmra.mxu0 %v877
  %v925 = vpop.f32.mrf.mxu0
  %v926 = vadd.f32 %v103, %v925
  %v927 = vpop.f32.mrf.mxu0
  %v928 = vpop.f32.mrf.mxu0
  %v929 = vpop.f32.mrf.mxu0
  %930 = vdwg.mxu0
  %931 = vmatprep.subr.bf16.mxu0 0
  %932 = vmatpush1.bf16.msra.mxu0 %v285
  %933 = vmatprep.subr.bf16.mxu0 0
  %934 = vmatpush1.bf16.msra.mxu0 %v284
  %935 = vmatprep.subr.bf16.mxu0 0
  %936 = vmatpush1.bf16.msra.mxu0 %v283
  %937 = vmatprep.subr.bf16.mxu0 0
  %938 = vmatpush1.bf16.msra.mxu0 %v282
  %939 = vmatprep.subr.bf16.mxu0 0
  %940 = vmatpush1.bf16.msra.mxu0 %v281
  %941 = vmatprep.subr.bf16.mxu0 0
  %942 = vmatpush1.bf16.msra.mxu0 %v280
  %943 = vmatprep.subr.bf16.mxu0 0
  %944 = vmatpush1.bf16.msra.mxu0 %v279
  %945 = vmatprep.subr.bf16.mxu0 0
  %946 = vmatpush1.bf16.msra.mxu0 %v278
  %947 = vmatprep.subr.bf16.mxu0 0
  %948 = vmatpush2.bf16.msra.mxu0 %v293
  %949 = vmatprep.subr.bf16.mxu0 0
  %950 = vmatpush2.bf16.msra.mxu0 %v292
  %951 = vmatprep.subr.bf16.mxu0 0
  %952 = vmatpush2.bf16.msra.mxu0 %v291
  %953 = vmatprep.subr.bf16.mxu0 0
  %954 = vmatpush2.bf16.msra.mxu0 %v290
  %955 = vmatprep.subr.bf16.mxu0 0
  %956 = vmatpush2.bf16.msra.mxu0 %v289
  %957 = vmatprep.subr.bf16.mxu0 0
  %958 = vmatpush2.bf16.msra.mxu0 %v288
  %959 = vmatprep.subr.bf16.mxu0 0
  %960 = vmatpush2.bf16.msra.mxu0 %v287
  %961 = vmatprep.subr.bf16.mxu0 0
  %962 = vmatpush2.bf16.msra.mxu0 %v286
  %963 = vmatprep.mubr.bf16.mxu0 %v886
  %964 = vmatmul.mubr.bf16.gmra.mxu0 %v885
  %v965 = vpop.f32.mrf.mxu0
  %v966 = vadd.f32 %v926, %v965
  %v967 = vpop.f32.mrf.mxu0
  %v968 = vpop.f32.mrf.mxu0
  %v969 = vpop.f32.mrf.mxu0
  %970 = vdwg.mxu0
  %v971 = vmax.f32 %v966, 0.0
  %v972 = vpack.c.bf16 %v971, %v971
  %s973 = scalar_lea.vmem %s3, 96
  %v974 = vld [vmem:[%s973] sm:$0xf]
  %v975 = vld [vmem:[%s973 + $0x4] sm:$0xf]
  %v976 = vld [vmem:[%s973 + $0x8] sm:$0xf]
  %v977 = vld [vmem:[%s973 + $0xc] sm:$0xf]
  %v978 = vld [vmem:[%s973 + $0x10] sm:$0xf]
  %v979 = vld [vmem:[%s973 + $0x14] sm:$0xf]
  %v980 = vld [vmem:[%s973 + $0x18] sm:$0xf]
  %v981 = vld [vmem:[%s973 + $0x1c] sm:$0xf]
  %v990 = vunpack.c.l.b16 %v974
  %v991 = vunpack.c.l.b16 %v975
  %v992 = vunpack.c.l.b16 %v976
  %v993 = vunpack.c.l.b16 %v977
  %v994 = vunpack.c.l.b16 %v978
  %v995 = vunpack.c.l.b16 %v979
  %v996 = vunpack.c.l.b16 %v980
  %v997 = vunpack.c.l.b16 %v981
  %v998 = vpack.c.b16 %v991, %v990
  %v999 = vpack.c.b16 %v993, %v992
  %v1000 = vpack.c.b16 %v995, %v994
  %v1001 = vpack.c.b16 %v997, %v996
  %v1007 = vsel %vm561, %v972, 0
  %1009 = vmatprep.subr.bf16.mxu0 0
  %1010 = vmatpush1.bf16.msra.mxu0 0
  %1011 = vmatprep.subr.bf16.mxu0 0
  %1012 = vmatpush1.bf16.msra.mxu0 0
  %1013 = vmatprep.subr.bf16.mxu0 0
  %1014 = vmatpush1.bf16.msra.mxu0 0
  %1015 = vmatprep.subr.bf16.mxu0 0
  %1016 = vmatpush1.bf16.msra.mxu0 0
  %1017 = vmatprep.subr.bf16.mxu0 0
  %1018 = vmatpush1.bf16.msra.mxu0 %v1001
  %1019 = vmatprep.subr.bf16.mxu0 0
  %1020 = vmatpush1.bf16.msra.mxu0 %v1000
  %1021 = vmatprep.subr.bf16.mxu0 0
  %1022 = vmatpush1.bf16.msra.mxu0 %v999
  %1023 = vmatprep.subr.bf16.mxu0 0
  %1024 = vmatpush1.bf16.msra.mxu0 %v998
  %1025 = vmatprep.subr.bf16.mxu0 0
  %1026 = vmatpush2.bf16.msra.mxu0 0
  %1027 = vmatprep.subr.bf16.mxu0 0
  %1028 = vmatpush2.bf16.msra.mxu0 0
  %1029 = vmatprep.subr.bf16.mxu0 0
  %1030 = vmatpush2.bf16.msra.mxu0 0
  %1031 = vmatprep.subr.bf16.mxu0 0
  %1032 = vmatpush2.bf16.msra.mxu0 0
  %1033 = vmatprep.subr.bf16.mxu0 0
  %1034 = vmatpush2.bf16.msra.mxu0 0
  %1035 = vmatprep.subr.bf16.mxu0 0
  %1036 = vmatpush2.bf16.msra.mxu0 0
  %1037 = vmatprep.subr.bf16.mxu0 0
  %1038 = vmatpush2.bf16.msra.mxu0 0
  %1039 = vmatprep.subr.bf16.mxu0 0
  %1040 = vmatpush2.bf16.msra.mxu0 0
  %1041 = vmatprep.mubr.bf16.mxu0 0
  %1042 = vmatmul.mubr.bf16.gmra.mxu0 %v1007
  %v1043 = vpop.f32.mrf.mxu0
  %v1044 = vadd.f32 0.0, %v1043
  %v1045 = vpop.f32.mrf.mxu0
  %v1046 = vpop.f32.mrf.mxu0
  %v1047 = vpop.f32.mrf.mxu0
  %1048 = vdwg.mxu0
  %v1049 = vadd.f32 %v860, %v1044
  %v1050 = vld [vmem:[%s0 + $0x10] sm:$0xf]
  %v1053 = vunpack.c.l.s4 1966171168
  %v1054 = vunpack.c.0.s8 %v1053
  %v1055 = vlaneseq
  %v1056 = vshrl.u32 %v1055, 7
  %v1057 = vsub.s32 %v1054, %v1056
  %v1058 = vrot.slane %v1050, %v1057
  %v1059 = vcombine.high %v1058, %v1058
  %v1061 = vunpack.c.l.s4 1966171168
  %v1062 = vunpack.c.0.s8 %v1061
  %v1063 = vlaneseq
  %v1064 = vshrl.u32 %v1063, 7
  %v1065 = vsub.s32 %v1062, %v1064
  %v1066 = vrot.slane %v1058, %v1065
  %v1068 = vunpack.c.l.s4 1966171168
  %v1069 = vunpack.c.0.s8 %v1068
  %v1070 = vlaneseq
  %v1071 = vshrl.u32 %v1070, 7
  %v1072 = vsub.s32 %v1069, %v1071
  %v1073 = vrot.slane %v1059, %v1072
  %v1074 = vcombine.high %v1066, %v1066
  %v1075 = vcombine.high %v1073, %v1073
  %1080 = vmatprep.subr.bf16.mxu0 0
  %1081 = vmatpush1.bf16.msra.mxu0 %v269
  %1082 = vmatprep.subr.bf16.mxu0 0
  %1083 = vmatpush1.bf16.msra.mxu0 %v268
  %1084 = vmatprep.subr.bf16.mxu0 0
  %1085 = vmatpush1.bf16.msra.mxu0 %v267
  %1086 = vmatprep.subr.bf16.mxu0 0
  %1087 = vmatpush1.bf16.msra.mxu0 %v266
  %1088 = vmatprep.subr.bf16.mxu0 0
  %1089 = vmatpush1.bf16.msra.mxu0 %v265
  %1090 = vmatprep.subr.bf16.mxu0 0
  %1091 = vmatpush1.bf16.msra.mxu0 %v264
  %1092 = vmatprep.subr.bf16.mxu0 0
  %1093 = vmatpush1.bf16.msra.mxu0 %v263
  %1094 = vmatprep.subr.bf16.mxu0 0
  %1095 = vmatpush1.bf16.msra.mxu0 %v262
  %1096 = vmatprep.subr.bf16.mxu0 0
  %1097 = vmatpush2.bf16.msra.mxu0 %v277
  %1098 = vmatprep.subr.bf16.mxu0 0
  %1099 = vmatpush2.bf16.msra.mxu0 %v276
  %1100 = vmatprep.subr.bf16.mxu0 0
  %1101 = vmatpush2.bf16.msra.mxu0 %v275
  %1102 = vmatprep.subr.bf16.mxu0 0
  %1103 = vmatpush2.bf16.msra.mxu0 %v274
  %1104 = vmatprep.subr.bf16.mxu0 0
  %1105 = vmatpush2.bf16.msra.mxu0 %v273
  %1106 = vmatprep.subr.bf16.mxu0 0
  %1107 = vmatpush2.bf16.msra.mxu0 %v272
  %1108 = vmatprep.subr.bf16.mxu0 0
  %1109 = vmatpush2.bf16.msra.mxu0 %v271
  %1110 = vmatprep.subr.bf16.mxu0 0
  %1111 = vmatpush2.bf16.msra.mxu0 %v270
  %1112 = vmatprep.mubr.bf16.mxu0 %v1073
  %1113 = vmatmul.mubr.bf16.gmra.mxu0 %v1066
  %v1114 = vpop.f32.mrf.mxu0
  %v1115 = vadd.f32 %v103, %v1114
  %v1116 = vpop.f32.mrf.mxu0
  %v1117 = vpop.f32.mrf.mxu0
  %v1118 = vpop.f32.mrf.mxu0
  %1119 = vdwg.mxu0
  %1120 = vmatprep.subr.bf16.mxu0 0
  %1121 = vmatpush1.bf16.msra.mxu0 %v285
  %1122 = vmatprep.subr.bf16.mxu0 0
  %1123 = vmatpush1.bf16.msra.mxu0 %v284
  %1124 = vmatprep.subr.bf16.mxu0 0
  %1125 = vmatpush1.bf16.msra.mxu0 %v283
  %1126 = vmatprep.subr.bf16.mxu0 0
  %1127 = vmatpush1.bf16.msra.mxu0 %v282
  %1128 = vmatprep.subr.bf16.mxu0 0
  %1129 = vmatpush1.bf16.msra.mxu0 %v281
  %1130 = vmatprep.subr.bf16.mxu0 0
  %1131 = vmatpush1.bf16.msra.mxu0 %v280
  %1132 = vmatprep.subr.bf16.mxu0 0
  %1133 = vmatpush1.bf16.msra.mxu0 %v279
  %1134 = vmatprep.subr.bf16.mxu0 0
  %1135 = vmatpush1.bf16.msra.mxu0 %v278
  %1136 = vmatprep.subr.bf16.mxu0 0
  %1137 = vmatpush2.bf16.msra.mxu0 %v293
  %1138 = vmatprep.subr.bf16.mxu0 0
  %1139 = vmatpush2.bf16.msra.mxu0 %v292
  %1140 = vmatprep.subr.bf16.mxu0 0
  %1141 = vmatpush2.bf16.msra.mxu0 %v291
  %1142 = vmatprep.subr.bf16.mxu0 0
  %1143 = vmatpush2.bf16.msra.mxu0 %v290
  %1144 = vmatprep.subr.bf16.mxu0 0
  %1145 = vmatpush2.bf16.msra.mxu0 %v289
  %1146 = vmatprep.subr.bf16.mxu0 0
  %1147 = vmatpush2.bf16.msra.mxu0 %v288
  %1148 = vmatprep.subr.bf16.mxu0 0
  %1149 = vmatpush2.bf16.msra.mxu0 %v287
  %1150 = vmatprep.subr.bf16.mxu0 0
  %1151 = vmatpush2.bf16.msra.mxu0 %v286
  %1152 = vmatprep.mubr.bf16.mxu0 %v1075
  %1153 = vmatmul.mubr.bf16.gmra.mxu0 %v1074
  %v1154 = vpop.f32.mrf.mxu0
  %v1155 = vadd.f32 %v1115, %v1154
  %v1156 = vpop.f32.mrf.mxu0
  %v1157 = vpop.f32.mrf.mxu0
  %v1158 = vpop.f32.mrf.mxu0
  %1159 = vdwg.mxu0
  %v1160 = vmax.f32 %v1155, 0.0
  %v1161 = vpack.c.bf16 %v1160, %v1160
  %s1162 = scalar_lea.vmem %s3, 128
  %v1163 = vld [vmem:[%s1162] sm:$0xf]
  %v1164 = vld [vmem:[%s1162 + $0x4] sm:$0xf]
  %v1165 = vld [vmem:[%s1162 + $0x8] sm:$0xf]
  %v1166 = vld [vmem:[%s1162 + $0xc] sm:$0xf]
  %v1167 = vld [vmem:[%s1162 + $0x10] sm:$0xf]
  %v1168 = vld [vmem:[%s1162 + $0x14] sm:$0xf]
  %v1169 = vld [vmem:[%s1162 + $0x18] sm:$0xf]
  %v1170 = vld [vmem:[%s1162 + $0x1c] sm:$0xf]
  %v1179 = vunpack.c.l.b16 %v1163
  %v1180 = vunpack.c.l.b16 %v1164
  %v1181 = vunpack.c.l.b16 %v1165
  %v1182 = vunpack.c.l.b16 %v1166
  %v1183 = vunpack.c.l.b16 %v1167
  %v1184 = vunpack.c.l.b16 %v1168
  %v1185 = vunpack.c.l.b16 %v1169
  %v1186 = vunpack.c.l.b16 %v1170
  %v1187 = vpack.c.b16 %v1180, %v1179
  %v1188 = vpack.c.b16 %v1182, %v1181
  %v1189 = vpack.c.b16 %v1184, %v1183
  %v1190 = vpack.c.b16 %v1186, %v1185
  %v1196 = vsel %vm561, %v1161, 0
  %1198 = vmatprep.subr.bf16.mxu0 0
  %1199 = vmatpush1.bf16.msra.mxu0 0
  %1200 = vmatprep.subr.bf16.mxu0 0
  %1201 = vmatpush1.bf16.msra.mxu0 0
  %1202 = vmatprep.subr.bf16.mxu0 0
  %1203 = vmatpush1.bf16.msra.mxu0 0
  %1204 = vmatprep.subr.bf16.mxu0 0
  %1205 = vmatpush1.bf16.msra.mxu0 0
  %1206 = vmatprep.subr.bf16.mxu0 0
  %1207 = vmatpush1.bf16.msra.mxu0 %v1190
  %1208 = vmatprep.subr.bf16.mxu0 0
  %1209 = vmatpush1.bf16.msra.mxu0 %v1189
  %1210 = vmatprep.subr.bf16.mxu0 0
  %1211 = vmatpush1.bf16.msra.mxu0 %v1188
  %1212 = vmatprep.subr.bf16.mxu0 0
  %1213 = vmatpush1.bf16.msra.mxu0 %v1187
  %1214 = vmatprep.subr.bf16.mxu0 0
  %1215 = vmatpush2.bf16.msra.mxu0 0
  %1216 = vmatprep.subr.bf16.mxu0 0
  %1217 = vmatpush2.bf16.msra.mxu0 0
  %1218 = vmatprep.subr.bf16.mxu0 0
  %1219 = vmatpush2.bf16.msra.mxu0 0
  %1220 = vmatprep.subr.bf16.mxu0 0
  %1221 = vmatpush2.bf16.msra.mxu0 0
  %1222 = vmatprep.subr.bf16.mxu0 0
  %1223 = vmatpush2.bf16.msra.mxu0 0
  %1224 = vmatprep.subr.bf16.mxu0 0
  %1225 = vmatpush2.bf16.msra.mxu0 0
  %1226 = vmatprep.subr.bf16.mxu0 0
  %1227 = vmatpush2.bf16.msra.mxu0 0
  %1228 = vmatprep.subr.bf16.mxu0 0
  %1229 = vmatpush2.bf16.msra.mxu0 0
  %1230 = vmatprep.mubr.bf16.mxu0 0
  %1231 = vmatmul.mubr.bf16.gmra.mxu0 %v1196
  %v1232 = vpop.f32.mrf.mxu0
  %v1233 = vadd.f32 0.0, %v1232
  %v1234 = vpop.f32.mrf.mxu0
  %v1235 = vpop.f32.mrf.mxu0
  %v1236 = vpop.f32.mrf.mxu0
  %1237 = vdwg.mxu0
  %v1238 = vadd.f32 %v1049, %v1233
  %v1239 = vld [vmem:[%s0 + $0x14] sm:$0xf]
  %v1242 = vunpack.c.l.s4 1966171168
  %v1243 = vunpack.c.0.s8 %v1242
  %v1244 = vlaneseq
  %v1245 = vshrl.u32 %v1244, 7
  %v1246 = vsub.s32 %v1243, %v1245
  %v1247 = vrot.slane %v1239, %v1246
  %v1248 = vcombine.high %v1247, %v1247
  %v1250 = vunpack.c.l.s4 1966171168
  %v1251 = vunpack.c.0.s8 %v1250
  %v1252 = vlaneseq
  %v1253 = vshrl.u32 %v1252, 7
  %v1254 = vsub.s32 %v1251, %v1253
  %v1255 = vrot.slane %v1247, %v1254
  %v1257 = vunpack.c.l.s4 1966171168
  %v1258 = vunpack.c.0.s8 %v1257
  %v1259 = vlaneseq
  %v1260 = vshrl.u32 %v1259, 7
  %v1261 = vsub.s32 %v1258, %v1260
  %v1262 = vrot.slane %v1248, %v1261
  %v1263 = vcombine.high %v1255, %v1255
  %v1264 = vcombine.high %v1262, %v1262
  %1269 = vmatprep.subr.bf16.mxu0 0
  %1270 = vmatpush1.bf16.msra.mxu0 %v269
  %1271 = vmatprep.subr.bf16.mxu0 0
  %1272 = vmatpush1.bf16.msra.mxu0 %v268
  %1273 = vmatprep.subr.bf16.mxu0 0
  %1274 = vmatpush1.bf16.msra.mxu0 %v267
  %1275 = vmatprep.subr.bf16.mxu0 0
  %1276 = vmatpush1.bf16.msra.mxu0 %v266
  %1277 = vmatprep.subr.bf16.mxu0 0
  %1278 = vmatpush1.bf16.msra.mxu0 %v265
  %1279 = vmatprep.subr.bf16.mxu0 0
  %1280 = vmatpush1.bf16.msra.mxu0 %v264
  %1281 = vmatprep.subr.bf16.mxu0 0
  %1282 = vmatpush1.bf16.msra.mxu0 %v263
  %1283 = vmatprep.subr.bf16.mxu0 0
  %1284 = vmatpush1.bf16.msra.mxu0 %v262
  %1285 = vmatprep.subr.bf16.mxu0 0
  %1286 = vmatpush2.bf16.msra.mxu0 %v277
  %1287 = vmatprep.subr.bf16.mxu0 0
  %1288 = vmatpush2.bf16.msra.mxu0 %v276
  %1289 = vmatprep.subr.bf16.mxu0 0
  %1290 = vmatpush2.bf16.msra.mxu0 %v275
  %1291 = vmatprep.subr.bf16.mxu0 0
  %1292 = vmatpush2.bf16.msra.mxu0 %v274
  %1293 = vmatprep.subr.bf16.mxu0 0
  %1294 = vmatpush2.bf16.msra.mxu0 %v273
  %1295 = vmatprep.subr.bf16.mxu0 0
  %1296 = vmatpush2.bf16.msra.mxu0 %v272
  %1297 = vmatprep.subr.bf16.mxu0 0
  %1298 = vmatpush2.bf16.msra.mxu0 %v271
  %1299 = vmatprep.subr.bf16.mxu0 0
  %1300 = vmatpush2.bf16.msra.mxu0 %v270
  %1301 = vmatprep.mubr.bf16.mxu0 %v1262
  %1302 = vmatmul.mubr.bf16.gmra.mxu0 %v1255
  %v1303 = vpop.f32.mrf.mxu0
  %v1304 = vadd.f32 %v103, %v1303
  %v1305 = vpop.f32.mrf.mxu0
  %v1306 = vpop.f32.mrf.mxu0
  %v1307 = vpop.f32.mrf.mxu0
  %1308 = vdwg.mxu0
  %1309 = vmatprep.subr.bf16.mxu0 0
  %1310 = vmatpush1.bf16.msra.mxu0 %v285
  %1311 = vmatprep.subr.bf16.mxu0 0
  %1312 = vmatpush1.bf16.msra.mxu0 %v284
  %1313 = vmatprep.subr.bf16.mxu0 0
  %1314 = vmatpush1.bf16.msra.mxu0 %v283
  %1315 = vmatprep.subr.bf16.mxu0 0
  %1316 = vmatpush1.bf16.msra.mxu0 %v282
  %1317 = vmatprep.subr.bf16.mxu0 0
  %1318 = vmatpush1.bf16.msra.mxu0 %v281
  %1319 = vmatprep.subr.bf16.mxu0 0
  %1320 = vmatpush1.bf16.msra.mxu0 %v280
  %1321 = vmatprep.subr.bf16.mxu0 0
  %1322 = vmatpush1.bf16.msra.mxu0 %v279
  %1323 = vmatprep.subr.bf16.mxu0 0
  %1324 = vmatpush1.bf16.msra.mxu0 %v278
  %1325 = vmatprep.subr.bf16.mxu0 0
  %1326 = vmatpush2.bf16.msra.mxu0 %v293
  %1327 = vmatprep.subr.bf16.mxu0 0
  %1328 = vmatpush2.bf16.msra.mxu0 %v292
  %1329 = vmatprep.subr.bf16.mxu0 0
  %1330 = vmatpush2.bf16.msra.mxu0 %v291
  %1331 = vmatprep.subr.bf16.mxu0 0
  %1332 = vmatpush2.bf16.msra.mxu0 %v290
  %1333 = vmatprep.subr.bf16.mxu0 0
  %1334 = vmatpush2.bf16.msra.mxu0 %v289
  %1335 = vmatprep.subr.bf16.mxu0 0
  %1336 = vmatpush2.bf16.msra.mxu0 %v288
  %1337 = vmatprep.subr.bf16.mxu0 0
  %1338 = vmatpush2.bf16.msra.mxu0 %v287
  %1339 = vmatprep.subr.bf16.mxu0 0
  %1340 = vmatpush2.bf16.msra.mxu0 %v286
  %1341 = vmatprep.mubr.bf16.mxu0 %v1264
  %1342 = vmatmul.mubr.bf16.gmra.mxu0 %v1263
  %v1343 = vpop.f32.mrf.mxu0
  %v1344 = vadd.f32 %v1304, %v1343
  %v1345 = vpop.f32.mrf.mxu0
  %v1346 = vpop.f32.mrf.mxu0
  %v1347 = vpop.f32.mrf.mxu0
  %1348 = vdwg.mxu0
  %v1349 = vmax.f32 %v1344, 0.0
  %v1350 = vpack.c.bf16 %v1349, %v1349
  %s1351 = scalar_lea.vmem %s3, 160
  %v1352 = vld [vmem:[%s1351] sm:$0xf]
  %v1353 = vld [vmem:[%s1351 + $0x4] sm:$0xf]
  %v1354 = vld [vmem:[%s1351 + $0x8] sm:$0xf]
  %v1355 = vld [vmem:[%s1351 + $0xc] sm:$0xf]
  %v1356 = vld [vmem:[%s1351 + $0x10] sm:$0xf]
  %v1357 = vld [vmem:[%s1351 + $0x14] sm:$0xf]
  %v1358 = vld [vmem:[%s1351 + $0x18] sm:$0xf]
  %v1359 = vld [vmem:[%s1351 + $0x1c] sm:$0xf]
  %v1368 = vunpack.c.l.b16 %v1352
  %v1369 = vunpack.c.l.b16 %v1353
  %v1370 = vunpack.c.l.b16 %v1354
  %v1371 = vunpack.c.l.b16 %v1355
  %v1372 = vunpack.c.l.b16 %v1356
  %v1373 = vunpack.c.l.b16 %v1357
  %v1374 = vunpack.c.l.b16 %v1358
  %v1375 = vunpack.c.l.b16 %v1359
  %v1376 = vpack.c.b16 %v1369, %v1368
  %v1377 = vpack.c.b16 %v1371, %v1370
  %v1378 = vpack.c.b16 %v1373, %v1372
  %v1379 = vpack.c.b16 %v1375, %v1374
  %v1385 = vsel %vm561, %v1350, 0
  %1387 = vmatprep.subr.bf16.mxu0 0
  %1388 = vmatpush1.bf16.msra.mxu0 0
  %1389 = vmatprep.subr.bf16.mxu0 0
  %1390 = vmatpush1.bf16.msra.mxu0 0
  %1391 = vmatprep.subr.bf16.mxu0 0
  %1392 = vmatpush1.bf16.msra.mxu0 0
  %1393 = vmatprep.subr.bf16.mxu0 0
  %1394 = vmatpush1.bf16.msra.mxu0 0
  %1395 = vmatprep.subr.bf16.mxu0 0
  %1396 = vmatpush1.bf16.msra.mxu0 %v1379
  %1397 = vmatprep.subr.bf16.mxu0 0
  %1398 = vmatpush1.bf16.msra.mxu0 %v1378
  %1399 = vmatprep.subr.bf16.mxu0 0
  %1400 = vmatpush1.bf16.msra.mxu0 %v1377
  %1401 = vmatprep.subr.bf16.mxu0 0
  %1402 = vmatpush1.bf16.msra.mxu0 %v1376
  %1403 = vmatprep.subr.bf16.mxu0 0
  %1404 = vmatpush2.bf16.msra.mxu0 0
  %1405 = vmatprep.subr.bf16.mxu0 0
  %1406 = vmatpush2.bf16.msra.mxu0 0
  %1407 = vmatprep.subr.bf16.mxu0 0
  %1408 = vmatpush2.bf16.msra.mxu0 0
  %1409 = vmatprep.subr.bf16.mxu0 0
  %1410 = vmatpush2.bf16.msra.mxu0 0
  %1411 = vmatprep.subr.bf16.mxu0 0
  %1412 = vmatpush2.bf16.msra.mxu0 0
  %1413 = vmatprep.subr.bf16.mxu0 0
  %1414 = vmatpush2.bf16.msra.mxu0 0
  %1415 = vmatprep.subr.bf16.mxu0 0
  %1416 = vmatpush2.bf16.msra.mxu0 0
  %1417 = vmatprep.subr.bf16.mxu0 0
  %1418 = vmatpush2.bf16.msra.mxu0 0
  %1419 = vmatprep.mubr.bf16.mxu0 0
  %1420 = vmatmul.mubr.bf16.gmra.mxu0 %v1385
  %v1421 = vpop.f32.mrf.mxu0
  %v1422 = vadd.f32 0.0, %v1421
  %v1423 = vpop.f32.mrf.mxu0
  %v1424 = vpop.f32.mrf.mxu0
  %v1425 = vpop.f32.mrf.mxu0
  %1426 = vdwg.mxu0
  %v1427 = vadd.f32 %v1238, %v1422
  %v1428 = vld [vmem:[%s0 + $0x18] sm:$0xf]
  %v1431 = vunpack.c.l.s4 1966171168
  %v1432 = vunpack.c.0.s8 %v1431
  %v1433 = vlaneseq
  %v1434 = vshrl.u32 %v1433, 7
  %v1435 = vsub.s32 %v1432, %v1434
  %v1436 = vrot.slane %v1428, %v1435
  %v1437 = vcombine.high %v1436, %v1436
  %v1439 = vunpack.c.l.s4 1966171168
  %v1440 = vunpack.c.0.s8 %v1439
  %v1441 = vlaneseq
  %v1442 = vshrl.u32 %v1441, 7
  %v1443 = vsub.s32 %v1440, %v1442
  %v1444 = vrot.slane %v1436, %v1443
  %v1446 = vunpack.c.l.s4 1966171168
  %v1447 = vunpack.c.0.s8 %v1446
  %v1448 = vlaneseq
  %v1449 = vshrl.u32 %v1448, 7
  %v1450 = vsub.s32 %v1447, %v1449
  %v1451 = vrot.slane %v1437, %v1450
  %v1452 = vcombine.high %v1444, %v1444
  %v1453 = vcombine.high %v1451, %v1451
  %1458 = vmatprep.subr.bf16.mxu0 0
  %1459 = vmatpush1.bf16.msra.mxu0 %v269
  %1460 = vmatprep.subr.bf16.mxu0 0
  %1461 = vmatpush1.bf16.msra.mxu0 %v268
  %1462 = vmatprep.subr.bf16.mxu0 0
  %1463 = vmatpush1.bf16.msra.mxu0 %v267
  %1464 = vmatprep.subr.bf16.mxu0 0
  %1465 = vmatpush1.bf16.msra.mxu0 %v266
  %1466 = vmatprep.subr.bf16.mxu0 0
  %1467 = vmatpush1.bf16.msra.mxu0 %v265
  %1468 = vmatprep.subr.bf16.mxu0 0
  %1469 = vmatpush1.bf16.msra.mxu0 %v264
  %1470 = vmatprep.subr.bf16.mxu0 0
  %1471 = vmatpush1.bf16.msra.mxu0 %v263
  %1472 = vmatprep.subr.bf16.mxu0 0
  %1473 = vmatpush1.bf16.msra.mxu0 %v262
  %1474 = vmatprep.subr.bf16.mxu0 0
  %1475 = vmatpush2.bf16.msra.mxu0 %v277
  %1476 = vmatprep.subr.bf16.mxu0 0
  %1477 = vmatpush2.bf16.msra.mxu0 %v276
  %1478 = vmatprep.subr.bf16.mxu0 0
  %1479 = vmatpush2.bf16.msra.mxu0 %v275
  %1480 = vmatprep.subr.bf16.mxu0 0
  %1481 = vmatpush2.bf16.msra.mxu0 %v274
  %1482 = vmatprep.subr.bf16.mxu0 0
  %1483 = vmatpush2.bf16.msra.mxu0 %v273
  %1484 = vmatprep.subr.bf16.mxu0 0
  %1485 = vmatpush2.bf16.msra.mxu0 %v272
  %1486 = vmatprep.subr.bf16.mxu0 0
  %1487 = vmatpush2.bf16.msra.mxu0 %v271
  %1488 = vmatprep.subr.bf16.mxu0 0
  %1489 = vmatpush2.bf16.msra.mxu0 %v270
  %1490 = vmatprep.mubr.bf16.mxu0 %v1451
  %1491 = vmatmul.mubr.bf16.gmra.mxu0 %v1444
  %v1492 = vpop.f32.mrf.mxu0
  %v1493 = vadd.f32 %v103, %v1492
  %v1494 = vpop.f32.mrf.mxu0
  %v1495 = vpop.f32.mrf.mxu0
  %v1496 = vpop.f32.mrf.mxu0
  %1497 = vdwg.mxu0
  %1498 = vmatprep.subr.bf16.mxu0 0
  %1499 = vmatpush1.bf16.msra.mxu0 %v285
  %1500 = vmatprep.subr.bf16.mxu0 0
  %1501 = vmatpush1.bf16.msra.mxu0 %v284
  %1502 = vmatprep.subr.bf16.mxu0 0
  %1503 = vmatpush1.bf16.msra.mxu0 %v283
  %1504 = vmatprep.subr.bf16.mxu0 0
  %1505 = vmatpush1.bf16.msra.mxu0 %v282
  %1506 = vmatprep.subr.bf16.mxu0 0
  %1507 = vmatpush1.bf16.msra.mxu0 %v281
  %1508 = vmatprep.subr.bf16.mxu0 0
  %1509 = vmatpush1.bf16.msra.mxu0 %v280
  %1510 = vmatprep.subr.bf16.mxu0 0
  %1511 = vmatpush1.bf16.msra.mxu0 %v279
  %1512 = vmatprep.subr.bf16.mxu0 0
  %1513 = vmatpush1.bf16.msra.mxu0 %v278
  %1514 = vmatprep.subr.bf16.mxu0 0
  %1515 = vmatpush2.bf16.msra.mxu0 %v293
  %1516 = vmatprep.subr.bf16.mxu0 0
  %1517 = vmatpush2.bf16.msra.mxu0 %v292
  %1518 = vmatprep.subr.bf16.mxu0 0
  %1519 = vmatpush2.bf16.msra.mxu0 %v291
  %1520 = vmatprep.subr.bf16.mxu0 0
  %1521 = vmatpush2.bf16.msra.mxu0 %v290
  %1522 = vmatprep.subr.bf16.mxu0 0
  %1523 = vmatpush2.bf16.msra.mxu0 %v289
  %1524 = vmatprep.subr.bf16.mxu0 0
  %1525 = vmatpush2.bf16.msra.mxu0 %v288
  %1526 = vmatprep.subr.bf16.mxu0 0
  %1527 = vmatpush2.bf16.msra.mxu0 %v287
  %1528 = vmatprep.subr.bf16.mxu0 0
  %1529 = vmatpush2.bf16.msra.mxu0 %v286
  %1530 = vmatprep.mubr.bf16.mxu0 %v1453
  %1531 = vmatmul.mubr.bf16.gmra.mxu0 %v1452
  %v1532 = vpop.f32.mrf.mxu0
  %v1533 = vadd.f32 %v1493, %v1532
  %v1534 = vpop.f32.mrf.mxu0
  %v1535 = vpop.f32.mrf.mxu0
  %v1536 = vpop.f32.mrf.mxu0
  %1537 = vdwg.mxu0
  %v1538 = vmax.f32 %v1533, 0.0
  %v1539 = vpack.c.bf16 %v1538, %v1538
  %s1540 = scalar_lea.vmem %s3, 192
  %v1541 = vld [vmem:[%s1540] sm:$0xf]
  %v1542 = vld [vmem:[%s1540 + $0x4] sm:$0xf]
  %v1543 = vld [vmem:[%s1540 + $0x8] sm:$0xf]
  %v1544 = vld [vmem:[%s1540 + $0xc] sm:$0xf]
  %v1545 = vld [vmem:[%s1540 + $0x10] sm:$0xf]
  %v1546 = vld [vmem:[%s1540 + $0x14] sm:$0xf]
  %v1547 = vld [vmem:[%s1540 + $0x18] sm:$0xf]
  %v1548 = vld [vmem:[%s1540 + $0x1c] sm:$0xf]
  %v1557 = vunpack.c.l.b16 %v1541
  %v1558 = vunpack.c.l.b16 %v1542
  %v1559 = vunpack.c.l.b16 %v1543
  %v1560 = vunpack.c.l.b16 %v1544
  %v1561 = vunpack.c.l.b16 %v1545
  %v1562 = vunpack.c.l.b16 %v1546
  %v1563 = vunpack.c.l.b16 %v1547
  %v1564 = vunpack.c.l.b16 %v1548
  %v1565 = vpack.c.b16 %v1558, %v1557
  %v1566 = vpack.c.b16 %v1560, %v1559
  %v1567 = vpack.c.b16 %v1562, %v1561
  %v1568 = vpack.c.b16 %v1564, %v1563
  %v1574 = vsel %vm561, %v1539, 0
  %1576 = vmatprep.subr.bf16.mxu0 0
  %1577 = vmatpush1.bf16.msra.mxu0 0
  %1578 = vmatprep.subr.bf16.mxu0 0
  %1579 = vmatpush1.bf16.msra.mxu0 0
  %1580 = vmatprep.subr.bf16.mxu0 0
  %1581 = vmatpush1.bf16.msra.mxu0 0
  %1582 = vmatprep.subr.bf16.mxu0 0
  %1583 = vmatpush1.bf16.msra.mxu0 0
  %1584 = vmatprep.subr.bf16.mxu0 0
  %1585 = vmatpush1.bf16.msra.mxu0 %v1568
  %1586 = vmatprep.subr.bf16.mxu0 0
  %1587 = vmatpush1.bf16.msra.mxu0 %v1567
  %1588 = vmatprep.subr.bf16.mxu0 0
  %1589 = vmatpush1.bf16.msra.mxu0 %v1566
  %1590 = vmatprep.subr.bf16.mxu0 0
  %1591 = vmatpush1.bf16.msra.mxu0 %v1565
  %1592 = vmatprep.subr.bf16.mxu0 0
  %1593 = vmatpush2.bf16.msra.mxu0 0
  %1594 = vmatprep.subr.bf16.mxu0 0
  %1595 = vmatpush2.bf16.msra.mxu0 0
  %1596 = vmatprep.subr.bf16.mxu0 0
  %1597 = vmatpush2.bf16.msra.mxu0 0
  %1598 = vmatprep.subr.bf16.mxu0 0
  %1599 = vmatpush2.bf16.msra.mxu0 0
  %1600 = vmatprep.subr.bf16.mxu0 0
  %1601 = vmatpush2.bf16.msra.mxu0 0
  %1602 = vmatprep.subr.bf16.mxu0 0
  %1603 = vmatpush2.bf16.msra.mxu0 0
  %1604 = vmatprep.subr.bf16.mxu0 0
  %1605 = vmatpush2.bf16.msra.mxu0 0
  %1606 = vmatprep.subr.bf16.mxu0 0
  %1607 = vmatpush2.bf16.msra.mxu0 0
  %1608 = vmatprep.mubr.bf16.mxu0 0
  %1609 = vmatmul.mubr.bf16.gmra.mxu0 %v1574
  %v1610 = vpop.f32.mrf.mxu0
  %v1611 = vadd.f32 0.0, %v1610
  %v1612 = vpop.f32.mrf.mxu0
  %v1613 = vpop.f32.mrf.mxu0
  %v1614 = vpop.f32.mrf.mxu0
  %1615 = vdwg.mxu0
  %v1616 = vadd.f32 %v1427, %v1611
  %v1617 = vld [vmem:[%s0 + $0x1c] sm:$0xf]
  %v1620 = vunpack.c.l.s4 1966171168
  %v1621 = vunpack.c.0.s8 %v1620
  %v1622 = vlaneseq
  %v1623 = vshrl.u32 %v1622, 7
  %v1624 = vsub.s32 %v1621, %v1623
  %v1625 = vrot.slane %v1617, %v1624
  %v1626 = vcombine.high %v1625, %v1625
  %v1628 = vunpack.c.l.s4 1966171168
  %v1629 = vunpack.c.0.s8 %v1628
  %v1630 = vlaneseq
  %v1631 = vshrl.u32 %v1630, 7
  %v1632 = vsub.s32 %v1629, %v1631
  %v1633 = vrot.slane %v1625, %v1632
  %v1635 = vunpack.c.l.s4 1966171168
  %v1636 = vunpack.c.0.s8 %v1635
  %v1637 = vlaneseq
  %v1638 = vshrl.u32 %v1637, 7
  %v1639 = vsub.s32 %v1636, %v1638
  %v1640 = vrot.slane %v1626, %v1639
  %v1641 = vcombine.high %v1633, %v1633
  %v1642 = vcombine.high %v1640, %v1640
  %1647 = vmatprep.subr.bf16.mxu0 0
  %1648 = vmatpush1.bf16.msra.mxu0 %v269
  %1649 = vmatprep.subr.bf16.mxu0 0
  %1650 = vmatpush1.bf16.msra.mxu0 %v268
  %1651 = vmatprep.subr.bf16.mxu0 0
  %1652 = vmatpush1.bf16.msra.mxu0 %v267
  %1653 = vmatprep.subr.bf16.mxu0 0
  %1654 = vmatpush1.bf16.msra.mxu0 %v266
  %1655 = vmatprep.subr.bf16.mxu0 0
  %1656 = vmatpush1.bf16.msra.mxu0 %v265
  %1657 = vmatprep.subr.bf16.mxu0 0
  %1658 = vmatpush1.bf16.msra.mxu0 %v264
  %1659 = vmatprep.subr.bf16.mxu0 0
  %1660 = vmatpush1.bf16.msra.mxu0 %v263
  %1661 = vmatprep.subr.bf16.mxu0 0
  %1662 = vmatpush1.bf16.msra.mxu0 %v262
  %1663 = vmatprep.subr.bf16.mxu0 0
  %1664 = vmatpush2.bf16.msra.mxu0 %v277
  %1665 = vmatprep.subr.bf16.mxu0 0
  %1666 = vmatpush2.bf16.msra.mxu0 %v276
  %1667 = vmatprep.subr.bf16.mxu0 0
  %1668 = vmatpush2.bf16.msra.mxu0 %v275
  %1669 = vmatprep.subr.bf16.mxu0 0
  %1670 = vmatpush2.bf16.msra.mxu0 %v274
  %1671 = vmatprep.subr.bf16.mxu0 0
  %1672 = vmatpush2.bf16.msra.mxu0 %v273
  %1673 = vmatprep.subr.bf16.mxu0 0
  %1674 = vmatpush2.bf16.msra.mxu0 %v272
  %1675 = vmatprep.subr.bf16.mxu0 0
  %1676 = vmatpush2.bf16.msra.mxu0 %v271
  %1677 = vmatprep.subr.bf16.mxu0 0
  %1678 = vmatpush2.bf16.msra.mxu0 %v270
  %1679 = vmatprep.mubr.bf16.mxu0 %v1640
  %1680 = vmatmul.mubr.bf16.gmra.mxu0 %v1633
  %v1681 = vpop.f32.mrf.mxu0
  %v1682 = vadd.f32 %v103, %v1681
  %v1683 = vpop.f32.mrf.mxu0
  %v1684 = vpop.f32.mrf.mxu0
  %v1685 = vpop.f32.mrf.mxu0
  %1686 = vdwg.mxu0
  %1687 = vmatprep.subr.bf16.mxu0 0
  %1688 = vmatpush1.bf16.msra.mxu0 %v285
  %1689 = vmatprep.subr.bf16.mxu0 0
  %1690 = vmatpush1.bf16.msra.mxu0 %v284
  %1691 = vmatprep.subr.bf16.mxu0 0
  %1692 = vmatpush1.bf16.msra.mxu0 %v283
  %1693 = vmatprep.subr.bf16.mxu0 0
  %1694 = vmatpush1.bf16.msra.mxu0 %v282
  %1695 = vmatprep.subr.bf16.mxu0 0
  %1696 = vmatpush1.bf16.msra.mxu0 %v281
  %1697 = vmatprep.subr.bf16.mxu0 0
  %1698 = vmatpush1.bf16.msra.mxu0 %v280
  %1699 = vmatprep.subr.bf16.mxu0 0
  %1700 = vmatpush1.bf16.msra.mxu0 %v279
  %1701 = vmatprep.subr.bf16.mxu0 0
  %1702 = vmatpush1.bf16.msra.mxu0 %v278
  %1703 = vmatprep.subr.bf16.mxu0 0
  %1704 = vmatpush2.bf16.msra.mxu0 %v293
  %1705 = vmatprep.subr.bf16.mxu0 0
  %1706 = vmatpush2.bf16.msra.mxu0 %v292
  %1707 = vmatprep.subr.bf16.mxu0 0
  %1708 = vmatpush2.bf16.msra.mxu0 %v291
  %1709 = vmatprep.subr.bf16.mxu0 0
  %1710 = vmatpush2.bf16.msra.mxu0 %v290
  %1711 = vmatprep.subr.bf16.mxu0 0
  %1712 = vmatpush2.bf16.msra.mxu0 %v289
  %1713 = vmatprep.subr.bf16.mxu0 0
  %1714 = vmatpush2.bf16.msra.mxu0 %v288
  %1715 = vmatprep.subr.bf16.mxu0 0
  %1716 = vmatpush2.bf16.msra.mxu0 %v287
  %1717 = vmatprep.subr.bf16.mxu0 0
  %1718 = vmatpush2.bf16.msra.mxu0 %v286
  %1719 = vmatprep.mubr.bf16.mxu0 %v1642
  %1720 = vmatmul.mubr.bf16.gmra.mxu0 %v1641
  %v1721 = vpop.f32.mrf.mxu0
  %v1722 = vadd.f32 %v1682, %v1721
  %v1723 = vpop.f32.mrf.mxu0
  %v1724 = vpop.f32.mrf.mxu0
  %v1725 = vpop.f32.mrf.mxu0
  %1726 = vdwg.mxu0
  %v1727 = vmax.f32 %v1722, 0.0
  %v1728 = vpack.c.bf16 %v1727, %v1727
  %s1729 = scalar_lea.vmem %s3, 224
  %v1730 = vld [vmem:[%s1729] sm:$0xf]
  %v1731 = vld [vmem:[%s1729 + $0x4] sm:$0xf]
  %v1732 = vld [vmem:[%s1729 + $0x8] sm:$0xf]
  %v1733 = vld [vmem:[%s1729 + $0xc] sm:$0xf]
  %v1734 = vld [vmem:[%s1729 + $0x10] sm:$0xf]
  %v1735 = vld [vmem:[%s1729 + $0x14] sm:$0xf]
  %v1736 = vld [vmem:[%s1729 + $0x18] sm:$0xf]
  %v1737 = vld [vmem:[%s1729 + $0x1c] sm:$0xf]
  %v1746 = vunpack.c.l.b16 %v1730
  %v1747 = vunpack.c.l.b16 %v1731
  %v1748 = vunpack.c.l.b16 %v1732
  %v1749 = vunpack.c.l.b16 %v1733
  %v1750 = vunpack.c.l.b16 %v1734
  %v1751 = vunpack.c.l.b16 %v1735
  %v1752 = vunpack.c.l.b16 %v1736
  %v1753 = vunpack.c.l.b16 %v1737
  %v1754 = vpack.c.b16 %v1747, %v1746
  %v1755 = vpack.c.b16 %v1749, %v1748
  %v1756 = vpack.c.b16 %v1751, %v1750
  %v1757 = vpack.c.b16 %v1753, %v1752
  %v1763 = vsel %vm561, %v1728, 0
  %1765 = vmatprep.subr.bf16.mxu0 0
  %1766 = vmatpush1.bf16.msra.mxu0 0
  %1767 = vmatprep.subr.bf16.mxu0 0
  %1768 = vmatpush1.bf16.msra.mxu0 0
  %1769 = vmatprep.subr.bf16.mxu0 0
  %1770 = vmatpush1.bf16.msra.mxu0 0
  %1771 = vmatprep.subr.bf16.mxu0 0
  %1772 = vmatpush1.bf16.msra.mxu0 0
  %1773 = vmatprep.subr.bf16.mxu0 0
  %1774 = vmatpush1.bf16.msra.mxu0 %v1757
  %1775 = vmatprep.subr.bf16.mxu0 0
  %1776 = vmatpush1.bf16.msra.mxu0 %v1756
  %1777 = vmatprep.subr.bf16.mxu0 0
  %1778 = vmatpush1.bf16.msra.mxu0 %v1755
  %1779 = vmatprep.subr.bf16.mxu0 0
  %1780 = vmatpush1.bf16.msra.mxu0 %v1754
  %1781 = vmatprep.subr.bf16.mxu0 0
  %1782 = vmatpush2.bf16.msra.mxu0 0
  %1783 = vmatprep.subr.bf16.mxu0 0
  %1784 = vmatpush2.bf16.msra.mxu0 0
  %1785 = vmatprep.subr.bf16.mxu0 0
  %1786 = vmatpush2.bf16.msra.mxu0 0
  %1787 = vmatprep.subr.bf16.mxu0 0
  %1788 = vmatpush2.bf16.msra.mxu0 0
  %1789 = vmatprep.subr.bf16.mxu0 0
  %1790 = vmatpush2.bf16.msra.mxu0 0
  %1791 = vmatprep.subr.bf16.mxu0 0
  %1792 = vmatpush2.bf16.msra.mxu0 0
  %1793 = vmatprep.subr.bf16.mxu0 0
  %1794 = vmatpush2.bf16.msra.mxu0 0
  %1795 = vmatprep.subr.bf16.mxu0 0
  %1796 = vmatpush2.bf16.msra.mxu0 0
  %1797 = vmatprep.mubr.bf16.mxu0 0
  %1798 = vmatmul.mubr.bf16.gmra.mxu0 %v1763
  %v1799 = vpop.f32.mrf.mxu0
  %v1800 = vadd.f32 0.0, %v1799
  %v1801 = vpop.f32.mrf.mxu0
  %v1802 = vpop.f32.mrf.mxu0
  %v1803 = vpop.f32.mrf.mxu0
  %1804 = vdwg.mxu0
  %v1805 = vadd.f32 %v1616, %v1800
  %v1806 = vld [vmem:[%s0 + $0x20] sm:$0xf]
  %v1809 = vunpack.c.l.s4 1966171168
  %v1810 = vunpack.c.0.s8 %v1809
  %v1811 = vlaneseq
  %v1812 = vshrl.u32 %v1811, 7
  %v1813 = vsub.s32 %v1810, %v1812
  %v1814 = vrot.slane %v1806, %v1813
  %v1815 = vcombine.high %v1814, %v1814
  %v1817 = vunpack.c.l.s4 1966171168
  %v1818 = vunpack.c.0.s8 %v1817
  %v1819 = vlaneseq
  %v1820 = vshrl.u32 %v1819, 7
  %v1821 = vsub.s32 %v1818, %v1820
  %v1822 = vrot.slane %v1814, %v1821
  %v1824 = vunpack.c.l.s4 1966171168
  %v1825 = vunpack.c.0.s8 %v1824
  %v1826 = vlaneseq
  %v1827 = vshrl.u32 %v1826, 7
  %v1828 = vsub.s32 %v1825, %v1827
  %v1829 = vrot.slane %v1815, %v1828
  %v1830 = vcombine.high %v1822, %v1822
  %v1831 = vcombine.high %v1829, %v1829
  %1836 = vmatprep.subr.bf16.mxu0 0
  %1837 = vmatpush1.bf16.msra.mxu0 %v269
  %1838 = vmatprep.subr.bf16.mxu0 0
  %1839 = vmatpush1.bf16.msra.mxu0 %v268
  %1840 = vmatprep.subr.bf16.mxu0 0
  %1841 = vmatpush1.bf16.msra.mxu0 %v267
  %1842 = vmatprep.subr.bf16.mxu0 0
  %1843 = vmatpush1.bf16.msra.mxu0 %v266
  %1844 = vmatprep.subr.bf16.mxu0 0
  %1845 = vmatpush1.bf16.msra.mxu0 %v265
  %1846 = vmatprep.subr.bf16.mxu0 0
  %1847 = vmatpush1.bf16.msra.mxu0 %v264
  %1848 = vmatprep.subr.bf16.mxu0 0
  %1849 = vmatpush1.bf16.msra.mxu0 %v263
  %1850 = vmatprep.subr.bf16.mxu0 0
  %1851 = vmatpush1.bf16.msra.mxu0 %v262
  %1852 = vmatprep.subr.bf16.mxu0 0
  %1853 = vmatpush2.bf16.msra.mxu0 %v277
  %1854 = vmatprep.subr.bf16.mxu0 0
  %1855 = vmatpush2.bf16.msra.mxu0 %v276
  %1856 = vmatprep.subr.bf16.mxu0 0
  %1857 = vmatpush2.bf16.msra.mxu0 %v275
  %1858 = vmatprep.subr.bf16.mxu0 0
  %1859 = vmatpush2.bf16.msra.mxu0 %v274
  %1860 = vmatprep.subr.bf16.mxu0 0
  %1861 = vmatpush2.bf16.msra.mxu0 %v273
  %1862 = vmatprep.subr.bf16.mxu0 0
  %1863 = vmatpush2.bf16.msra.mxu0 %v272
  %1864 = vmatprep.subr.bf16.mxu0 0
  %1865 = vmatpush2.bf16.msra.mxu0 %v271
  %1866 = vmatprep.subr.bf16.mxu0 0
  %1867 = vmatpush2.bf16.msra.mxu0 %v270
  %1868 = vmatprep.mubr.bf16.mxu0 %v1829
  %1869 = vmatmul.mubr.bf16.gmra.mxu0 %v1822
  %v1870 = vpop.f32.mrf.mxu0
  %v1871 = vadd.f32 %v103, %v1870
  %v1872 = vpop.f32.mrf.mxu0
  %v1873 = vpop.f32.mrf.mxu0
  %v1874 = vpop.f32.mrf.mxu0
  %1875 = vdwg.mxu0
  %1876 = vmatprep.subr.bf16.mxu0 0
  %1877 = vmatpush1.bf16.msra.mxu0 %v285
  %1878 = vmatprep.subr.bf16.mxu0 0
  %1879 = vmatpush1.bf16.msra.mxu0 %v284
  %1880 = vmatprep.subr.bf16.mxu0 0
  %1881 = vmatpush1.bf16.msra.mxu0 %v283
  %1882 = vmatprep.subr.bf16.mxu0 0
  %1883 = vmatpush1.bf16.msra.mxu0 %v282
  %1884 = vmatprep.subr.bf16.mxu0 0
  %1885 = vmatpush1.bf16.msra.mxu0 %v281
  %1886 = vmatprep.subr.bf16.mxu0 0
  %1887 = vmatpush1.bf16.msra.mxu0 %v280
  %1888 = vmatprep.subr.bf16.mxu0 0
  %1889 = vmatpush1.bf16.msra.mxu0 %v279
  %1890 = vmatprep.subr.bf16.mxu0 0
  %1891 = vmatpush1.bf16.msra.mxu0 %v278
  %1892 = vmatprep.subr.bf16.mxu0 0
  %1893 = vmatpush2.bf16.msra.mxu0 %v293
  %1894 = vmatprep.subr.bf16.mxu0 0
  %1895 = vmatpush2.bf16.msra.mxu0 %v292
  %1896 = vmatprep.subr.bf16.mxu0 0
  %1897 = vmatpush2.bf16.msra.mxu0 %v291
  %1898 = vmatprep.subr.bf16.mxu0 0
  %1899 = vmatpush2.bf16.msra.mxu0 %v290
  %1900 = vmatprep.subr.bf16.mxu0 0
  %1901 = vmatpush2.bf16.msra.mxu0 %v289
  %1902 = vmatprep.subr.bf16.mxu0 0
  %1903 = vmatpush2.bf16.msra.mxu0 %v288
  %1904 = vmatprep.subr.bf16.mxu0 0
  %1905 = vmatpush2.bf16.msra.mxu0 %v287
  %1906 = vmatprep.subr.bf16.mxu0 0
  %1907 = vmatpush2.bf16.msra.mxu0 %v286
  %1908 = vmatprep.mubr.bf16.mxu0 %v1831
  %1909 = vmatmul.mubr.bf16.gmra.mxu0 %v1830
  %v1910 = vpop.f32.mrf.mxu0
  %v1911 = vadd.f32 %v1871, %v1910
  %v1912 = vpop.f32.mrf.mxu0
  %v1913 = vpop.f32.mrf.mxu0
  %v1914 = vpop.f32.mrf.mxu0
  %1915 = vdwg.mxu0
  %v1916 = vmax.f32 %v1911, 0.0
  %v1917 = vpack.c.bf16 %v1916, %v1916
  %s1918 = scalar_lea.vmem %s3, 256
  %v1919 = vld [vmem:[%s1918] sm:$0xf]
  %v1920 = vld [vmem:[%s1918 + $0x4] sm:$0xf]
  %v1921 = vld [vmem:[%s1918 + $0x8] sm:$0xf]
  %v1922 = vld [vmem:[%s1918 + $0xc] sm:$0xf]
  %v1923 = vld [vmem:[%s1918 + $0x10] sm:$0xf]
  %v1924 = vld [vmem:[%s1918 + $0x14] sm:$0xf]
  %v1925 = vld [vmem:[%s1918 + $0x18] sm:$0xf]
  %v1926 = vld [vmem:[%s1918 + $0x1c] sm:$0xf]
  %v1935 = vunpack.c.l.b16 %v1919
  %v1936 = vunpack.c.l.b16 %v1920
  %v1937 = vunpack.c.l.b16 %v1921
  %v1938 = vunpack.c.l.b16 %v1922
  %v1939 = vunpack.c.l.b16 %v1923
  %v1940 = vunpack.c.l.b16 %v1924
  %v1941 = vunpack.c.l.b16 %v1925
  %v1942 = vunpack.c.l.b16 %v1926
  %v1943 = vpack.c.b16 %v1936, %v1935
  %v1944 = vpack.c.b16 %v1938, %v1937
  %v1945 = vpack.c.b16 %v1940, %v1939
  %v1946 = vpack.c.b16 %v1942, %v1941
  %v1952 = vsel %vm561, %v1917, 0
  %1954 = vmatprep.subr.bf16.mxu0 0
  %1955 = vmatpush1.bf16.msra.mxu0 0
  %1956 = vmatprep.subr.bf16.mxu0 0
  %1957 = vmatpush1.bf16.msra.mxu0 0
  %1958 = vmatprep.subr.bf16.mxu0 0
  %1959 = vmatpush1.bf16.msra.mxu0 0
  %1960 = vmatprep.subr.bf16.mxu0 0
  %1961 = vmatpush1.bf16.msra.mxu0 0
  %1962 = vmatprep.subr.bf16.mxu0 0
  %1963 = vmatpush1.bf16.msra.mxu0 %v1946
  %1964 = vmatprep.subr.bf16.mxu0 0
  %1965 = vmatpush1.bf16.msra.mxu0 %v1945
  %1966 = vmatprep.subr.bf16.mxu0 0
  %1967 = vmatpush1.bf16.msra.mxu0 %v1944
  %1968 = vmatprep.subr.bf16.mxu0 0
  %1969 = vmatpush1.bf16.msra.mxu0 %v1943
  %1970 = vmatprep.subr.bf16.mxu0 0
  %1971 = vmatpush2.bf16.msra.mxu0 0
  %1972 = vmatprep.subr.bf16.mxu0 0
  %1973 = vmatpush2.bf16.msra.mxu0 0
  %1974 = vmatprep.subr.bf16.mxu0 0
  %1975 = vmatpush2.bf16.msra.mxu0 0
  %1976 = vmatprep.subr.bf16.mxu0 0
  %1977 = vmatpush2.bf16.msra.mxu0 0
  %1978 = vmatprep.subr.bf16.mxu0 0
  %1979 = vmatpush2.bf16.msra.mxu0 0
  %1980 = vmatprep.subr.bf16.mxu0 0
  %1981 = vmatpush2.bf16.msra.mxu0 0
  %1982 = vmatprep.subr.bf16.mxu0 0
  %1983 = vmatpush2.bf16.msra.mxu0 0
  %1984 = vmatprep.subr.bf16.mxu0 0
  %1985 = vmatpush2.bf16.msra.mxu0 0
  %1986 = vmatprep.mubr.bf16.mxu0 0
  %1987 = vmatmul.mubr.bf16.gmra.mxu0 %v1952
  %v1988 = vpop.f32.mrf.mxu0
  %v1989 = vadd.f32 0.0, %v1988
  %v1990 = vpop.f32.mrf.mxu0
  %v1991 = vpop.f32.mrf.mxu0
  %v1992 = vpop.f32.mrf.mxu0
  %1993 = vdwg.mxu0
  %v1994 = vadd.f32 %v1805, %v1989
  %v1995 = vld [vmem:[%s4] sm:$0x1]
  %v1997 = vlaneseq
  %v1998 = vshrl.u32 %v1997, 7
  %v1999 = vsub.s32 0, %v1998
  %v2000 = vrot.slane %v1995, %v1999
  %v2002 = vadd.f32 %v1994, %v2000
  %v2003 = vmax.f32 %v2002, 0.0
  %v2004 = vpack.c.bf16 %v2003, %v2003
  %v2005 = vld [vmem:[%s5] sm:$0xff]
  %v2006 = vld [vmem:[%s5 + $0x8] sm:$0xff]
  %v2007 = vld [vmem:[%s5 + $0x10] sm:$0xff]
  %v2008 = vld [vmem:[%s5 + $0x18] sm:$0xff]
  %v2009 = vld [vmem:[%s5 + $0x20] sm:$0xff]
  %v2010 = vld [vmem:[%s5 + $0x28] sm:$0xff]
  %v2011 = vld [vmem:[%s5 + $0x30] sm:$0xff]
  %v2012 = vld [vmem:[%s5 + $0x38] sm:$0xff]
  %v2013 = vld [vmem:[%s5 + $0x40] sm:$0xff]
  %v2014 = vld [vmem:[%s5 + $0x48] sm:$0xff]
  %v2015 = vld [vmem:[%s5 + $0x50] sm:$0xff]
  %v2016 = vld [vmem:[%s5 + $0x58] sm:$0xff]
  %v2017 = vld [vmem:[%s5 + $0x60] sm:$0xff]
  %v2018 = vld [vmem:[%s5 + $0x68] sm:$0xff]
  %v2019 = vld [vmem:[%s5 + $0x70] sm:$0xff]
  %v2020 = vld [vmem:[%s5 + $0x78] sm:$0xff]
  %v2021 = vld [vmem:[%s6] sm:$0xf]
  %v2023 = vlaneseq
  %v2024 = vshrl.u32 %v2023, 7
  %v2025 = vsub.s32 0, %v2024
  %v2026 = vrot.slane %v2021, %v2025
  %v2027 = vlaneseq
  %v2028 = vshrl.u32 %v2027, 7
  %v2029 = vsub.s32 1, %v2028
  %v2030 = vrot.slane %v2021, %v2029
  %v2031 = vlaneseq
  %v2032 = vshrl.u32 %v2031, 7
  %v2033 = vsub.s32 2, %v2032
  %v2034 = vrot.slane %v2021, %v2033
  %v2035 = vlaneseq
  %v2036 = vshrl.u32 %v2035, 7
  %v2037 = vsub.s32 3, %v2036
  %v2038 = vrot.slane %v2021, %v2037
  %v2059 = vunpack.c.l.b16 %v2005
  %v2060 = vunpack.c.h.b16 %v2005
  %v2061 = vunpack.c.l.b16 %v2006
  %v2062 = vunpack.c.h.b16 %v2006
  %v2063 = vunpack.c.l.b16 %v2007
  %v2064 = vunpack.c.h.b16 %v2007
  %v2065 = vunpack.c.l.b16 %v2008
  %v2066 = vunpack.c.h.b16 %v2008
  %v2067 = vunpack.c.l.b16 %v2009
  %v2068 = vunpack.c.h.b16 %v2009
  %v2069 = vunpack.c.l.b16 %v2010
  %v2070 = vunpack.c.h.b16 %v2010
  %v2071 = vunpack.c.l.b16 %v2011
  %v2072 = vunpack.c.h.b16 %v2011
  %v2073 = vunpack.c.l.b16 %v2012
  %v2074 = vunpack.c.h.b16 %v2012
  %v2075 = vunpack.c.l.b16 %v2013
  %v2076 = vunpack.c.h.b16 %v2013
  %v2077 = vunpack.c.l.b16 %v2014
  %v2078 = vunpack.c.h.b16 %v2014
  %v2079 = vunpack.c.l.b16 %v2015
  %v2080 = vunpack.c.h.b16 %v2015
  %v2081 = vunpack.c.l.b16 %v2016
  %v2082 = vunpack.c.h.b16 %v2016
  %v2083 = vunpack.c.l.b16 %v2017
  %v2084 = vunpack.c.h.b16 %v2017
  %v2085 = vunpack.c.l.b16 %v2018
  %v2086 = vunpack.c.h.b16 %v2018
  %v2087 = vunpack.c.l.b16 %v2019
  %v2088 = vunpack.c.h.b16 %v2019
  %v2089 = vunpack.c.l.b16 %v2020
  %v2090 = vunpack.c.h.b16 %v2020
  %v2091 = vpack.c.b16 %v2063, %v2059
  %v2092 = vpack.c.b16 %v2064, %v2060
  %v2093 = vpack.c.b16 %v2065, %v2061
  %v2094 = vpack.c.b16 %v2066, %v2062
  %v2095 = vpack.c.b16 %v2071, %v2067
  %v2096 = vpack.c.b16 %v2072, %v2068
  %v2097 = vpack.c.b16 %v2073, %v2069
  %v2098 = vpack.c.b16 %v2074, %v2070
  %v2099 = vpack.c.b16 %v2079, %v2075
  %v2100 = vpack.c.b16 %v2080, %v2076
  %v2101 = vpack.c.b16 %v2081, %v2077
  %v2102 = vpack.c.b16 %v2082, %v2078
  %v2103 = vpack.c.b16 %v2087, %v2083
  %v2104 = vpack.c.b16 %v2088, %v2084
  %v2105 = vpack.c.b16 %v2089, %v2085
  %v2106 = vpack.c.b16 %v2090, %v2086
  %v2124 = vsel %vm561, %v2004, 0
  %2126 = vmatprep.subr.bf16.mxu0 0
  %2127 = vmatpush1.bf16.msra.mxu0 0
  %2128 = vmatprep.subr.bf16.mxu0 0
  %2129 = vmatpush1.bf16.msra.mxu0 0
  %2130 = vmatprep.subr.bf16.mxu0 0
  %2131 = vmatpush1.bf16.msra.mxu0 0
  %2132 = vmatprep.subr.bf16.mxu0 0
  %2133 = vmatpush1.bf16.msra.mxu0 0
  %2134 = vmatprep.subr.bf16.mxu0 %v2104
  %2135 = vmatpush1.bf16.msra.mxu0 %v2103
  %2136 = vmatprep.subr.bf16.mxu0 %v2100
  %2137 = vmatpush1.bf16.msra.mxu0 %v2099
  %2138 = vmatprep.subr.bf16.mxu0 %v2096
  %2139 = vmatpush1.bf16.msra.mxu0 %v2095
  %2140 = vmatprep.subr.bf16.mxu0 %v2092
  %2141 = vmatpush1.bf16.msra.mxu0 %v2091
  %2142 = vmatprep.subr.bf16.mxu0 0
  %2143 = vmatpush2.bf16.msra.mxu0 0
  %2144 = vmatprep.subr.bf16.mxu0 0
  %2145 = vmatpush2.bf16.msra.mxu0 0
  %2146 = vmatprep.subr.bf16.mxu0 0
  %2147 = vmatpush2.bf16.msra.mxu0 0
  %2148 = vmatprep.subr.bf16.mxu0 0
  %2149 = vmatpush2.bf16.msra.mxu0 0
  %2150 = vmatprep.subr.bf16.mxu0 0
  %2151 = vmatpush2.bf16.msra.mxu0 0
  %2152 = vmatprep.subr.bf16.mxu0 0
  %2153 = vmatpush2.bf16.msra.mxu0 0
  %2154 = vmatprep.subr.bf16.mxu0 0
  %2155 = vmatpush2.bf16.msra.mxu0 0
  %2156 = vmatprep.subr.bf16.mxu0 0
  %2157 = vmatpush2.bf16.msra.mxu0 0
  %2158 = vmatprep.mubr.bf16.mxu0 0
  %2159 = vmatmul.mubr.bf16.gmra.mxu0 %v2124
  %v2160 = vpop.f32.mrf.mxu0
  %v2161 = vadd.f32 %v2026, %v2160
  %v2162 = vpop.f32.mrf.mxu0
  %v2163 = vadd.f32 %v2030, %v2162
  %v2164 = vpop.f32.mrf.mxu0
  %v2165 = vpop.f32.mrf.mxu0
  %2166 = vdwg.mxu0
  %2167 = vmatprep.subr.bf16.mxu0 0
  %2168 = vmatpush1.bf16.msra.mxu0 0
  %2169 = vmatprep.subr.bf16.mxu0 0
  %2170 = vmatpush1.bf16.msra.mxu0 0
  %2171 = vmatprep.subr.bf16.mxu0 0
  %2172 = vmatpush1.bf16.msra.mxu0 0
  %2173 = vmatprep.subr.bf16.mxu0 0
  %2174 = vmatpush1.bf16.msra.mxu0 0
  %2175 = vmatprep.subr.bf16.mxu0 %v2106
  %2176 = vmatpush1.bf16.msra.mxu0 %v2105
  %2177 = vmatprep.subr.bf16.mxu0 %v2102
  %2178 = vmatpush1.bf16.msra.mxu0 %v2101
  %2179 = vmatprep.subr.bf16.mxu0 %v2098
  %2180 = vmatpush1.bf16.msra.mxu0 %v2097
  %2181 = vmatprep.subr.bf16.mxu0 %v2094
  %2182 = vmatpush1.bf16.msra.mxu0 %v2093
  %2183 = vmatprep.subr.bf16.mxu0 0
  %2184 = vmatpush2.bf16.msra.mxu0 0
  %2185 = vmatprep.subr.bf16.mxu0 0
  %2186 = vmatpush2.bf16.msra.mxu0 0
  %2187 = vmatprep.subr.bf16.mxu0 0
  %2188 = vmatpush2.bf16.msra.mxu0 0
  %2189 = vmatprep.subr.bf16.mxu0 0
  %2190 = vmatpush2.bf16.msra.mxu0 0
  %2191 = vmatprep.subr.bf16.mxu0 0
  %2192 = vmatpush2.bf16.msra.mxu0 0
  %2193 = vmatprep.subr.bf16.mxu0 0
  %2194 = vmatpush2.bf16.msra.mxu0 0
  %2195 = vmatprep.subr.bf16.mxu0 0
  %2196 = vmatpush2.bf16.msra.mxu0 0
  %2197 = vmatprep.subr.bf16.mxu0 0
  %2198 = vmatpush2.bf16.msra.mxu0 0
  %2199 = vmatprep.mubr.bf16.mxu0 0
  %2200 = vmatmul.mubr.bf16.gmra.mxu0 %v2124
  %v2201 = vpop.f32.mrf.mxu0
  %v2202 = vadd.f32 %v2034, %v2201
  %v2203 = vpop.f32.mrf.mxu0
  %v2204 = vadd.f32 %v2038, %v2203
  %v2205 = vpop.f32.mrf.mxu0
  %v2206 = vpop.f32.mrf.mxu0
  %2207 = vdwg.mxu0
  %v2208 = vmax.f32 %v2161, 0.0
  %v2209 = vmax.f32 %v2163, 0.0
  %v2210 = vmax.f32 %v2202, 0.0
  %v2211 = vmax.f32 %v2204, 0.0
  %v2212 = vpack.c.bf16 %v2208, %v2208
  %v2213 = vpack.c.bf16 %v2209, %v2209
  %v2214 = vpack.c.bf16 %v2210, %v2210
  %v2215 = vpack.c.bf16 %v2211, %v2211
  %v2216 = vld [vmem:[%s7] sm:$0xf]
  %v2217 = vld [vmem:[%s7 + $0x4] sm:$0xf]
  %v2218 = vld [vmem:[%s7 + $0x8] sm:$0xf]
  %v2219 = vld [vmem:[%s7 + $0xc] sm:$0xf]
  %v2220 = vld [vmem:[%s7 + $0x10] sm:$0xf]
  %v2221 = vld [vmem:[%s7 + $0x14] sm:$0xf]
  %v2222 = vld [vmem:[%s7 + $0x18] sm:$0xf]
  %v2223 = vld [vmem:[%s7 + $0x1c] sm:$0xf]
  %v2224 = vld [vmem:[%s7 + $0x20] sm:$0xf]
  %v2225 = vld [vmem:[%s7 + $0x24] sm:$0xf]
  %v2226 = vld [vmem:[%s7 + $0x28] sm:$0xf]
  %v2227 = vld [vmem:[%s7 + $0x2c] sm:$0xf]
  %v2228 = vld [vmem:[%s7 + $0x30] sm:$0xf]
  %v2229 = vld [vmem:[%s7 + $0x34] sm:$0xf]
  %v2230 = vld [vmem:[%s7 + $0x38] sm:$0xf]
  %v2231 = vld [vmem:[%s7 + $0x3c] sm:$0xf]
  %v2232 = vld [vmem:[%s7 + $0x40] sm:$0xf]
  %v2233 = vld [vmem:[%s7 + $0x44] sm:$0xf]
  %v2234 = vld [vmem:[%s7 + $0x48] sm:$0xf]
  %v2235 = vld [vmem:[%s7 + $0x4c] sm:$0xf]
  %v2236 = vld [vmem:[%s7 + $0x50] sm:$0xf]
  %v2237 = vld [vmem:[%s7 + $0x54] sm:$0xf]
  %v2238 = vld [vmem:[%s7 + $0x58] sm:$0xf]
  %v2239 = vld [vmem:[%s7 + $0x5c] sm:$0xf]
  %v2240 = vld [vmem:[%s7 + $0x60] sm:$0xf]
  %v2241 = vld [vmem:[%s7 + $0x64] sm:$0xf]
  %v2242 = vld [vmem:[%s7 + $0x68] sm:$0xf]
  %v2243 = vld [vmem:[%s7 + $0x6c] sm:$0xf]
  %v2244 = vld [vmem:[%s7 + $0x70] sm:$0xf]
  %v2245 = vld [vmem:[%s7 + $0x74] sm:$0xf]
  %v2246 = vld [vmem:[%s7 + $0x78] sm:$0xf]
  %v2247 = vld [vmem:[%s7 + $0x7c] sm:$0xf]
  %v2248 = vld [vmem:[%s7 + $0x80] sm:$0xf]
  %v2249 = vld [vmem:[%s7 + $0x84] sm:$0xf]
  %v2250 = vld [vmem:[%s7 + $0x88] sm:$0xf]
  %v2251 = vld [vmem:[%s7 + $0x8c] sm:$0xf]
  %v2252 = vld [vmem:[%s7 + $0x90] sm:$0xf]
  %v2253 = vld [vmem:[%s7 + $0x94] sm:$0xf]
  %v2254 = vld [vmem:[%s7 + $0x98] sm:$0xf]
  %v2255 = vld [vmem:[%s7 + $0x9c] sm:$0xf]
  %v2256 = vld [vmem:[%s7 + $0xa0] sm:$0xf]
  %v2257 = vld [vmem:[%s7 + $0xa4] sm:$0xf]
  %v2258 = vld [vmem:[%s7 + $0xa8] sm:$0xf]
  %v2259 = vld [vmem:[%s7 + $0xac] sm:$0xf]
  %v2260 = vld [vmem:[%s7 + $0xb0] sm:$0xf]
  %v2261 = vld [vmem:[%s7 + $0xb4] sm:$0xf]
  %v2262 = vld [vmem:[%s7 + $0xb8] sm:$0xf]
  %v2263 = vld [vmem:[%s7 + $0xbc] sm:$0xf]
  %v2264 = vld [vmem:[%s7 + $0xc0] sm:$0xf]
  %v2265 = vld [vmem:[%s7 + $0xc4] sm:$0xf]
  %v2266 = vld [vmem:[%s7 + $0xc8] sm:$0xf]
  %v2267 = vld [vmem:[%s7 + $0xcc] sm:$0xf]
  %v2268 = vld [vmem:[%s7 + $0xd0] sm:$0xf]
  %v2269 = vld [vmem:[%s7 + $0xd4] sm:$0xf]
  %v2270 = vld [vmem:[%s7 + $0xd8] sm:$0xf]
  %v2271 = vld [vmem:[%s7 + $0xdc] sm:$0xf]
  %v2272 = vld [vmem:[%s7 + $0xe0] sm:$0xf]
  %v2273 = vld [vmem:[%s7 + $0xe4] sm:$0xf]
  %v2274 = vld [vmem:[%s7 + $0xe8] sm:$0xf]
  %v2275 = vld [vmem:[%s7 + $0xec] sm:$0xf]
  %v2276 = vld [vmem:[%s7 + $0xf0] sm:$0xf]
  %v2277 = vld [vmem:[%s7 + $0xf4] sm:$0xf]
  %v2278 = vld [vmem:[%s7 + $0xf8] sm:$0xf]
  %v2279 = vld [vmem:[%s7 + $0xfc] sm:$0xf]
  %v2280 = vld [vmem:[%s8] sm:$0x1]
  %v2282 = vlaneseq
  %v2283 = vshrl.u32 %v2282, 7
  %v2284 = vsub.s32 0, %v2283
  %v2285 = vrot.slane %v2280, %v2284
  %v2351 = vunpack.c.l.b16 %v2216
  %v2352 = vunpack.c.l.b16 %v2217
  %v2353 = vunpack.c.l.b16 %v2218
  %v2354 = vunpack.c.l.b16 %v2219
  %v2355 = vunpack.c.l.b16 %v2220
  %v2356 = vunpack.c.l.b16 %v2221
  %v2357 = vunpack.c.l.b16 %v2222
  %v2358 = vunpack.c.l.b16 %v2223
  %v2359 = vunpack.c.l.b16 %v2224
  %v2360 = vunpack.c.l.b16 %v2225
  %v2361 = vunpack.c.l.b16 %v2226
  %v2362 = vunpack.c.l.b16 %v2227
  %v2363 = vunpack.c.l.b16 %v2228
  %v2364 = vunpack.c.l.b16 %v2229
  %v2365 = vunpack.c.l.b16 %v2230
  %v2366 = vunpack.c.l.b16 %v2231
  %v2367 = vunpack.c.l.b16 %v2232
  %v2368 = vunpack.c.l.b16 %v2233
  %v2369 = vunpack.c.l.b16 %v2234
  %v2370 = vunpack.c.l.b16 %v2235
  %v2371 = vunpack.c.l.b16 %v2236
  %v2372 = vunpack.c.l.b16 %v2237
  %v2373 = vunpack.c.l.b16 %v2238
  %v2374 = vunpack.c.l.b16 %v2239
  %v2375 = vunpack.c.l.b16 %v2240
  %v2376 = vunpack.c.l.b16 %v2241
  %v2377 = vunpack.c.l.b16 %v2242
  %v2378 = vunpack.c.l.b16 %v2243
  %v2379 = vunpack.c.l.b16 %v2244
  %v2380 = vunpack.c.l.b16 %v2245
  %v2381 = vunpack.c.l.b16 %v2246
  %v2382 = vunpack.c.l.b16 %v2247
  %v2383 = vunpack.c.l.b16 %v2248
  %v2384 = vunpack.c.l.b16 %v2249
  %v2385 = vunpack.c.l.b16 %v2250
  %v2386 = vunpack.c.l.b16 %v2251
  %v2387 = vunpack.c.l.b16 %v2252
  %v2388 = vunpack.c.l.b16 %v2253
  %v2389 = vunpack.c.l.b16 %v2254
  %v2390 = vunpack.c.l.b16 %v2255
  %v2391 = vunpack.c.l.b16 %v2256
  %v2392 = vunpack.c.l.b16 %v2257
  %v2393 = vunpack.c.l.b16 %v2258
  %v2394 = vunpack.c.l.b16 %v2259
  %v2395 = vunpack.c.l.b16 %v2260
  %v2396 = vunpack.c.l.b16 %v2261
  %v2397 = vunpack.c.l.b16 %v2262
  %v2398 = vunpack.c.l.b16 %v2263
  %v2399 = vunpack.c.l.b16 %v2264
  %v2400 = vunpack.c.l.b16 %v2265
  %v2401 = vunpack.c.l.b16 %v2266
  %v2402 = vunpack.c.l.b16 %v2267
  %v2403 = vunpack.c.l.b16 %v2268
  %v2404 = vunpack.c.l.b16 %v2269
  %v2405 = vunpack.c.l.b16 %v2270
  %v2406 = vunpack.c.l.b16 %v2271
  %v2407 = vunpack.c.l.b16 %v2272
  %v2408 = vunpack.c.l.b16 %v2273
  %v2409 = vunpack.c.l.b16 %v2274
  %v2410 = vunpack.c.l.b16 %v2275
  %v2411 = vunpack.c.l.b16 %v2276
  %v2412 = vunpack.c.l.b16 %v2277
  %v2413 = vunpack.c.l.b16 %v2278
  %v2414 = vunpack.c.l.b16 %v2279
  %v2415 = vpack.c.b16 %v2352, %v2351
  %v2416 = vpack.c.b16 %v2354, %v2353
  %v2417 = vpack.c.b16 %v2356, %v2355
  %v2418 = vpack.c.b16 %v2358, %v2357
  %v2419 = vpack.c.b16 %v2360, %v2359
  %v2420 = vpack.c.b16 %v2362, %v2361
  %v2421 = vpack.c.b16 %v2364, %v2363
  %v2422 = vpack.c.b16 %v2366, %v2365
  %v2423 = vpack.c.b16 %v2368, %v2367
  %v2424 = vpack.c.b16 %v2370, %v2369
  %v2425 = vpack.c.b16 %v2372, %v2371
  %v2426 = vpack.c.b16 %v2374, %v2373
  %v2427 = vpack.c.b16 %v2376, %v2375
  %v2428 = vpack.c.b16 %v2378, %v2377
  %v2429 = vpack.c.b16 %v2380, %v2379
  %v2430 = vpack.c.b16 %v2382, %v2381
  %v2431 = vpack.c.b16 %v2384, %v2383
  %v2432 = vpack.c.b16 %v2386, %v2385
  %v2433 = vpack.c.b16 %v2388, %v2387
  %v2434 = vpack.c.b16 %v2390, %v2389
  %v2435 = vpack.c.b16 %v2392, %v2391
  %v2436 = vpack.c.b16 %v2394, %v2393
  %v2437 = vpack.c.b16 %v2396, %v2395
  %v2438 = vpack.c.b16 %v2398, %v2397
  %v2439 = vpack.c.b16 %v2400, %v2399
  %v2440 = vpack.c.b16 %v2402, %v2401
  %v2441 = vpack.c.b16 %v2404, %v2403
  %v2442 = vpack.c.b16 %v2406, %v2405
  %v2443 = vpack.c.b16 %v2408, %v2407
  %v2444 = vpack.c.b16 %v2410, %v2409
  %v2445 = vpack.c.b16 %v2412, %v2411
  %v2446 = vpack.c.b16 %v2414, %v2413
  %2479 = vmatprep.subr.bf16.mxu0 0
  %2480 = vmatpush1.bf16.msra.mxu0 %v2422
  %2481 = vmatprep.subr.bf16.mxu0 0
  %2482 = vmatpush1.bf16.msra.mxu0 %v2421
  %2483 = vmatprep.subr.bf16.mxu0 0
  %2484 = vmatpush1.bf16.msra.mxu0 %v2420
  %2485 = vmatprep.subr.bf16.mxu0 0
  %2486 = vmatpush1.bf16.msra.mxu0 %v2419
  %2487 = vmatprep.subr.bf16.mxu0 0
  %2488 = vmatpush1.bf16.msra.mxu0 %v2418
  %2489 = vmatprep.subr.bf16.mxu0 0
  %2490 = vmatpush1.bf16.msra.mxu0 %v2417
  %2491 = vmatprep.subr.bf16.mxu0 0
  %2492 = vmatpush1.bf16.msra.mxu0 %v2416
  %2493 = vmatprep.subr.bf16.mxu0 0
  %2494 = vmatpush1.bf16.msra.mxu0 %v2415
  %2495 = vmatprep.subr.bf16.mxu0 0
  %2496 = vmatpush2.bf16.msra.mxu0 %v2430
  %2497 = vmatprep.subr.bf16.mxu0 0
  %2498 = vmatpush2.bf16.msra.mxu0 %v2429
  %2499 = vmatprep.subr.bf16.mxu0 0
  %2500 = vmatpush2.bf16.msra.mxu0 %v2428
  %2501 = vmatprep.subr.bf16.mxu0 0
  %2502 = vmatpush2.bf16.msra.mxu0 %v2427
  %2503 = vmatprep.subr.bf16.mxu0 0
  %2504 = vmatpush2.bf16.msra.mxu0 %v2426
  %2505 = vmatprep.subr.bf16.mxu0 0
  %2506 = vmatpush2.bf16.msra.mxu0 %v2425
  %2507 = vmatprep.subr.bf16.mxu0 0
  %2508 = vmatpush2.bf16.msra.mxu0 %v2424
  %2509 = vmatprep.subr.bf16.mxu0 0
  %2510 = vmatpush2.bf16.msra.mxu0 %v2423
  %2511 = vmatprep.mubr.bf16.mxu0 %v2213
  %2512 = vmatmul.mubr.bf16.gmra.mxu0 %v2212
  %v2513 = vpop.f32.mrf.mxu0
  %v2514 = vadd.f32 %v2285, %v2513
  %v2515 = vpop.f32.mrf.mxu0
  %v2516 = vpop.f32.mrf.mxu0
  %v2517 = vpop.f32.mrf.mxu0
  %2518 = vdwg.mxu0
  %2519 = vmatprep.subr.bf16.mxu0 0
  %2520 = vmatpush1.bf16.msra.mxu0 %v2438
  %2521 = vmatprep.subr.bf16.mxu0 0
  %2522 = vmatpush1.bf16.msra.mxu0 %v2437
  %2523 = vmatprep.subr.bf16.mxu0 0
  %2524 = vmatpush1.bf16.msra.mxu0 %v2436
  %2525 = vmatprep.subr.bf16.mxu0 0
  %2526 = vmatpush1.bf16.msra.mxu0 %v2435
  %2527 = vmatprep.subr.bf16.mxu0 0
  %2528 = vmatpush1.bf16.msra.mxu0 %v2434
  %2529 = vmatprep.subr.bf16.mxu0 0
  %2530 = vmatpush1.bf16.msra.mxu0 %v2433
  %2531 = vmatprep.subr.bf16.mxu0 0
  %2532 = vmatpush1.bf16.msra.mxu0 %v2432
  %2533 = vmatprep.subr.bf16.mxu0 0
  %2534 = vmatpush1.bf16.msra.mxu0 %v2431
  %2535 = vmatprep.subr.bf16.mxu0 0
  %2536 = vmatpush2.bf16.msra.mxu0 %v2446
  %2537 = vmatprep.subr.bf16.mxu0 0
  %2538 = vmatpush2.bf16.msra.mxu0 %v2445
  %2539 = vmatprep.subr.bf16.mxu0 0
  %2540 = vmatpush2.bf16.msra.mxu0 %v2444
  %2541 = vmatprep.subr.bf16.mxu0 0
  %2542 = vmatpush2.bf16.msra.mxu0 %v2443
  %2543 = vmatprep.subr.bf16.mxu0 0
  %2544 = vmatpush2.bf16.msra.mxu0 %v2442
  %2545 = vmatprep.subr.bf16.mxu0 0
  %2546 = vmatpush2.bf16.msra.mxu0 %v2441
  %2547 = vmatprep.subr.bf16.mxu0 0
  %2548 = vmatpush2.bf16.msra.mxu0 %v2440
  %2549 = vmatprep.subr.bf16.mxu0 0
  %2550 = vmatpush2.bf16.msra.mxu0 %v2439
  %2551 = vmatprep.mubr.bf16.mxu0 %v2215
  %2552 = vmatmul.mubr.bf16.gmra.mxu0 %v2214
  %v2553 = vpop.f32.mrf.mxu0
  %v2554 = vadd.f32 %v2514, %v2553
  %v2555 = vpop.f32.mrf.mxu0
  %v2556 = vpop.f32.mrf.mxu0
  %v2557 = vpop.f32.mrf.mxu0
  %2558 = vdwg.mxu0
  %v2559 = vlaneseq
  %v2560 = vand.u32 %v2559, 127
  %vm2561 = vcmp.lt.s32.totalorder %v2560, 6
  %v2562 = vsel %vm2561, %v2554, -1e+30
  %vm2563 = vcmask 1041408
  %v2564 = vsel %vm2563, %v2562, -inf
  %2565 = vmax.xlane.f32.xlu0 %v2564
  %v2566 = vpop.xlane.xlu0 %2565
  %v2567 = vsub.f32 %v2562, %v2566
  %v2568 = vmul.f32 %v2567, 1.442695
  %v2569 = vpow.pop %v2568
  %v2570 = vsel %vm2561, %v2569, 0.0
  %v2571 = vsel %vm2563, %v2570, 0.0
  %2572 = vadd.xlane.f32.xlu0 %v2571
  %v2573 = vpop.xlane.xlu0 %2572
  %v2574 = vlog2.pop %v2573
  %v2575 = vmul.f32 %v2574, 0.6931472
  %v2576 = vadd.f32 %v2566, %v2575
  %v2577 = vsub.f32 %v2554, %v2576
  %vm2578 = vcmp.eq.s32.totalorder %v2560, 6
  %v2579 = vsel %vm2578, %v2554, 0.0
  %v2580 = vsel %vm2561, %v2577, %v2579
  %2581 = vst [vmem:[%s9] sm:$0x3] %v2580
  // Predicated region
  $region38: #{multi_team_policy_forward.3} parent=0 // pred_check
    _
  $region39: #{multi_team_policy_forward.3} parent=0 // pred_check_branch
    %2583 = sbr.rel (0) target = $region41
  $region40: #{multi_team_policy_forward.3} parent=0 // pred_region
    _
  $region41: #{multi_team_policy_forward.3} parent=0 // pred_fallthru
    _
  // Predicated region
  $region42: #{multi_team_policy_forward.3} parent=0 // pred_check
    _
  $region43: #{multi_team_policy_forward.3} parent=0 // pred_check_branch
    %2585 = sbr.rel (0) target = $region45
  $region44: #{multi_team_policy_forward.3} parent=0 // pred_region
    _
  $region45: #{multi_team_policy_forward.3} parent=0 // pred_fallthru
    _

</llo_original>
